<compile_context>
chip_gen: v5e
topology: v5e:2x2
jax: 0.10.0
libtpu: 0.0.40
codegen_flags: <defaults>
</compile_context>

<pallas_src>
import numpy as np
import jax
import jax.numpy as jnp
from jax import lax
from jax.experimental import pallas as pl
from jax.experimental.pallas import tpu as pltpu

VMEM_SPEC = pl.BlockSpec(memory_space=pltpu.MemorySpace.VMEM)


# ---------------------------------------------------------------------------
# Fused Pallas kernel: conv1+pool -> conv2+pool -> fc1 -> fc2 -> log_softmax
# ---------------------------------------------------------------------------
def lenet_fused_kernel(pat_ref, w1_ref, b1_ref, w2_ref, b2_ref,
                       wfc1_ref, bfc1_ref, wfc2_ref, bfc2_ref,
                       o_ref, fc1_lhs):
    N = o_ref.shape[0]
    R1 = 12 * 4 * N            # slab rows: (y, ow2, n)            = 96  (N=2)
    R2 = 8 * 4 * N             # conv2 rows: (oh, ow2, n)          = 64
    B = 4 * N                  # rows per y / per oh (sublane-aligned for even N)

    # ---- Stage 1: conv1 as ONE matmul, then 2x2 maxpool + bias + relu -------
    # pat rows: (ph, y, ow2, n); cols (i, m).  Output cols: pw*128 + d*20 + c1.
    s1 = jnp.dot(pat_ref[...], w1_ref[...],
                 preferred_element_type=jnp.float32)            # (2*R1, 256) f32
    m_pw = jnp.maximum(s1[:, 0:128], s1[:, 128:256])            # pool over pool-x (lane-aligned)
    m1 = jnp.maximum(m_pw[0:R1, :], m_pw[R1:2 * R1, :])         # pool over pool-y (row halves)
    # slab[(y,ow2,n), d*20+c1] = pooled_relu_conv1[n, y, 2*ow2+d, c1]; cols 120:128 = 0
    slab = jnp.maximum(m1 + b1_ref[...], 0.0).astype(jnp.bfloat16)   # (R1, 128) bf16, cast ONCE

    # ---- Stage 2: conv2 as 5 matmuls (K=120 eff), pool + bias + relu --------
    # w2_ref[i]: rows (d,c1) padded to 128, cols pw*128 + c2 (pw halves lane-aligned).
    acc2 = jnp.zeros((R2, 256), jnp.float32)
    for i in range(5):
        acc2 = acc2 + jnp.dot(slab[i * B:i * B + R2, :], w2_ref[i],
                              preferred_element_type=jnp.float32)
    m2 = jnp.maximum(acc2[:, 0:128], acc2[:, 128:256]) + b2_ref[...]   # pool over ow-pair, +bias

    # Pool over oh-pair + relu, then scatter pooled (N,64) tiles into the fc1 LHS
    # scratch at static 64-lane offsets (spatial index s = oh2*4 + ow2).
    for oh2 in range(4):
        top = m2[(2 * oh2) * B:(2 * oh2 + 1) * B, :]
        bot = m2[(2 * oh2 + 1) * B:(2 * oh2 + 2) * B, :]
        blk = jnp.maximum(jnp.maximum(top, bot), 0.0)            # (B, 128), rows (ow2, n)
        for ow2 in range(4):
            s = oh2 * 4 + ow2
            fc1_lhs[:, s * 64:(s + 1) * 64] = blk[ow2 * N:(ow2 + 1) * N, 0:64]

    # ---- fc1: single (N,1024)x(1024,500) matmul (+ relu) --------------------
    h3 = jnp.dot(fc1_lhs[...].astype(jnp.bfloat16), wfc1_ref[...],
                 preferred_element_type=jnp.float32) + bfc1_ref[...]
    h3 = jnp.maximum(h3, 0.0)                                     # (N, 500) f32

    # ---- fc2 + log_softmax ---------------------------------------------------
    logits = jnp.dot(h3.astype(jnp.bfloat16), wfc2_ref[...],
                     preferred_element_type=jnp.float32) + bfc2_ref[...]    # (N, 10)
    zmax = jnp.max(logits, axis=-1, keepdims=True)
    z = logits - zmax
    lse = jnp.log(jnp.sum(jnp.exp(z), axis=-1, keepdims=True))
    o_ref[...] = (z - lse).astype(o_ref.dtype)


# ---------------------------------------------------------------------------
# Wrapper-side patch extraction (cheap XLA, traced once inside the same jit)
# ---------------------------------------------------------------------------
def build_conv1_patches(x_img):
    """x_img: (N, 28, 28) -> (2*12*4*N, 80) bf16 lane-dense conv1 patches.

    Row index = ((ph*12 + y)*4 + ow2)*N + n ; column index = i*16 + m.
    Entry = x_img[n, 2*y + ph + i, 4*ow2 + m].
    """
    N = x_img.shape[0]
    # Width windows: wins[n, r, ow2, m] = x[n, r, 4*ow2 + m]
    wins = jnp.stack([x_img[:, :, 4 * w:4 * w + 16] for w in range(4)], axis=2)   # (N,28,4,16)
    rows = []
    for ph in range(2):
        for i in range(5):
            rows.append(wins[:, ph + i:ph + i + 24:2])          # (N,12,4,16): rows 2y+ph+i
    pat = jnp.stack(rows, axis=0).reshape(2, 5, N, 12, 4, 16)   # (ph, i, n, y, ow2, m)
    pat = jnp.transpose(pat, (0, 3, 4, 2, 1, 5))                # (ph, y, ow2, n, i, m)
    return pat.reshape(2 * 12 * 4 * N, 80).astype(jnp.bfloat16)


def prepare_params(params):
    """One-time layout / dtype transforms (numpy, OUTSIDE the jitted forward)."""
    w1 = np.asarray(params["conv1_w"], np.float32)      # (20, 1, 5, 5)  (c1, 1, i, j)
    b1 = np.asarray(params["conv1_b"], np.float32)      # (20,)
    w2 = np.asarray(params["conv2_w"], np.float32)      # (50, 20, 5, 5) (c2, c1, i, j)
    b2 = np.asarray(params["conv2_b"], np.float32)      # (50,)
    fc1_w = np.asarray(params["fc1_w"], np.float32)     # (500, 800)
    fc2_w = np.asarray(params["fc2_w"], np.float32)     # (10, 500)

    # Stage-1 weight: rows (i, m)=80, cols pw*128 + d*20 + c1 (two lane-aligned halves).
    w1big = np.zeros((80, 256), np.float32)
    for i in range(5):
        for d in range(6):
            for pw in range(2):
                for j in range(5):
                    m = 2 * d + pw + j        # always < 16
                    w1big[i * 16 + m, pw * 128 + d * 20: pw * 128 + (d + 1) * 20] = w1[:, 0, i, j]
    b1pad = np.zeros((1, 128), np.float32)
    b1pad[0, :120] = np.tile(b1, 6)           # col d*20 + c1 -> conv1_b[c1]

    # Stage-2 weight per kernel row i: rows (d,c1) padded to 128, cols pw*128 + c2.
    w2big = np.zeros((5, 128, 256), np.float32)
    for i in range(5):
        for pw in range(2):
            for d in range(6):
                j = d - pw
                if 0 <= j <= 4:
                    w2big[i, d * 20:(d + 1) * 20, pw * 128: pw * 128 + 50] = w2[:, :, i, j].T
    b2pad = np.zeros((1, 128), np.float32)
    b2pad[0, :50] = b2

    # fc1 weight: rows s*64 + c2 (spatial-major, 64-padded) -> fc1_w[:, c2*16 + s].
    wfc1 = np.zeros((16, 64, 500), np.float32)
    wfc1[:, :50, :] = fc1_w.reshape(500, 50, 16).transpose(2, 1, 0)   # (s, c2, f)
    wfc1 = wfc1.reshape(1024, 500)

    return {
        "w1big": jnp.asarray(w1big, jnp.bfloat16),
        "b1pad": jnp.asarray(b1pad, jnp.float32),
        "w2big": jnp.asarray(w2big, jnp.bfloat16),
        "b2pad": jnp.asarray(b2pad, jnp.float32),
        "wfc1": jnp.asarray(wfc1, jnp.bfloat16),
        "bfc1": jnp.asarray(params["fc1_b"], jnp.float32).reshape(1, 500),
        "wfc2": jnp.asarray(fc2_w.T, jnp.bfloat16),                    # (500, 10)
        "bfc2": jnp.asarray(params["fc2_b"], jnp.float32).reshape(1, 10),
    }


def forward(prepped, x_nchw):
    N = x_nchw.shape[0]
    assert N % 2 == 0, "row blocks (4*N) assume sublane(8) alignment -> even batch"
    pat = build_conv1_patches(x_nchw[:, 0, :, :])       # (2*12*4*N, 80) bf16
    return pl.pallas_call(
        lenet_fused_kernel,
        out_shape=jax.ShapeDtypeStruct((N, 10), jnp.float32),
        in_specs=[VMEM_SPEC] * 9,
        out_specs=VMEM_SPEC,
        scratch_shapes=[pltpu.VMEM((N, 1024), jnp.float32)],   # fc1 LHS assembly buffer
    )(pat, prepped["w1big"], prepped["b1pad"], prepped["w2big"], prepped["b2pad"],
      prepped["wfc1"], prepped["bfc1"], prepped["wfc2"], prepped["bfc2"])


# ---------------------------------------------------------------------------
# Pure-JAX reference (mirrors the PyTorch module, f32) and parameter init
# ---------------------------------------------------------------------------
def reference_forward(params, x):
    h = lax.conv_general_dilated(x, params["conv1_w"], (1, 1), "VALID",
                                 dimension_numbers=("NCHW", "OIHW", "NCHW"))
    h = jax.nn.relu(h + params["conv1_b"][None, :, None, None])
    h = lax.reduce_window(h, -jnp.inf, lax.max, (1, 1, 2, 2), (1, 1, 2, 2), "VALID")
    h = lax.conv_general_dilated(h, params["conv2_w"], (1, 1), "VALID",
                                 dimension_numbers=("NCHW", "OIHW", "NCHW"))
    h = jax.nn.relu(h + params["conv2_b"][None, :, None, None])
    h = lax.reduce_window(h, -jnp.inf, lax.max, (1, 1, 2, 2), (1, 1, 2, 2), "VALID")
    flat = h.reshape(h.shape[0], -1)                    # (N, 50*4*4) NCHW flatten
    h = jax.nn.relu(flat @ params["fc1_w"].T + params["fc1_b"])
    logits = h @ params["fc2_w"].T + params["fc2_b"]
    return jax.nn.log_softmax(logits, axis=-1)


def init_params(key):
    ks = jax.random.split(key, 8)
    s = 0.05
    return {
        "conv1_w": s * jax.random.normal(ks[0], (20, 1, 5, 5), jnp.float32),
        "conv1_b": s * jax.random.normal(ks[1], (20,), jnp.float32),
        "conv2_w": s * jax.random.normal(ks[2], (50, 20, 5, 5), jnp.float32),
        "conv2_b": s * jax.random.normal(ks[3], (50,), jnp.float32),
        "fc1_w": s * jax.random.normal(ks[4], (500, 4 * 4 * 50), jnp.float32),
        "fc1_b": s * jax.random.normal(ks[5], (500,), jnp.float32),
        "fc2_w": s * jax.random.normal(ks[6], (10, 500), jnp.float32),
        "fc2_b": s * jax.random.normal(ks[7], (10,), jnp.float32),
    }


if __name__ == "__main__":
    key = jax.random.PRNGKey(0)
    pkey, xkey = jax.random.split(key)
    params = init_params(pkey)
    prepped = prepare_params(params)   # pre-baked weight layouts (outside jit)

    # MNIST-style input: batch=2, 1 channel, 28x28 (required by the 4*4*50 flatten)
    x = jax.random.normal(xkey, (2, 1, 28, 28), jnp.float32)

    out = jax.jit(forward)(prepped, x)
    out = jax.block_until_ready(out)

    assert out.shape == (2, 10)
    # log_softmax rows exponentiate-sum to 1
    assert jnp.allclose(jnp.sum(jnp.exp(out), axis=-1), 1.0, atol=1e-4)
    # matches the f32 reference (bf16 matmul operands, f32 accumulation)
    ref = reference_forward(params, x)
    assert jnp.allclose(out, ref, atol=1e-1)

    print("KERNEL_OK")
</pallas_src>

<mosaic_0001>
module attributes {stable_mosaic.version = 11 : i64} {
  func.func @lenet_fused_kernel(%arg0: memref<192x80xbf16, #tpu.memory_space<vmem>>, %arg1: memref<80x256xbf16, #tpu.memory_space<vmem>>, %arg2: memref<1x128xf32, #tpu.memory_space<vmem>>, %arg3: memref<5x128x256xbf16, #tpu.memory_space<vmem>>, %arg4: memref<1x128xf32, #tpu.memory_space<vmem>>, %arg5: memref<1024x500xbf16, #tpu.memory_space<vmem>>, %arg6: memref<1x500xf32, #tpu.memory_space<vmem>>, %arg7: memref<500x10xbf16, #tpu.memory_space<vmem>>, %arg8: memref<1x10xf32, #tpu.memory_space<vmem>>, %arg9: memref<2x10xf32, #tpu.memory_space<vmem>>, %arg10: memref<2x1024xf32, #tpu.memory_space<vmem>>) attributes {dimension_semantics = [], scalar_prefetch = 0 : i64, scratch_operands = 1 : i64, tpu.core_type = #tpu.core_type<tc>} {
    %c0 = arith.constant 0 : index
    %c0_0 = arith.constant 0 : index
    %0 = vector.load %arg0[%c0, %c0_0] : memref<192x80xbf16, #tpu.memory_space<vmem>>, vector<192x80xbf16>
    %c0_1 = arith.constant 0 : index
    %c0_2 = arith.constant 0 : index
    %1 = vector.load %arg1[%c0_1, %c0_2] : memref<80x256xbf16, #tpu.memory_space<vmem>>, vector<80x256xbf16>
    %cst = arith.constant dense<0.000000e+00> : vector<192x256xf32>
    %2 = tpu.matmul %0, %1, %cst {dimension_numbers = #tpu.dot_dimension_numbers<[1], [0], [0], [1], [0, 0, 1, 1], [], []>} : vector<192x80xbf16>, vector<80x256xbf16>, vector<192x256xf32> -> vector<192x256xf32>
    %3 = vector.extract_strided_slice %2 {offsets = [0, 0], sizes = [192, 128], strides = [1, 1]} : vector<192x256xf32> to vector<192x128xf32>
    %4 = vector.extract_strided_slice %2 {offsets = [0, 128], sizes = [192, 128], strides = [1, 1]} : vector<192x256xf32> to vector<192x128xf32>
    %5 = arith.maximumf %3, %4 : vector<192x128xf32>
    %6 = vector.extract_strided_slice %5 {offsets = [0, 0], sizes = [96, 128], strides = [1, 1]} : vector<192x128xf32> to vector<96x128xf32>
    %7 = vector.extract_strided_slice %5 {offsets = [96, 0], sizes = [96, 128], strides = [1, 1]} : vector<192x128xf32> to vector<96x128xf32>
    %8 = arith.maximumf %6, %7 : vector<96x128xf32>
    %c0_3 = arith.constant 0 : index
    %c0_4 = arith.constant 0 : index
    %9 = vector.load %arg2[%c0_3, %c0_4] : memref<1x128xf32, #tpu.memory_space<vmem>>, vector<1x128xf32>
    %10 = vector.broadcast %9 : vector<1x128xf32> to vector<96x128xf32>
    %11 = arith.addf %8, %10 : vector<96x128xf32>
    %cst_5 = arith.constant 0.000000e+00 : f32
    %12 = vector.broadcast %cst_5 : f32 to vector<96x128xf32>
    %13 = arith.maximumf %11, %12 : vector<96x128xf32>
    %14 = arith.truncf %13 : vector<96x128xf32> to vector<96x128xbf16>
    %cst_6 = arith.constant 0.000000e+00 : f32
    %15 = vector.broadcast %cst_6 : f32 to vector<64x256xf32>
    %16 = vector.extract_strided_slice %14 {offsets = [0, 0], sizes = [64, 128], strides = [1, 1]} : vector<96x128xbf16> to vector<64x128xbf16>
    %c0_7 = arith.constant 0 : index
    %c0_8 = arith.constant 0 : index
    %c0_9 = arith.constant 0 : index
    %17 = vector.load %arg3[%c0_7, %c0_8, %c0_9] : memref<5x128x256xbf16, #tpu.memory_space<vmem>>, vector<1x128x256xbf16>
    %18 = vector.shape_cast %17 : vector<1x128x256xbf16> to vector<128x256xbf16>
    %cst_10 = arith.constant dense<0.000000e+00> : vector<64x256xf32>
    %19 = tpu.matmul %16, %18, %cst_10 {dimension_numbers = #tpu.dot_dimension_numbers<[1], [0], [0], [1], [0, 0, 1, 1], [], []>} : vector<64x128xbf16>, vector<128x256xbf16>, vector<64x256xf32> -> vector<64x256xf32>
    %20 = arith.addf %15, %19 : vector<64x256xf32>
    %21 = vector.extract_strided_slice %14 {offsets = [8, 0], sizes = [64, 128], strides = [1, 1]} : vector<96x128xbf16> to vector<64x128xbf16>
    %c1 = arith.constant 1 : index
    %c0_11 = arith.constant 0 : index
    %c0_12 = arith.constant 0 : index
    %22 = vector.load %arg3[%c1, %c0_11, %c0_12] : memref<5x128x256xbf16, #tpu.memory_space<vmem>>, vector<1x128x256xbf16>
    %23 = vector.shape_cast %22 : vector<1x128x256xbf16> to vector<128x256xbf16>
    %cst_13 = arith.constant dense<0.000000e+00> : vector<64x256xf32>
    %24 = tpu.matmul %21, %23, %cst_13 {dimension_numbers = #tpu.dot_dimension_numbers<[1], [0], [0], [1], [0, 0, 1, 1], [], []>} : vector<64x128xbf16>, vector<128x256xbf16>, vector<64x256xf32> -> vector<64x256xf32>
    %25 = arith.addf %20, %24 : vector<64x256xf32>
    %26 = vector.extract_strided_slice %14 {offsets = [16, 0], sizes = [64, 128], strides = [1, 1]} : vector<96x128xbf16> to vector<64x128xbf16>
    %c2 = arith.constant 2 : index
    %c0_14 = arith.constant 0 : index
    %c0_15 = arith.constant 0 : index
    %27 = vector.load %arg3[%c2, %c0_14, %c0_15] : memref<5x128x256xbf16, #tpu.memory_space<vmem>>, vector<1x128x256xbf16>
    %28 = vector.shape_cast %27 : vector<1x128x256xbf16> to vector<128x256xbf16>
    %cst_16 = arith.constant dense<0.000000e+00> : vector<64x256xf32>
    %29 = tpu.matmul %26, %28, %cst_16 {dimension_numbers = #tpu.dot_dimension_numbers<[1], [0], [0], [1], [0, 0, 1, 1], [], []>} : vector<64x128xbf16>, vector<128x256xbf16>, vector<64x256xf32> -> vector<64x256xf32>
    %30 = arith.addf %25, %29 : vector<64x256xf32>
    %31 = vector.extract_strided_slice %14 {offsets = [24, 0], sizes = [64, 128], strides = [1, 1]} : vector<96x128xbf16> to vector<64x128xbf16>
    %c3 = arith.constant 3 : index
    %c0_17 = arith.constant 0 : index
    %c0_18 = arith.constant 0 : index
    %32 = vector.load %arg3[%c3, %c0_17, %c0_18] : memref<5x128x256xbf16, #tpu.memory_space<vmem>>, vector<1x128x256xbf16>
    %33 = vector.shape_cast %32 : vector<1x128x256xbf16> to vector<128x256xbf16>
    %cst_19 = arith.constant dense<0.000000e+00> : vector<64x256xf32>
    %34 = tpu.matmul %31, %33, %cst_19 {dimension_numbers = #tpu.dot_dimension_numbers<[1], [0], [0], [1], [0, 0, 1, 1], [], []>} : vector<64x128xbf16>, vector<128x256xbf16>, vector<64x256xf32> -> vector<64x256xf32>
    %35 = arith.addf %30, %34 : vector<64x256xf32>
    %36 = vector.extract_strided_slice %14 {offsets = [32, 0], sizes = [64, 128], strides = [1, 1]} : vector<96x128xbf16> to vector<64x128xbf16>
    %c4 = arith.constant 4 : index
    %c0_20 = arith.constant 0 : index
    %c0_21 = arith.constant 0 : index
    %37 = vector.load %arg3[%c4, %c0_20, %c0_21] : memref<5x128x256xbf16, #tpu.memory_space<vmem>>, vector<1x128x256xbf16>
    %38 = vector.shape_cast %37 : vector<1x128x256xbf16> to vector<128x256xbf16>
    %cst_22 = arith.constant dense<0.000000e+00> : vector<64x256xf32>
    %39 = tpu.matmul %36, %38, %cst_22 {dimension_numbers = #tpu.dot_dimension_numbers<[1], [0], [0], [1], [0, 0, 1, 1], [], []>} : vector<64x128xbf16>, vector<128x256xbf16>, vector<64x256xf32> -> vector<64x256xf32>
    %40 = arith.addf %35, %39 : vector<64x256xf32>
    %41 = vector.extract_strided_slice %40 {offsets = [0, 0], sizes = [64, 128], strides = [1, 1]} : vector<64x256xf32> to vector<64x128xf32>
    %42 = vector.extract_strided_slice %40 {offsets = [0, 128], sizes = [64, 128], strides = [1, 1]} : vector<64x256xf32> to vector<64x128xf32>
    %43 = arith.maximumf %41, %42 : vector<64x128xf32>
    %c0_23 = arith.constant 0 : index
    %c0_24 = arith.constant 0 : index
    %44 = vector.load %arg4[%c0_23, %c0_24] : memref<1x128xf32, #tpu.memory_space<vmem>>, vector<1x128xf32>
    %45 = vector.broadcast %44 : vector<1x128xf32> to vector<64x128xf32>
    %46 = arith.addf %43, %45 : vector<64x128xf32>
    %47 = vector.extract_strided_slice %46 {offsets = [0, 0], sizes = [8, 128], strides = [1, 1]} : vector<64x128xf32> to vector<8x128xf32>
    %48 = vector.extract_strided_slice %46 {offsets = [8, 0], sizes = [8, 128], strides = [1, 1]} : vector<64x128xf32> to vector<8x128xf32>
    %49 = arith.maximumf %47, %48 : vector<8x128xf32>
    %cst_25 = arith.constant 0.000000e+00 : f32
    %50 = vector.broadcast %cst_25 : f32 to vector<8x128xf32>
    %51 = arith.maximumf %49, %50 : vector<8x128xf32>
    %52 = vector.extract_strided_slice %51 {offsets = [0, 0], sizes = [2, 64], strides = [1, 1]} : vector<8x128xf32> to vector<2x64xf32>
    %c0_26 = arith.constant 0 : index
    %c0_27 = arith.constant 0 : index
    %53 = vector.load %arg10[%c0_26, %c0_27] : memref<2x1024xf32, #tpu.memory_space<vmem>>, vector<2x64xf32>
    tpu.vector_store %arg10[%c0_26, %c0_27], %52 {strides = array<i32>} : memref<2x1024xf32, #tpu.memory_space<vmem>>, vector<2x64xf32>,
    %54 = vector.extract_strided_slice %51 {offsets = [2, 0], sizes = [2, 64], strides = [1, 1]} : vector<8x128xf32> to vector<2x64xf32>
    %c0_28 = arith.constant 0 : index
    %c64 = arith.constant 64 : index
    %55 = vector.load %arg10[%c0_28, %c64] : memref<2x1024xf32, #tpu.memory_space<vmem>>, vector<2x64xf32>
    tpu.vector_store %arg10[%c0_28, %c64], %54 {strides = array<i32>} : memref<2x1024xf32, #tpu.memory_space<vmem>>, vector<2x64xf32>,
    %56 = vector.extract_strided_slice %51 {offsets = [4, 0], sizes = [2, 64], strides = [1, 1]} : vector<8x128xf32> to vector<2x64xf32>
    %c0_29 = arith.constant 0 : index
    %c128 = arith.constant 128 : index
    %57 = vector.load %arg10[%c0_29, %c128] : memref<2x1024xf32, #tpu.memory_space<vmem>>, vector<2x64xf32>
    tpu.vector_store %arg10[%c0_29, %c128], %56 {strides = array<i32>} : memref<2x1024xf32, #tpu.memory_space<vmem>>, vector<2x64xf32>,
    %58 = vector.extract_strided_slice %51 {offsets = [6, 0], sizes = [2, 64], strides = [1, 1]} : vector<8x128xf32> to vector<2x64xf32>
    %c0_30 = arith.constant 0 : index
    %c192 = arith.constant 192 : index
    %59 = vector.load %arg10[%c0_30, %c192] : memref<2x1024xf32, #tpu.memory_space<vmem>>, vector<2x64xf32>
    tpu.vector_store %arg10[%c0_30, %c192], %58 {strides = array<i32>} : memref<2x1024xf32, #tpu.memory_space<vmem>>, vector<2x64xf32>,
    %60 = vector.extract_strided_slice %46 {offsets = [16, 0], sizes = [8, 128], strides = [1, 1]} : vector<64x128xf32> to vector<8x128xf32>
    %61 = vector.extract_strided_slice %46 {offsets = [24, 0], sizes = [8, 128], strides = [1, 1]} : vector<64x128xf32> to vector<8x128xf32>
    %62 = arith.maximumf %60, %61 : vector<8x128xf32>
    %cst_31 = arith.constant 0.000000e+00 : f32
    %63 = vector.broadcast %cst_31 : f32 to vector<8x128xf32>
    %64 = arith.maximumf %62, %63 : vector<8x128xf32>
    %65 = vector.extract_strided_slice %64 {offsets = [0, 0], sizes = [2, 64], strides = [1, 1]} : vector<8x128xf32> to vector<2x64xf32>
    %c0_32 = arith.constant 0 : index
    %c256 = arith.constant 256 : index
    %66 = vector.load %arg10[%c0_32, %c256] : memref<2x1024xf32, #tpu.memory_space<vmem>>, vector<2x64xf32>
    tpu.vector_store %arg10[%c0_32, %c256], %65 {strides = array<i32>} : memref<2x1024xf32, #tpu.memory_space<vmem>>, vector<2x64xf32>,
    %67 = vector.extract_strided_slice %64 {offsets = [2, 0], sizes = [2, 64], strides = [1, 1]} : vector<8x128xf32> to vector<2x64xf32>
    %c0_33 = arith.constant 0 : index
    %c320 = arith.constant 320 : index
    %68 = vector.load %arg10[%c0_33, %c320] : memref<2x1024xf32, #tpu.memory_space<vmem>>, vector<2x64xf32>
    tpu.vector_store %arg10[%c0_33, %c320], %67 {strides = array<i32>} : memref<2x1024xf32, #tpu.memory_space<vmem>>, vector<2x64xf32>,
    %69 = vector.extract_strided_slice %64 {offsets = [4, 0], sizes = [2, 64], strides = [1, 1]} : vector<8x128xf32> to vector<2x64xf32>
    %c0_34 = arith.constant 0 : index
    %c384 = arith.constant 384 : index
    %70 = vector.load %arg10[%c0_34, %c384] : memref<2x1024xf32, #tpu.memory_space<vmem>>, vector<2x64xf32>
    tpu.vector_store %arg10[%c0_34, %c384], %69 {strides = array<i32>} : memref<2x1024xf32, #tpu.memory_space<vmem>>, vector<2x64xf32>,
    %71 = vector.extract_strided_slice %64 {offsets = [6, 0], sizes = [2, 64], strides = [1, 1]} : vector<8x128xf32> to vector<2x64xf32>
    %c0_35 = arith.constant 0 : index
    %c448 = arith.constant 448 : index
    %72 = vector.load %arg10[%c0_35, %c448] : memref<2x1024xf32, #tpu.memory_space<vmem>>, vector<2x64xf32>
    tpu.vector_store %arg10[%c0_35, %c448], %71 {strides = array<i32>} : memref<2x1024xf32, #tpu.memory_space<vmem>>, vector<2x64xf32>,
    %73 = vector.extract_strided_slice %46 {offsets = [32, 0], sizes = [8, 128], strides = [1, 1]} : vector<64x128xf32> to vector<8x128xf32>
    %74 = vector.extract_strided_slice %46 {offsets = [40, 0], sizes = [8, 128], strides = [1, 1]} : vector<64x128xf32> to vector<8x128xf32>
    %75 = arith.maximumf %73, %74 : vector<8x128xf32>
    %cst_36 = arith.constant 0.000000e+00 : f32
    %76 = vector.broadcast %cst_36 : f32 to vector<8x128xf32>
    %77 = arith.maximumf %75, %76 : vector<8x128xf32>
    %78 = vector.extract_strided_slice %77 {offsets = [0, 0], sizes = [2, 64], strides = [1, 1]} : vector<8x128xf32> to vector<2x64xf32>
    %c0_37 = arith.constant 0 : index
    %c512 = arith.constant 512 : index
    %79 = vector.load %arg10[%c0_37, %c512] : memref<2x1024xf32, #tpu.memory_space<vmem>>, vector<2x64xf32>
    tpu.vector_store %arg10[%c0_37, %c512], %78 {strides = array<i32>} : memref<2x1024xf32, #tpu.memory_space<vmem>>, vector<2x64xf32>,
    %80 = vector.extract_strided_slice %77 {offsets = [2, 0], sizes = [2, 64], strides = [1, 1]} : vector<8x128xf32> to vector<2x64xf32>
    %c0_38 = arith.constant 0 : index
    %c576 = arith.constant 576 : index
    %81 = vector.load %arg10[%c0_38, %c576] : memref<2x1024xf32, #tpu.memory_space<vmem>>, vector<2x64xf32>
    tpu.vector_store %arg10[%c0_38, %c576], %80 {strides = array<i32>} : memref<2x1024xf32, #tpu.memory_space<vmem>>, vector<2x64xf32>,
    %82 = vector.extract_strided_slice %77 {offsets = [4, 0], sizes = [2, 64], strides = [1, 1]} : vector<8x128xf32> to vector<2x64xf32>
    %c0_39 = arith.constant 0 : index
    %c640 = arith.constant 640 : index
    %83 = vector.load %arg10[%c0_39, %c640] : memref<2x1024xf32, #tpu.memory_space<vmem>>, vector<2x64xf32>
    tpu.vector_store %arg10[%c0_39, %c640], %82 {strides = array<i32>} : memref<2x1024xf32, #tpu.memory_space<vmem>>, vector<2x64xf32>,
    %84 = vector.extract_strided_slice %77 {offsets = [6, 0], sizes = [2, 64], strides = [1, 1]} : vector<8x128xf32> to vector<2x64xf32>
    %c0_40 = arith.constant 0 : index
    %c704 = arith.constant 704 : index
    %85 = vector.load %arg10[%c0_40, %c704] : memref<2x1024xf32, #tpu.memory_space<vmem>>, vector<2x64xf32>
    tpu.vector_store %arg10[%c0_40, %c704], %84 {strides = array<i32>} : memref<2x1024xf32, #tpu.memory_space<vmem>>, vector<2x64xf32>,
    %86 = vector.extract_strided_slice %46 {offsets = [48, 0], sizes = [8, 128], strides = [1, 1]} : vector<64x128xf32> to vector<8x128xf32>
    %87 = vector.extract_strided_slice %46 {offsets = [56, 0], sizes = [8, 128], strides = [1, 1]} : vector<64x128xf32> to vector<8x128xf32>
    %88 = arith.maximumf %86, %87 : vector<8x128xf32>
    %cst_41 = arith.constant 0.000000e+00 : f32
    %89 = vector.broadcast %cst_41 : f32 to vector<8x128xf32>
    %90 = arith.maximumf %88, %89 : vector<8x128xf32>
    %91 = vector.extract_strided_slice %90 {offsets = [0, 0], sizes = [2, 64], strides = [1, 1]} : vector<8x128xf32> to vector<2x64xf32>
    %c0_42 = arith.constant 0 : index
    %c768 = arith.constant 768 : index
    %92 = vector.load %arg10[%c0_42, %c768] : memref<2x1024xf32, #tpu.memory_space<vmem>>, vector<2x64xf32>
    tpu.vector_store %arg10[%c0_42, %c768], %91 {strides = array<i32>} : memref<2x1024xf32, #tpu.memory_space<vmem>>, vector<2x64xf32>,
    %93 = vector.extract_strided_slice %90 {offsets = [2, 0], sizes = [2, 64], strides = [1, 1]} : vector<8x128xf32> to vector<2x64xf32>
    %c0_43 = arith.constant 0 : index
    %c832 = arith.constant 832 : index
    %94 = vector.load %arg10[%c0_43, %c832] : memref<2x1024xf32, #tpu.memory_space<vmem>>, vector<2x64xf32>
    tpu.vector_store %arg10[%c0_43, %c832], %93 {strides = array<i32>} : memref<2x1024xf32, #tpu.memory_space<vmem>>, vector<2x64xf32>,
    %95 = vector.extract_strided_slice %90 {offsets = [4, 0], sizes = [2, 64], strides = [1, 1]} : vector<8x128xf32> to vector<2x64xf32>
    %c0_44 = arith.constant 0 : index
    %c896 = arith.constant 896 : index
    %96 = vector.load %arg10[%c0_44, %c896] : memref<2x1024xf32, #tpu.memory_space<vmem>>, vector<2x64xf32>
    tpu.vector_store %arg10[%c0_44, %c896], %95 {strides = array<i32>} : memref<2x1024xf32, #tpu.memory_space<vmem>>, vector<2x64xf32>,
    %97 = vector.extract_strided_slice %90 {offsets = [6, 0], sizes = [2, 64], strides = [1, 1]} : vector<8x128xf32> to vector<2x64xf32>
    %c0_45 = arith.constant 0 : index
    %c960 = arith.constant 960 : index
    %98 = vector.load %arg10[%c0_45, %c960] : memref<2x1024xf32, #tpu.memory_space<vmem>>, vector<2x64xf32>
    tpu.vector_store %arg10[%c0_45, %c960], %97 {strides = array<i32>} : memref<2x1024xf32, #tpu.memory_space<vmem>>, vector<2x64xf32>,
    %c0_46 = arith.constant 0 : index
    %c0_47 = arith.constant 0 : index
    %99 = vector.load %arg10[%c0_46, %c0_47] : memref<2x1024xf32, #tpu.memory_space<vmem>>, vector<2x1024xf32>
    %100 = arith.truncf %99 : vector<2x1024xf32> to vector<2x1024xbf16>
    %c0_48 = arith.constant 0 : index
    %c0_49 = arith.constant 0 : index
    %101 = vector.load %arg5[%c0_48, %c0_49] : memref<1024x500xbf16, #tpu.memory_space<vmem>>, vector<1024x500xbf16>
    %cst_50 = arith.constant dense<0.000000e+00> : vector<2x500xf32>
    %102 = tpu.matmul %100, %101, %cst_50 {dimension_numbers = #tpu.dot_dimension_numbers<[1], [0], [0], [1], [0, 0, 1, 1], [], []>} : vector<2x1024xbf16>, vector<1024x500xbf16>, vector<2x500xf32> -> vector<2x500xf32>
    %c0_51 = arith.constant 0 : index
    %c0_52 = arith.constant 0 : index
    %103 = vector.load %arg6[%c0_51, %c0_52] : memref<1x500xf32, #tpu.memory_space<vmem>>, vector<1x500xf32>
    %104 = vector.broadcast %103 : vector<1x500xf32> to vector<2x500xf32>
    %105 = arith.addf %102, %104 : vector<2x500xf32>
    %cst_53 = arith.constant 0.000000e+00 : f32
    %106 = vector.broadcast %cst_53 : f32 to vector<2x500xf32>
    %107 = arith.maximumf %105, %106 : vector<2x500xf32>
    %108 = arith.truncf %107 : vector<2x500xf32> to vector<2x500xbf16>
    %c0_54 = arith.constant 0 : index
    %c0_55 = arith.constant 0 : index
    %109 = vector.load %arg7[%c0_54, %c0_55] : memref<500x10xbf16, #tpu.memory_space<vmem>>, vector<500x10xbf16>
    %cst_56 = arith.constant dense<0.000000e+00> : vector<2x10xf32>
    %110 = tpu.matmul %108, %109, %cst_56 {dimension_numbers = #tpu.dot_dimension_numbers<[1], [0], [0], [1], [0, 0, 1, 1], [], []>} : vector<2x500xbf16>, vector<500x10xbf16>, vector<2x10xf32> -> vector<2x10xf32>
    %c0_57 = arith.constant 0 : index
    %c0_58 = arith.constant 0 : index
    %111 = vector.load %arg8[%c0_57, %c0_58] : memref<1x10xf32, #tpu.memory_space<vmem>>, vector<1x10xf32>
    %112 = vector.broadcast %111 : vector<1x10xf32> to vector<2x10xf32>
    %113 = arith.addf %110, %112 : vector<2x10xf32>
    %cst_59 = arith.constant dense<0xFF800000> : vector<2xf32>
    %114 = vector.multi_reduction <maximumf>, %113, %cst_59 [1] : vector<2x10xf32> to vector<2xf32>
    %115 = vector.shape_cast %114 : vector<2xf32> to vector<2x1xf32>
    %116 = vector.broadcast %115 : vector<2x1xf32> to vector<2x10xf32>
    %117 = arith.subf %113, %116 : vector<2x10xf32>
    %118 = math.exp %117 : vector<2x10xf32>
    %cst_60 = arith.constant dense<0.000000e+00> : vector<2xf32>
    %119 = vector.multi_reduction <add>, %118, %cst_60 [1] : vector<2x10xf32> to vector<2xf32>
    %120 = vector.shape_cast %119 : vector<2xf32> to vector<2x1xf32>
    %121 = math.log %120 : vector<2x1xf32>
    %122 = vector.broadcast %121 : vector<2x1xf32> to vector<2x10xf32>
    %123 = arith.subf %117, %122 : vector<2x10xf32>
    %c0_61 = arith.constant 0 : index
    %c0_62 = arith.constant 0 : index
    %124 = vector.load %arg9[%c0_61, %c0_62] : memref<2x10xf32, #tpu.memory_space<vmem>>, vector<2x10xf32>
    tpu.vector_store %arg9[%c0_61, %c0_62], %123 {strides = array<i32>} : memref<2x10xf32, #tpu.memory_space<vmem>>, vector<2x10xf32>,
    return
  }
}

</mosaic_0001>

<llo_original>
// kernel: forward.1
$region0: #{forward.1}
  #allocation0 [shape = 'u32[]', space=smem, size = 0x4, offset = 0x4, fixed_abs, tag = 'smem constant byte address 0x4 - core index']
  #allocation1 [shape = 'u32[72,128]{1,0:T(1,128)}', space=vmem, size = 0x9000, scoped, tag = 'internal scratch']
  #allocation2 [shape = 'f32[2,1024]{1,0:T(2,128)}', space=vmem, size = 0x2000, scoped, tag = 'scratch operand']
  %s0 = inlined_call_operand.vmem [shape: bf16[192,80], index: 0, kind: input, shape index: {}]
  %s1 = inlined_call_operand.vmem [shape: bf16[80,256], index: 1, kind: input, shape index: {}]
  %s2 = inlined_call_operand.vmem [shape: f32[1,128], index: 2, kind: input, shape index: {}]
  %s3 = inlined_call_operand.vmem [shape: bf16[5,128,256], index: 3, kind: input, shape index: {}]
  %s4 = inlined_call_operand.vmem [shape: f32[1,128], index: 4, kind: input, shape index: {}]
  %s5 = inlined_call_operand.vmem [shape: bf16[1024,500], index: 5, kind: input, shape index: {}]
  %s6 = inlined_call_operand.vmem [shape: f32[1,500], index: 6, kind: input, shape index: {}]
  %s7 = inlined_call_operand.vmem [shape: bf16[500,10], index: 7, kind: input, shape index: {}]
  %s8 = inlined_call_operand.vmem [shape: f32[1,10], index: 8, kind: input, shape index: {}]
  %s9 = inlined_call_operand.hbm [shape: f32[2,10], index: 9, kind: output, shape index: {}]
  %s10 = sld [smem:[#allocation0]]
  $region46: #{forward.1} parent=0
    _
  %s12 = ssub.s32 1, %s10
  %s13 = scalar_select 0, %s12, %s10
  $region1: #{forward.1} parent=0
    #allocation3 [shape = 'u8[1024]{0}', space=vmem, size = 0x400, scoped, tag = 'output window, operand 0, single buffered']
    #allocation4 [shape = 's32[1]{0}', space=sflag, size = 0x4, scoped, tag = 'scoped memory for forward.1']
    %14 = vsyncpa [#allocation4], 0
    // Predicated region
    $region2: #{forward.1} parent=1 // pred_check
      _
    $region3: #{forward.1} parent=1 // pred_check_branch
      %16 = sbr.rel (0) target = $region5
    $region4: #{forward.1} parent=1 // pred_region
      _
    $region5: #{forward.1} parent=1 // pred_fallthru
      _
    // Predicated region
    $region6: #{forward.1} parent=1 // pred_check
      _
    $region7: #{forward.1} parent=1 // pred_check_branch
      %18 = sbr.rel (0) target = $region9
    $region8: #{forward.1} parent=1 // pred_region
      _
    $region9: #{forward.1} parent=1 // pred_fallthru
      _
    // Predicated region
    $region10: #{forward.1} parent=1 // pred_check
      _
    $region11: #{forward.1} parent=1 // pred_check_branch
      %20 = sbr.rel (0) target = $region13
    $region12: #{forward.1} parent=1 // pred_region
      _
    $region13: #{forward.1} parent=1 // pred_fallthru
      _
    // Predicated region
    $region14: #{forward.1} parent=1 // pred_check
      _
    $region15: #{forward.1} parent=1 // pred_check_branch
      %22 = sbr.rel (0) target = $region17
    $region16: #{forward.1} parent=1 // pred_region
      _
    $region17: #{forward.1} parent=1 // pred_fallthru
      _
    // Predicated region
    $region18: #{forward.1} parent=1 // pred_check
      _
    $region19: #{forward.1} parent=1 // pred_check_branch
      %24 = sbr.rel (0) target = $region21
    $region20: #{forward.1} parent=1 // pred_region
      _
    $region21: #{forward.1} parent=1 // pred_fallthru
      _
    // Predicated region
    $region22: #{forward.1} parent=1 // pred_check
      _
    $region23: #{forward.1} parent=1 // pred_check_branch
      %26 = sbr.rel (0) target = $region25
    $region24: #{forward.1} parent=1 // pred_region
      _
    $region25: #{forward.1} parent=1 // pred_fallthru
      _
    // Predicated region
    $region26: #{forward.1} parent=1 // pred_check
      _
    $region27: #{forward.1} parent=1 // pred_check_branch
      %28 = sbr.rel (0) target = $region29
    $region28: #{forward.1} parent=1 // pred_region
      _
    $region29: #{forward.1} parent=1 // pred_fallthru
      _
    // Predicated region
    $region30: #{forward.1} parent=1 // pred_check
      _
    $region31: #{forward.1} parent=1 // pred_check_branch
      %30 = sbr.rel (0) target = $region33
    $region32: #{forward.1} parent=1 // pred_region
      _
    $region33: #{forward.1} parent=1 // pred_fallthru
      _
    // Predicated region
    $region34: #{forward.1} parent=1 // pred_check
      _
    $region35: #{forward.1} parent=1 // pred_check_branch
      %32 = sbr.rel (0) target = $region37
    $region36: #{forward.1} parent=1 // pred_region
      _
    $region37: #{forward.1} parent=1 // pred_fallthru
      _
    %v34 = vld [vmem:[%s0] sm:$0xf]
    %v35 = vld [vmem:[%s0 + $0x4] sm:$0xf]
    %v36 = vld [vmem:[%s0 + $0x8] sm:$0xf]
    %v37 = vld [vmem:[%s0 + $0xc] sm:$0xf]
    %v38 = vld [vmem:[%s0 + $0x10] sm:$0xf]
    %v39 = vld [vmem:[%s0 + $0x14] sm:$0xf]
    %v40 = vld [vmem:[%s0 + $0x18] sm:$0xf]
    %v41 = vld [vmem:[%s0 + $0x1c] sm:$0xf]
    %v42 = vld [vmem:[%s0 + $0x20] sm:$0xf]
    %v43 = vld [vmem:[%s0 + $0x24] sm:$0xf]
    %v44 = vld [vmem:[%s0 + $0x28] sm:$0xf]
    %v45 = vld [vmem:[%s0 + $0x2c] sm:$0xf]
    %v46 = vld [vmem:[%s0 + $0x30] sm:$0xf]
    %v47 = vld [vmem:[%s0 + $0x34] sm:$0xf]
    %v48 = vld [vmem:[%s0 + $0x38] sm:$0xf]
    %v49 = vld [vmem:[%s0 + $0x3c] sm:$0xf]
    %v50 = vld [vmem:[%s0 + $0x40] sm:$0xf]
    %v51 = vld [vmem:[%s0 + $0x44] sm:$0xf]
    %v52 = vld [vmem:[%s0 + $0x48] sm:$0xf]
    %v53 = vld [vmem:[%s0 + $0x4c] sm:$0xf]
    %v54 = vld [vmem:[%s0 + $0x50] sm:$0xf]
    %v55 = vld [vmem:[%s0 + $0x54] sm:$0xf]
    %v56 = vld [vmem:[%s0 + $0x58] sm:$0xf]
    %v57 = vld [vmem:[%s0 + $0x5c] sm:$0xf]
    %v58 = vld [vmem:[%s1] sm:$0xff]
    %v59 = vld [vmem:[%s1 + $0x8] sm:$0xff]
    %v60 = vld [vmem:[%s1 + $0x10] sm:$0xff]
    %v61 = vld [vmem:[%s1 + $0x18] sm:$0xff]
    %v62 = vld [vmem:[%s1 + $0x20] sm:$0xff]
    %v63 = vld [vmem:[%s1 + $0x28] sm:$0xff]
    %v64 = vld [vmem:[%s1 + $0x30] sm:$0xff]
    %v65 = vld [vmem:[%s1 + $0x38] sm:$0xff]
    %v66 = vld [vmem:[%s1 + $0x40] sm:$0xff]
    %v67 = vld [vmem:[%s1 + $0x48] sm:$0xff]
    %v92 = vunpack.c.l.b16 %v34
    %v93 = vunpack.c.l.b16 %v35
    %v94 = vunpack.c.l.b16 %v36
    %v95 = vunpack.c.l.b16 %v37
    %v96 = vunpack.c.l.b16 %v38
    %v97 = vunpack.c.l.b16 %v39
    %v98 = vunpack.c.l.b16 %v40
    %v99 = vunpack.c.l.b16 %v41
    %v100 = vunpack.c.l.b16 %v42
    %v101 = vunpack.c.l.b16 %v43
    %v102 = vunpack.c.l.b16 %v44
    %v103 = vunpack.c.l.b16 %v45
    %v104 = vunpack.c.l.b16 %v46
    %v105 = vunpack.c.l.b16 %v47
    %v106 = vunpack.c.l.b16 %v48
    %v107 = vunpack.c.l.b16 %v49
    %v108 = vunpack.c.l.b16 %v50
    %v109 = vunpack.c.l.b16 %v51
    %v110 = vunpack.c.l.b16 %v52
    %v111 = vunpack.c.l.b16 %v53
    %v112 = vunpack.c.l.b16 %v54
    %v113 = vunpack.c.l.b16 %v55
    %v114 = vunpack.c.l.b16 %v56
    %v115 = vunpack.c.l.b16 %v57
    %v116 = vpack.c.b16 %v93, %v92
    %v117 = vpack.c.b16 %v95, %v94
    %v118 = vpack.c.b16 %v97, %v96
    %v119 = vpack.c.b16 %v99, %v98
    %v120 = vpack.c.b16 %v101, %v100
    %v121 = vpack.c.b16 %v103, %v102
    %v122 = vpack.c.b16 %v105, %v104
    %v123 = vpack.c.b16 %v107, %v106
    %v124 = vpack.c.b16 %v109, %v108
    %v125 = vpack.c.b16 %v111, %v110
    %v126 = vpack.c.b16 %v113, %v112
    %v127 = vpack.c.b16 %v115, %v114
    %v138 = vunpack.c.l.b16 %v58
    %v139 = vunpack.c.h.b16 %v58
    %v140 = vunpack.c.l.b16 %v59
    %v141 = vunpack.c.h.b16 %v59
    %v142 = vunpack.c.l.b16 %v60
    %v143 = vunpack.c.h.b16 %v60
    %v144 = vunpack.c.l.b16 %v61
    %v145 = vunpack.c.h.b16 %v61
    %v146 = vunpack.c.l.b16 %v62
    %v147 = vunpack.c.h.b16 %v62
    %v148 = vunpack.c.l.b16 %v63
    %v149 = vunpack.c.h.b16 %v63
    %v150 = vunpack.c.l.b16 %v64
    %v151 = vunpack.c.h.b16 %v64
    %v152 = vunpack.c.l.b16 %v65
    %v153 = vunpack.c.h.b16 %v65
    %v154 = vunpack.c.l.b16 %v66
    %v155 = vunpack.c.h.b16 %v66
    %v156 = vunpack.c.l.b16 %v67
    %v157 = vunpack.c.h.b16 %v67
    %v158 = vpack.c.b16 %v140, %v138
    %v159 = vpack.c.b16 %v141, %v139
    %v160 = vpack.c.b16 %v144, %v142
    %v161 = vpack.c.b16 %v145, %v143
    %v162 = vpack.c.b16 %v148, %v146
    %v163 = vpack.c.b16 %v149, %v147
    %v164 = vpack.c.b16 %v152, %v150
    %v165 = vpack.c.b16 %v153, %v151
    %v166 = vpack.c.b16 %v156, %v154
    %v167 = vpack.c.b16 %v157, %v155
    %vm178 = vcmask 654336
    %v180 = vsel %vm178, %v116, 0
    %v183 = vsel %vm178, %v117, 0
    %v186 = vsel %vm178, %v118, 0
    %v189 = vsel %vm178, %v119, 0
    %v192 = vsel %vm178, %v120, 0
    %v195 = vsel %vm178, %v121, 0
    %v198 = vsel %vm178, %v122, 0
    %v201 = vsel %vm178, %v123, 0
    %v204 = vsel %vm178, %v124, 0
    %v207 = vsel %vm178, %v125, 0
    %v210 = vsel %vm178, %v126, 0
    %v213 = vsel %vm178, %v127, 0
    %215 = vmatpush.bf16.msra.mxu0 0
    %216 = vmatpush.bf16.msra.mxu0 0
    %217 = vmatpush.bf16.msra.mxu0 0
    %218 = vmatpush.bf16.msra.mxu0 %v166
    %219 = vmatpush.bf16.msra.mxu0 %v164
    %220 = vmatpush.bf16.msra.mxu0 %v162
    %221 = vmatpush.bf16.msra.mxu0 %v160
    %222 = vmatpush.bf16.msra.mxu0 %v158
    %223 = vmatmul.bf16.gmra.mxu0 %v180
    %v224 = vpop.f32.mrf.mxu0
    %v225 = vadd.f32 0.0, %v224
    %v226 = vpop.f32.mrf.mxu0
    %v227 = vadd.f32 0.0, %v226
    %228 = vmatmul.bf16.gmra.mxu0 %v183
    %v229 = vpop.f32.mrf.mxu0
    %v230 = vadd.f32 0.0, %v229
    %v231 = vpop.f32.mrf.mxu0
    %v232 = vadd.f32 0.0, %v231
    %233 = vmatmul.bf16.gmra.mxu0 %v186
    %v234 = vpop.f32.mrf.mxu0
    %v235 = vadd.f32 0.0, %v234
    %v236 = vpop.f32.mrf.mxu0
    %v237 = vadd.f32 0.0, %v236
    %238 = vmatmul.bf16.gmra.mxu0 %v189
    %v239 = vpop.f32.mrf.mxu0
    %v240 = vadd.f32 0.0, %v239
    %v241 = vpop.f32.mrf.mxu0
    %v242 = vadd.f32 0.0, %v241
    %243 = vmatmul.bf16.gmra.mxu0 %v192
    %v244 = vpop.f32.mrf.mxu0
    %v245 = vadd.f32 0.0, %v244
    %v246 = vpop.f32.mrf.mxu0
    %v247 = vadd.f32 0.0, %v246
    %248 = vmatmul.bf16.gmra.mxu0 %v195
    %v249 = vpop.f32.mrf.mxu0
    %v250 = vadd.f32 0.0, %v249
    %v251 = vpop.f32.mrf.mxu0
    %v252 = vadd.f32 0.0, %v251
    %253 = vmatmul.bf16.gmra.mxu0 %v198
    %v254 = vpop.f32.mrf.mxu0
    %v255 = vadd.f32 0.0, %v254
    %v256 = vpop.f32.mrf.mxu0
    %v257 = vadd.f32 0.0, %v256
    %258 = vmatmul.bf16.gmra.mxu0 %v201
    %v259 = vpop.f32.mrf.mxu0
    %v260 = vadd.f32 0.0, %v259
    %v261 = vpop.f32.mrf.mxu0
    %v262 = vadd.f32 0.0, %v261
    %263 = vmatmul.bf16.gmra.mxu0 %v204
    %v264 = vpop.f32.mrf.mxu0
    %v265 = vadd.f32 0.0, %v264
    %v266 = vpop.f32.mrf.mxu0
    %v267 = vadd.f32 0.0, %v266
    %268 = vmatmul.bf16.gmra.mxu0 %v207
    %v269 = vpop.f32.mrf.mxu0
    %v270 = vadd.f32 0.0, %v269
    %v271 = vpop.f32.mrf.mxu0
    %v272 = vadd.f32 0.0, %v271
    %273 = vmatmul.bf16.gmra.mxu0 %v210
    %v274 = vpop.f32.mrf.mxu0
    %v275 = vadd.f32 0.0, %v274
    %v276 = vpop.f32.mrf.mxu0
    %v277 = vadd.f32 0.0, %v276
    %278 = vmatmul.bf16.gmra.mxu0 %v213
    %v279 = vpop.f32.mrf.mxu0
    %v280 = vadd.f32 0.0, %v279
    %v281 = vpop.f32.mrf.mxu0
    %v282 = vadd.f32 0.0, %v281
    %283 = vdwg.mxu0
    %284 = vmatpush.bf16.msra.mxu0 0
    %285 = vmatpush.bf16.msra.mxu0 0
    %286 = vmatpush.bf16.msra.mxu0 0
    %287 = vmatpush.bf16.msra.mxu0 %v167
    %288 = vmatpush.bf16.msra.mxu0 %v165
    %289 = vmatpush.bf16.msra.mxu0 %v163
    %290 = vmatpush.bf16.msra.mxu0 %v161
    %291 = vmatpush.bf16.msra.mxu0 %v159
    %292 = vmatmul.bf16.gmra.mxu0 %v180
    %v293 = vpop.f32.mrf.mxu0
    %v294 = vadd.f32 0.0, %v293
    %v295 = vpop.f32.mrf.mxu0
    %v296 = vadd.f32 0.0, %v295
    %297 = vmatmul.bf16.gmra.mxu0 %v183
    %v298 = vpop.f32.mrf.mxu0
    %v299 = vadd.f32 0.0, %v298
    %v300 = vpop.f32.mrf.mxu0
    %v301 = vadd.f32 0.0, %v300
    %302 = vmatmul.bf16.gmra.mxu0 %v186
    %v303 = vpop.f32.mrf.mxu0
    %v304 = vadd.f32 0.0, %v303
    %v305 = vpop.f32.mrf.mxu0
    %v306 = vadd.f32 0.0, %v305
    %307 = vmatmul.bf16.gmra.mxu0 %v189
    %v308 = vpop.f32.mrf.mxu0
    %v309 = vadd.f32 0.0, %v308
    %v310 = vpop.f32.mrf.mxu0
    %v311 = vadd.f32 0.0, %v310
    %312 = vmatmul.bf16.gmra.mxu0 %v192
    %v313 = vpop.f32.mrf.mxu0
    %v314 = vadd.f32 0.0, %v313
    %v315 = vpop.f32.mrf.mxu0
    %v316 = vadd.f32 0.0, %v315
    %317 = vmatmul.bf16.gmra.mxu0 %v195
    %v318 = vpop.f32.mrf.mxu0
    %v319 = vadd.f32 0.0, %v318
    %v320 = vpop.f32.mrf.mxu0
    %v321 = vadd.f32 0.0, %v320
    %322 = vmatmul.bf16.gmra.mxu0 %v198
    %v323 = vpop.f32.mrf.mxu0
    %v324 = vadd.f32 0.0, %v323
    %v325 = vpop.f32.mrf.mxu0
    %v326 = vadd.f32 0.0, %v325
    %327 = vmatmul.bf16.gmra.mxu0 %v201
    %v328 = vpop.f32.mrf.mxu0
    %v329 = vadd.f32 0.0, %v328
    %v330 = vpop.f32.mrf.mxu0
    %v331 = vadd.f32 0.0, %v330
    %332 = vmatmul.bf16.gmra.mxu0 %v204
    %v333 = vpop.f32.mrf.mxu0
    %v334 = vadd.f32 0.0, %v333
    %v335 = vpop.f32.mrf.mxu0
    %v336 = vadd.f32 0.0, %v335
    %337 = vmatmul.bf16.gmra.mxu0 %v207
    %v338 = vpop.f32.mrf.mxu0
    %v339 = vadd.f32 0.0, %v338
    %v340 = vpop.f32.mrf.mxu0
    %v341 = vadd.f32 0.0, %v340
    %342 = vmatmul.bf16.gmra.mxu0 %v210
    %v343 = vpop.f32.mrf.mxu0
    %v344 = vadd.f32 0.0, %v343
    %v345 = vpop.f32.mrf.mxu0
    %v346 = vadd.f32 0.0, %v345
    %347 = vmatmul.bf16.gmra.mxu0 %v213
    %v348 = vpop.f32.mrf.mxu0
    %v349 = vadd.f32 0.0, %v348
    %v350 = vpop.f32.mrf.mxu0
    %v351 = vadd.f32 0.0, %v350
    %352 = vdwg.mxu0
    %v353 = vmax.f32 %v225, %v294
    %v354 = vmax.f32 %v227, %v296
    %v355 = vmax.f32 %v230, %v299
    %v356 = vmax.f32 %v232, %v301
    %v357 = vmax.f32 %v235, %v304
    %v358 = vmax.f32 %v237, %v306
    %v359 = vmax.f32 %v240, %v309
    %v360 = vmax.f32 %v242, %v311
    %v361 = vmax.f32 %v245, %v314
    %v362 = vmax.f32 %v247, %v316
    %v363 = vmax.f32 %v250, %v319
    %v364 = vmax.f32 %v252, %v321
    %v365 = vmax.f32 %v255, %v324
    %v366 = vmax.f32 %v257, %v326
    %v367 = vmax.f32 %v260, %v329
    %v368 = vmax.f32 %v262, %v331
    %v369 = vmax.f32 %v265, %v334
    %v370 = vmax.f32 %v267, %v336
    %v371 = vmax.f32 %v270, %v339
    %v372 = vmax.f32 %v272, %v341
    %v373 = vmax.f32 %v275, %v344
    %v374 = vmax.f32 %v277, %v346
    %v375 = vmax.f32 %v280, %v349
    %v376 = vmax.f32 %v282, %v351
    %v377 = vmax.f32 %v353, %v365
    %v378 = vmax.f32 %v354, %v366
    %v379 = vmax.f32 %v355, %v367
    %v380 = vmax.f32 %v356, %v368
    %v381 = vmax.f32 %v357, %v369
    %v382 = vmax.f32 %v358, %v370
    %v383 = vmax.f32 %v359, %v371
    %v384 = vmax.f32 %v360, %v372
    %v385 = vmax.f32 %v361, %v373
    %v386 = vmax.f32 %v362, %v374
    %v387 = vmax.f32 %v363, %v375
    %v388 = vmax.f32 %v364, %v376
    %v389 = vld [vmem:[%s2] sm:$0x1]
    %v391 = vperm.slane %v389, 0
    %v393 = vadd.f32 %v377, %v391
    %v394 = vadd.f32 %v378, %v391
    %v395 = vadd.f32 %v379, %v391
    %v396 = vadd.f32 %v380, %v391
    %v397 = vadd.f32 %v381, %v391
    %v398 = vadd.f32 %v382, %v391
    %v399 = vadd.f32 %v383, %v391
    %v400 = vadd.f32 %v384, %v391
    %v401 = vadd.f32 %v385, %v391
    %v402 = vadd.f32 %v386, %v391
    %v403 = vadd.f32 %v387, %v391
    %v404 = vadd.f32 %v388, %v391
    %v405 = vmax.f32 %v393, 0.0
    %v406 = vmax.f32 %v394, 0.0
    %v407 = vmax.f32 %v395, 0.0
    %v408 = vmax.f32 %v396, 0.0
    %v409 = vmax.f32 %v397, 0.0
    %v410 = vmax.f32 %v398, 0.0
    %v411 = vmax.f32 %v399, 0.0
    %v412 = vmax.f32 %v400, 0.0
    %v413 = vmax.f32 %v401, 0.0
    %v414 = vmax.f32 %v402, 0.0
    %v415 = vmax.f32 %v403, 0.0
    %v416 = vmax.f32 %v404, 0.0
    %v417 = vpack.c.bf16 %v405, %v405
    %v418 = vpack.c.bf16 %v406, %v406
    %v419 = vpack.c.bf16 %v407, %v407
    %v420 = vpack.c.bf16 %v408, %v408
    %v421 = vpack.c.bf16 %v409, %v409
    %v422 = vpack.c.bf16 %v410, %v410
    %v423 = vpack.c.bf16 %v411, %v411
    %v424 = vpack.c.bf16 %v412, %v412
    %v425 = vpack.c.bf16 %v413, %v413
    %v426 = vpack.c.bf16 %v414, %v414
    %v427 = vpack.c.bf16 %v415, %v415
    %v428 = vpack.c.bf16 %v416, %v416
    %v429 = vld [vmem:[%s3] sm:$0xff]
    %v430 = vld [vmem:[%s3 + $0x8] sm:$0xff]
    %v431 = vld [vmem:[%s3 + $0x10] sm:$0xff]
    %v432 = vld [vmem:[%s3 + $0x18] sm:$0xff]
    %v433 = vld [vmem:[%s3 + $0x20] sm:$0xff]
    %v434 = vld [vmem:[%s3 + $0x28] sm:$0xff]
    %v435 = vld [vmem:[%s3 + $0x30] sm:$0xff]
    %v436 = vld [vmem:[%s3 + $0x38] sm:$0xff]
    %v437 = vld [vmem:[%s3 + $0x40] sm:$0xff]
    %v438 = vld [vmem:[%s3 + $0x48] sm:$0xff]
    %v439 = vld [vmem:[%s3 + $0x50] sm:$0xff]
    %v440 = vld [vmem:[%s3 + $0x58] sm:$0xff]
    %v441 = vld [vmem:[%s3 + $0x60] sm:$0xff]
    %v442 = vld [vmem:[%s3 + $0x68] sm:$0xff]
    %v443 = vld [vmem:[%s3 + $0x70] sm:$0xff]
    %v444 = vld [vmem:[%s3 + $0x78] sm:$0xff]
    %s445 = scalar_lea.vmem %s3, 128
    %v446 = vld [vmem:[%s445] sm:$0xff]
    %v447 = vld [vmem:[%s445 + $0x8] sm:$0xff]
    %v448 = vld [vmem:[%s445 + $0x10] sm:$0xff]
    %v449 = vld [vmem:[%s445 + $0x18] sm:$0xff]
    %v450 = vld [vmem:[%s445 + $0x20] sm:$0xff]
    %v451 = vld [vmem:[%s445 + $0x28] sm:$0xff]
    %v452 = vld [vmem:[%s445 + $0x30] sm:$0xff]
    %v453 = vld [vmem:[%s445 + $0x38] sm:$0xff]
    %v454 = vld [vmem:[%s445 + $0x40] sm:$0xff]
    %v455 = vld [vmem:[%s445 + $0x48] sm:$0xff]
    %v456 = vld [vmem:[%s445 + $0x50] sm:$0xff]
    %v457 = vld [vmem:[%s445 + $0x58] sm:$0xff]
    %v458 = vld [vmem:[%s445 + $0x60] sm:$0xff]
    %v459 = vld [vmem:[%s445 + $0x68] sm:$0xff]
    %v460 = vld [vmem:[%s445 + $0x70] sm:$0xff]
    %v461 = vld [vmem:[%s445 + $0x78] sm:$0xff]
    %v470 = vunpack.c.l.b16 %v418
    %v471 = vunpack.c.l.b16 %v419
    %v472 = vunpack.c.l.b16 %v420
    %v473 = vunpack.c.l.b16 %v421
    %v474 = vunpack.c.l.b16 %v422
    %v475 = vunpack.c.l.b16 %v423
    %v476 = vunpack.c.l.b16 %v424
    %v477 = vunpack.c.l.b16 %v425
    %v478 = vpack.c.b16 %v471, %v470
    %v479 = vpack.c.b16 %v473, %v472
    %v480 = vpack.c.b16 %v475, %v474
    %v481 = vpack.c.b16 %v477, %v476
    %v502 = vunpack.c.l.b16 %v446
    %v503 = vunpack.c.h.b16 %v446
    %v504 = vunpack.c.l.b16 %v447
    %v505 = vunpack.c.h.b16 %v447
    %v506 = vunpack.c.l.b16 %v448
    %v507 = vunpack.c.h.b16 %v448
    %v508 = vunpack.c.l.b16 %v449
    %v509 = vunpack.c.h.b16 %v449
    %v510 = vunpack.c.l.b16 %v450
    %v511 = vunpack.c.h.b16 %v450
    %v512 = vunpack.c.l.b16 %v451
    %v513 = vunpack.c.h.b16 %v451
    %v514 = vunpack.c.l.b16 %v452
    %v515 = vunpack.c.h.b16 %v452
    %v516 = vunpack.c.l.b16 %v453
    %v517 = vunpack.c.h.b16 %v453
    %v518 = vunpack.c.l.b16 %v454
    %v519 = vunpack.c.h.b16 %v454
    %v520 = vunpack.c.l.b16 %v455
    %v521 = vunpack.c.h.b16 %v455
    %v522 = vunpack.c.l.b16 %v456
    %v523 = vunpack.c.h.b16 %v456
    %v524 = vunpack.c.l.b16 %v457
    %v525 = vunpack.c.h.b16 %v457
    %v526 = vunpack.c.l.b16 %v458
    %v527 = vunpack.c.h.b16 %v458
    %v528 = vunpack.c.l.b16 %v459
    %v529 = vunpack.c.h.b16 %v459
    %v530 = vunpack.c.l.b16 %v460
    %v531 = vunpack.c.h.b16 %v460
    %v532 = vunpack.c.l.b16 %v461
    %v533 = vunpack.c.h.b16 %v461
    %v534 = vpack.c.b16 %v504, %v502
    %v535 = vpack.c.b16 %v505, %v503
    %v536 = vpack.c.b16 %v508, %v506
    %v537 = vpack.c.b16 %v509, %v507
    %v538 = vpack.c.b16 %v512, %v510
    %v539 = vpack.c.b16 %v513, %v511
    %v540 = vpack.c.b16 %v516, %v514
    %v541 = vpack.c.b16 %v517, %v515
    %v542 = vpack.c.b16 %v520, %v518
    %v543 = vpack.c.b16 %v521, %v519
    %v544 = vpack.c.b16 %v524, %v522
    %v545 = vpack.c.b16 %v525, %v523
    %v546 = vpack.c.b16 %v528, %v526
    %v547 = vpack.c.b16 %v529, %v527
    %v548 = vpack.c.b16 %v532, %v530
    %v549 = vpack.c.b16 %v533, %v531
    %566 = vmatpush.bf16.msra.mxu0 %v548
    %567 = vmatpush.bf16.msra.mxu0 %v546
    %568 = vmatpush.bf16.msra.mxu0 %v544
    %569 = vmatpush.bf16.msra.mxu0 %v542
    %570 = vmatpush.bf16.msra.mxu0 %v540
    %571 = vmatpush.bf16.msra.mxu0 %v538
    %572 = vmatpush.bf16.msra.mxu0 %v536
    %573 = vmatpush.bf16.msra.mxu0 %v534
    %574 = vmatmul.bf16.gmra.mxu0 %v478
    %v575 = vpop.f32.mrf.mxu0
    %v576 = vadd.f32 0.0, %v575
    %v577 = vpop.f32.mrf.mxu0
    %v578 = vadd.f32 0.0, %v577
    %579 = vmatmul.bf16.gmra.mxu0 %v479
    %v580 = vpop.f32.mrf.mxu0
    %v581 = vadd.f32 0.0, %v580
    %v582 = vpop.f32.mrf.mxu0
    %v583 = vadd.f32 0.0, %v582
    %584 = vmatmul.bf16.gmra.mxu0 %v480
    %v585 = vpop.f32.mrf.mxu0
    %v586 = vadd.f32 0.0, %v585
    %v587 = vpop.f32.mrf.mxu0
    %v588 = vadd.f32 0.0, %v587
    %589 = vmatmul.bf16.gmra.mxu0 %v481
    %v590 = vpop.f32.mrf.mxu0
    %v591 = vadd.f32 0.0, %v590
    %v592 = vpop.f32.mrf.mxu0
    %v593 = vadd.f32 0.0, %v592
    %594 = vdwg.mxu0
    %595 = vmatpush.bf16.msra.mxu0 %v549
    %596 = vmatpush.bf16.msra.mxu0 %v547
    %597 = vmatpush.bf16.msra.mxu0 %v545
    %598 = vmatpush.bf16.msra.mxu0 %v543
    %599 = vmatpush.bf16.msra.mxu0 %v541
    %600 = vmatpush.bf16.msra.mxu0 %v539
    %601 = vmatpush.bf16.msra.mxu0 %v537
    %602 = vmatpush.bf16.msra.mxu0 %v535
    %603 = vmatmul.bf16.gmra.mxu0 %v478
    %v604 = vpop.f32.mrf.mxu0
    %v605 = vadd.f32 0.0, %v604
    %v606 = vpop.f32.mrf.mxu0
    %v607 = vadd.f32 0.0, %v606
    %608 = vmatmul.bf16.gmra.mxu0 %v479
    %v609 = vpop.f32.mrf.mxu0
    %v610 = vadd.f32 0.0, %v609
    %v611 = vpop.f32.mrf.mxu0
    %v612 = vadd.f32 0.0, %v611
    %613 = vmatmul.bf16.gmra.mxu0 %v480
    %v614 = vpop.f32.mrf.mxu0
    %v615 = vadd.f32 0.0, %v614
    %v616 = vpop.f32.mrf.mxu0
    %v617 = vadd.f32 0.0, %v616
    %618 = vmatmul.bf16.gmra.mxu0 %v481
    %v619 = vpop.f32.mrf.mxu0
    %v620 = vadd.f32 0.0, %v619
    %v621 = vpop.f32.mrf.mxu0
    %v622 = vadd.f32 0.0, %v621
    %623 = vdwg.mxu0
    %v625 = vunpack.c.l.b16 %v417
    %v626 = vpack.c.b16 %v470, %v625
    %v627 = vpack.c.b16 %v472, %v471
    %v628 = vpack.c.b16 %v474, %v473
    %v629 = vpack.c.b16 %v476, %v475
    %v650 = vunpack.c.l.b16 %v429
    %v651 = vunpack.c.h.b16 %v429
    %v652 = vunpack.c.l.b16 %v430
    %v653 = vunpack.c.h.b16 %v430
    %v654 = vunpack.c.l.b16 %v431
    %v655 = vunpack.c.h.b16 %v431
    %v656 = vunpack.c.l.b16 %v432
    %v657 = vunpack.c.h.b16 %v432
    %v658 = vunpack.c.l.b16 %v433
    %v659 = vunpack.c.h.b16 %v433
    %v660 = vunpack.c.l.b16 %v434
    %v661 = vunpack.c.h.b16 %v434
    %v662 = vunpack.c.l.b16 %v435
    %v663 = vunpack.c.h.b16 %v435
    %v664 = vunpack.c.l.b16 %v436
    %v665 = vunpack.c.h.b16 %v436
    %v666 = vunpack.c.l.b16 %v437
    %v667 = vunpack.c.h.b16 %v437
    %v668 = vunpack.c.l.b16 %v438
    %v669 = vunpack.c.h.b16 %v438
    %v670 = vunpack.c.l.b16 %v439
    %v671 = vunpack.c.h.b16 %v439
    %v672 = vunpack.c.l.b16 %v440
    %v673 = vunpack.c.h.b16 %v440
    %v674 = vunpack.c.l.b16 %v441
    %v675 = vunpack.c.h.b16 %v441
    %v676 = vunpack.c.l.b16 %v442
    %v677 = vunpack.c.h.b16 %v442
    %v678 = vunpack.c.l.b16 %v443
    %v679 = vunpack.c.h.b16 %v443
    %v680 = vunpack.c.l.b16 %v444
    %v681 = vunpack.c.h.b16 %v444
    %v682 = vpack.c.b16 %v652, %v650
    %v683 = vpack.c.b16 %v653, %v651
    %v684 = vpack.c.b16 %v656, %v654
    %v685 = vpack.c.b16 %v657, %v655
    %v686 = vpack.c.b16 %v660, %v658
    %v687 = vpack.c.b16 %v661, %v659
    %v688 = vpack.c.b16 %v664, %v662
    %v689 = vpack.c.b16 %v665, %v663
    %v690 = vpack.c.b16 %v668, %v666
    %v691 = vpack.c.b16 %v669, %v667
    %v692 = vpack.c.b16 %v672, %v670
    %v693 = vpack.c.b16 %v673, %v671
    %v694 = vpack.c.b16 %v676, %v674
    %v695 = vpack.c.b16 %v677, %v675
    %v696 = vpack.c.b16 %v680, %v678
    %v697 = vpack.c.b16 %v681, %v679
    %714 = vmatpush.bf16.msra.mxu0 %v696
    %715 = vmatpush.bf16.msra.mxu0 %v694
    %716 = vmatpush.bf16.msra.mxu0 %v692
    %717 = vmatpush.bf16.msra.mxu0 %v690
    %718 = vmatpush.bf16.msra.mxu0 %v688
    %719 = vmatpush.bf16.msra.mxu0 %v686
    %720 = vmatpush.bf16.msra.mxu0 %v684
    %721 = vmatpush.bf16.msra.mxu0 %v682
    %722 = vmatmul.bf16.gmra.mxu0 %v626
    %v723 = vpop.f32.mrf.mxu0
    %v724 = vadd.f32 %v576, %v723
    %v725 = vpop.f32.mrf.mxu0
    %v726 = vadd.f32 %v578, %v725
    %727 = vmatmul.bf16.gmra.mxu0 %v627
    %v728 = vpop.f32.mrf.mxu0
    %v729 = vadd.f32 %v581, %v728
    %v730 = vpop.f32.mrf.mxu0
    %v731 = vadd.f32 %v583, %v730
    %732 = vmatmul.bf16.gmra.mxu0 %v628
    %v733 = vpop.f32.mrf.mxu0
    %v734 = vadd.f32 %v586, %v733
    %v735 = vpop.f32.mrf.mxu0
    %v736 = vadd.f32 %v588, %v735
    %737 = vmatmul.bf16.gmra.mxu0 %v629
    %v738 = vpop.f32.mrf.mxu0
    %v739 = vadd.f32 %v591, %v738
    %v740 = vpop.f32.mrf.mxu0
    %v741 = vadd.f32 %v593, %v740
    %742 = vdwg.mxu0
    %743 = vmatpush.bf16.msra.mxu0 %v697
    %744 = vmatpush.bf16.msra.mxu0 %v695
    %745 = vmatpush.bf16.msra.mxu0 %v693
    %746 = vmatpush.bf16.msra.mxu0 %v691
    %747 = vmatpush.bf16.msra.mxu0 %v689
    %748 = vmatpush.bf16.msra.mxu0 %v687
    %749 = vmatpush.bf16.msra.mxu0 %v685
    %750 = vmatpush.bf16.msra.mxu0 %v683
    %751 = vmatmul.bf16.gmra.mxu0 %v626
    %v752 = vpop.f32.mrf.mxu0
    %v753 = vadd.f32 %v605, %v752
    %v754 = vpop.f32.mrf.mxu0
    %v755 = vadd.f32 %v607, %v754
    %756 = vmatmul.bf16.gmra.mxu0 %v627
    %v757 = vpop.f32.mrf.mxu0
    %v758 = vadd.f32 %v610, %v757
    %v759 = vpop.f32.mrf.mxu0
    %v760 = vadd.f32 %v612, %v759
    %761 = vmatmul.bf16.gmra.mxu0 %v628
    %v762 = vpop.f32.mrf.mxu0
    %v763 = vadd.f32 %v615, %v762
    %v764 = vpop.f32.mrf.mxu0
    %v765 = vadd.f32 %v617, %v764
    %766 = vmatmul.bf16.gmra.mxu0 %v629
    %v767 = vpop.f32.mrf.mxu0
    %v768 = vadd.f32 %v620, %v767
    %v769 = vpop.f32.mrf.mxu0
    %v770 = vadd.f32 %v622, %v769
    %771 = vdwg.mxu0
    %s772 = scalar_lea.vmem %s3, 256
    %v773 = vld [vmem:[%s772] sm:$0xff]
    %v774 = vld [vmem:[%s772 + $0x8] sm:$0xff]
    %v775 = vld [vmem:[%s772 + $0x10] sm:$0xff]
    %v776 = vld [vmem:[%s772 + $0x18] sm:$0xff]
    %v777 = vld [vmem:[%s772 + $0x20] sm:$0xff]
    %v778 = vld [vmem:[%s772 + $0x28] sm:$0xff]
    %v779 = vld [vmem:[%s772 + $0x30] sm:$0xff]
    %v780 = vld [vmem:[%s772 + $0x38] sm:$0xff]
    %v781 = vld [vmem:[%s772 + $0x40] sm:$0xff]
    %v782 = vld [vmem:[%s772 + $0x48] sm:$0xff]
    %v783 = vld [vmem:[%s772 + $0x50] sm:$0xff]
    %v784 = vld [vmem:[%s772 + $0x58] sm:$0xff]
    %v785 = vld [vmem:[%s772 + $0x60] sm:$0xff]
    %v786 = vld [vmem:[%s772 + $0x68] sm:$0xff]
    %v787 = vld [vmem:[%s772 + $0x70] sm:$0xff]
    %v788 = vld [vmem:[%s772 + $0x78] sm:$0xff]
    %v790 = vunpack.c.l.b16 %v426
    %v791 = vpack.c.b16 %v790, %v477
    %v809 = vunpack.c.l.b16 %v773
    %v810 = vunpack.c.h.b16 %v773
    %v811 = vunpack.c.l.b16 %v774
    %v812 = vunpack.c.h.b16 %v774
    %v813 = vunpack.c.l.b16 %v775
    %v814 = vunpack.c.h.b16 %v775
    %v815 = vunpack.c.l.b16 %v776
    %v816 = vunpack.c.h.b16 %v776
    %v817 = vunpack.c.l.b16 %v777
    %v818 = vunpack.c.h.b16 %v777
    %v819 = vunpack.c.l.b16 %v778
    %v820 = vunpack.c.h.b16 %v778
    %v821 = vunpack.c.l.b16 %v779
    %v822 = vunpack.c.h.b16 %v779
    %v823 = vunpack.c.l.b16 %v780
    %v824 = vunpack.c.h.b16 %v780
    %v825 = vunpack.c.l.b16 %v781
    %v826 = vunpack.c.h.b16 %v781
    %v827 = vunpack.c.l.b16 %v782
    %v828 = vunpack.c.h.b16 %v782
    %v829 = vunpack.c.l.b16 %v783
    %v830 = vunpack.c.h.b16 %v783
    %v831 = vunpack.c.l.b16 %v784
    %v832 = vunpack.c.h.b16 %v784
    %v833 = vunpack.c.l.b16 %v785
    %v834 = vunpack.c.h.b16 %v785
    %v835 = vunpack.c.l.b16 %v786
    %v836 = vunpack.c.h.b16 %v786
    %v837 = vunpack.c.l.b16 %v787
    %v838 = vunpack.c.h.b16 %v787
    %v839 = vunpack.c.l.b16 %v788
    %v840 = vunpack.c.h.b16 %v788
    %v841 = vpack.c.b16 %v811, %v809
    %v842 = vpack.c.b16 %v812, %v810
    %v843 = vpack.c.b16 %v815, %v813
    %v844 = vpack.c.b16 %v816, %v814
    %v845 = vpack.c.b16 %v819, %v817
    %v846 = vpack.c.b16 %v820, %v818
    %v847 = vpack.c.b16 %v823, %v821
    %v848 = vpack.c.b16 %v824, %v822
    %v849 = vpack.c.b16 %v827, %v825
    %v850 = vpack.c.b16 %v828, %v826
    %v851 = vpack.c.b16 %v831, %v829
    %v852 = vpack.c.b16 %v832, %v830
    %v853 = vpack.c.b16 %v835, %v833
    %v854 = vpack.c.b16 %v836, %v834
    %v855 = vpack.c.b16 %v839, %v837
    %v856 = vpack.c.b16 %v840, %v838
    %873 = vmatpush.bf16.msra.mxu0 %v855
    %874 = vmatpush.bf16.msra.mxu0 %v853
    %875 = vmatpush.bf16.msra.mxu0 %v851
    %876 = vmatpush.bf16.msra.mxu0 %v849
    %877 = vmatpush.bf16.msra.mxu0 %v847
    %878 = vmatpush.bf16.msra.mxu0 %v845
    %879 = vmatpush.bf16.msra.mxu0 %v843
    %880 = vmatpush.bf16.msra.mxu0 %v841
    %881 = vmatmul.bf16.gmra.mxu0 %v627
    %v882 = vpop.f32.mrf.mxu0
    %v883 = vadd.f32 0.0, %v882
    %v884 = vpop.f32.mrf.mxu0
    %v885 = vadd.f32 0.0, %v884
    %886 = vmatmul.bf16.gmra.mxu0 %v628
    %v887 = vpop.f32.mrf.mxu0
    %v888 = vadd.f32 0.0, %v887
    %v889 = vpop.f32.mrf.mxu0
    %v890 = vadd.f32 0.0, %v889
    %891 = vmatmul.bf16.gmra.mxu0 %v629
    %v892 = vpop.f32.mrf.mxu0
    %v893 = vadd.f32 0.0, %v892
    %v894 = vpop.f32.mrf.mxu0
    %v895 = vadd.f32 0.0, %v894
    %896 = vmatmul.bf16.gmra.mxu0 %v791
    %v897 = vpop.f32.mrf.mxu0
    %v898 = vadd.f32 0.0, %v897
    %v899 = vpop.f32.mrf.mxu0
    %v900 = vadd.f32 0.0, %v899
    %901 = vdwg.mxu0
    %902 = vmatpush.bf16.msra.mxu0 %v856
    %903 = vmatpush.bf16.msra.mxu0 %v854
    %904 = vmatpush.bf16.msra.mxu0 %v852
    %905 = vmatpush.bf16.msra.mxu0 %v850
    %906 = vmatpush.bf16.msra.mxu0 %v848
    %907 = vmatpush.bf16.msra.mxu0 %v846
    %908 = vmatpush.bf16.msra.mxu0 %v844
    %909 = vmatpush.bf16.msra.mxu0 %v842
    %910 = vmatmul.bf16.gmra.mxu0 %v627
    %v911 = vpop.f32.mrf.mxu0
    %v912 = vadd.f32 0.0, %v911
    %v913 = vpop.f32.mrf.mxu0
    %v914 = vadd.f32 0.0, %v913
    %915 = vmatmul.bf16.gmra.mxu0 %v628
    %v916 = vpop.f32.mrf.mxu0
    %v917 = vadd.f32 0.0, %v916
    %v918 = vpop.f32.mrf.mxu0
    %v919 = vadd.f32 0.0, %v918
    %920 = vmatmul.bf16.gmra.mxu0 %v629
    %v921 = vpop.f32.mrf.mxu0
    %v922 = vadd.f32 0.0, %v921
    %v923 = vpop.f32.mrf.mxu0
    %v924 = vadd.f32 0.0, %v923
    %925 = vmatmul.bf16.gmra.mxu0 %v791
    %v926 = vpop.f32.mrf.mxu0
    %v927 = vadd.f32 0.0, %v926
    %v928 = vpop.f32.mrf.mxu0
    %v929 = vadd.f32 0.0, %v928
    %930 = vdwg.mxu0
    %v931 = vadd.f32 %v724, %v883
    %v932 = vadd.f32 %v753, %v912
    %v933 = vadd.f32 %v726, %v885
    %v934 = vadd.f32 %v755, %v914
    %v935 = vadd.f32 %v729, %v888
    %v936 = vadd.f32 %v758, %v917
    %v937 = vadd.f32 %v731, %v890
    %v938 = vadd.f32 %v760, %v919
    %v939 = vadd.f32 %v734, %v893
    %v940 = vadd.f32 %v763, %v922
    %v941 = vadd.f32 %v736, %v895
    %v942 = vadd.f32 %v765, %v924
    %v943 = vadd.f32 %v739, %v898
    %v944 = vadd.f32 %v768, %v927
    %v945 = vadd.f32 %v741, %v900
    %v946 = vadd.f32 %v770, %v929
    %s947 = scalar_lea.vmem %s3, 384
    %v948 = vld [vmem:[%s947] sm:$0xff]
    %v949 = vld [vmem:[%s947 + $0x8] sm:$0xff]
    %v950 = vld [vmem:[%s947 + $0x10] sm:$0xff]
    %v951 = vld [vmem:[%s947 + $0x18] sm:$0xff]
    %v952 = vld [vmem:[%s947 + $0x20] sm:$0xff]
    %v953 = vld [vmem:[%s947 + $0x28] sm:$0xff]
    %v954 = vld [vmem:[%s947 + $0x30] sm:$0xff]
    %v955 = vld [vmem:[%s947 + $0x38] sm:$0xff]
    %v956 = vld [vmem:[%s947 + $0x40] sm:$0xff]
    %v957 = vld [vmem:[%s947 + $0x48] sm:$0xff]
    %v958 = vld [vmem:[%s947 + $0x50] sm:$0xff]
    %v959 = vld [vmem:[%s947 + $0x58] sm:$0xff]
    %v960 = vld [vmem:[%s947 + $0x60] sm:$0xff]
    %v961 = vld [vmem:[%s947 + $0x68] sm:$0xff]
    %v962 = vld [vmem:[%s947 + $0x70] sm:$0xff]
    %v963 = vld [vmem:[%s947 + $0x78] sm:$0xff]
    %v965 = vunpack.c.l.b16 %v427
    %v966 = vpack.c.b16 %v965, %v790
    %v984 = vunpack.c.l.b16 %v948
    %v985 = vunpack.c.h.b16 %v948
    %v986 = vunpack.c.l.b16 %v949
    %v987 = vunpack.c.h.b16 %v949
    %v988 = vunpack.c.l.b16 %v950
    %v989 = vunpack.c.h.b16 %v950
    %v990 = vunpack.c.l.b16 %v951
    %v991 = vunpack.c.h.b16 %v951
    %v992 = vunpack.c.l.b16 %v952
    %v993 = vunpack.c.h.b16 %v952
    %v994 = vunpack.c.l.b16 %v953
    %v995 = vunpack.c.h.b16 %v953
    %v996 = vunpack.c.l.b16 %v954
    %v997 = vunpack.c.h.b16 %v954
    %v998 = vunpack.c.l.b16 %v955
    %v999 = vunpack.c.h.b16 %v955
    %v1000 = vunpack.c.l.b16 %v956
    %v1001 = vunpack.c.h.b16 %v956
    %v1002 = vunpack.c.l.b16 %v957
    %v1003 = vunpack.c.h.b16 %v957
    %v1004 = vunpack.c.l.b16 %v958
    %v1005 = vunpack.c.h.b16 %v958
    %v1006 = vunpack.c.l.b16 %v959
    %v1007 = vunpack.c.h.b16 %v959
    %v1008 = vunpack.c.l.b16 %v960
    %v1009 = vunpack.c.h.b16 %v960
    %v1010 = vunpack.c.l.b16 %v961
    %v1011 = vunpack.c.h.b16 %v961
    %v1012 = vunpack.c.l.b16 %v962
    %v1013 = vunpack.c.h.b16 %v962
    %v1014 = vunpack.c.l.b16 %v963
    %v1015 = vunpack.c.h.b16 %v963
    %v1016 = vpack.c.b16 %v986, %v984
    %v1017 = vpack.c.b16 %v987, %v985
    %v1018 = vpack.c.b16 %v990, %v988
    %v1019 = vpack.c.b16 %v991, %v989
    %v1020 = vpack.c.b16 %v994, %v992
    %v1021 = vpack.c.b16 %v995, %v993
    %v1022 = vpack.c.b16 %v998, %v996
    %v1023 = vpack.c.b16 %v999, %v997
    %v1024 = vpack.c.b16 %v1002, %v1000
    %v1025 = vpack.c.b16 %v1003, %v1001
    %v1026 = vpack.c.b16 %v1006, %v1004
    %v1027 = vpack.c.b16 %v1007, %v1005
    %v1028 = vpack.c.b16 %v1010, %v1008
    %v1029 = vpack.c.b16 %v1011, %v1009
    %v1030 = vpack.c.b16 %v1014, %v1012
    %v1031 = vpack.c.b16 %v1015, %v1013
    %1048 = vmatpush.bf16.msra.mxu0 %v1030
    %1049 = vmatpush.bf16.msra.mxu0 %v1028
    %1050 = vmatpush.bf16.msra.mxu0 %v1026
    %1051 = vmatpush.bf16.msra.mxu0 %v1024
    %1052 = vmatpush.bf16.msra.mxu0 %v1022
    %1053 = vmatpush.bf16.msra.mxu0 %v1020
    %1054 = vmatpush.bf16.msra.mxu0 %v1018
    %1055 = vmatpush.bf16.msra.mxu0 %v1016
    %1056 = vmatmul.bf16.gmra.mxu0 %v479
    %v1057 = vpop.f32.mrf.mxu0
    %v1058 = vadd.f32 0.0, %v1057
    %v1059 = vpop.f32.mrf.mxu0
    %v1060 = vadd.f32 0.0, %v1059
    %1061 = vmatmul.bf16.gmra.mxu0 %v480
    %v1062 = vpop.f32.mrf.mxu0
    %v1063 = vadd.f32 0.0, %v1062
    %v1064 = vpop.f32.mrf.mxu0
    %v1065 = vadd.f32 0.0, %v1064
    %1066 = vmatmul.bf16.gmra.mxu0 %v481
    %v1067 = vpop.f32.mrf.mxu0
    %v1068 = vadd.f32 0.0, %v1067
    %v1069 = vpop.f32.mrf.mxu0
    %v1070 = vadd.f32 0.0, %v1069
    %1071 = vmatmul.bf16.gmra.mxu0 %v966
    %v1072 = vpop.f32.mrf.mxu0
    %v1073 = vadd.f32 0.0, %v1072
    %v1074 = vpop.f32.mrf.mxu0
    %v1075 = vadd.f32 0.0, %v1074
    %1076 = vdwg.mxu0
    %1077 = vmatpush.bf16.msra.mxu0 %v1031
    %1078 = vmatpush.bf16.msra.mxu0 %v1029
    %1079 = vmatpush.bf16.msra.mxu0 %v1027
    %1080 = vmatpush.bf16.msra.mxu0 %v1025
    %1081 = vmatpush.bf16.msra.mxu0 %v1023
    %1082 = vmatpush.bf16.msra.mxu0 %v1021
    %1083 = vmatpush.bf16.msra.mxu0 %v1019
    %1084 = vmatpush.bf16.msra.mxu0 %v1017
    %1085 = vmatmul.bf16.gmra.mxu0 %v479
    %v1086 = vpop.f32.mrf.mxu0
    %v1087 = vadd.f32 0.0, %v1086
    %v1088 = vpop.f32.mrf.mxu0
    %v1089 = vadd.f32 0.0, %v1088
    %1090 = vmatmul.bf16.gmra.mxu0 %v480
    %v1091 = vpop.f32.mrf.mxu0
    %v1092 = vadd.f32 0.0, %v1091
    %v1093 = vpop.f32.mrf.mxu0
    %v1094 = vadd.f32 0.0, %v1093
    %1095 = vmatmul.bf16.gmra.mxu0 %v481
    %v1096 = vpop.f32.mrf.mxu0
    %v1097 = vadd.f32 0.0, %v1096
    %v1098 = vpop.f32.mrf.mxu0
    %v1099 = vadd.f32 0.0, %v1098
    %1100 = vmatmul.bf16.gmra.mxu0 %v966
    %v1101 = vpop.f32.mrf.mxu0
    %v1102 = vadd.f32 0.0, %v1101
    %v1103 = vpop.f32.mrf.mxu0
    %v1104 = vadd.f32 0.0, %v1103
    %1105 = vdwg.mxu0
    %v1106 = vadd.f32 %v931, %v1058
    %v1107 = vadd.f32 %v932, %v1087
    %v1108 = vadd.f32 %v933, %v1060
    %v1109 = vadd.f32 %v934, %v1089
    %v1110 = vadd.f32 %v935, %v1063
    %v1111 = vadd.f32 %v936, %v1092
    %v1112 = vadd.f32 %v937, %v1065
    %v1113 = vadd.f32 %v938, %v1094
    %v1114 = vadd.f32 %v939, %v1068
    %v1115 = vadd.f32 %v940, %v1097
    %v1116 = vadd.f32 %v941, %v1070
    %v1117 = vadd.f32 %v942, %v1099
    %v1118 = vadd.f32 %v943, %v1073
    %v1119 = vadd.f32 %v944, %v1102
    %v1120 = vadd.f32 %v945, %v1075
    %v1121 = vadd.f32 %v946, %v1104
    %s1122 = scalar_lea.vmem %s3, 512
    %v1123 = vld [vmem:[%s1122] sm:$0xff]
    %v1124 = vld [vmem:[%s1122 + $0x8] sm:$0xff]
    %v1125 = vld [vmem:[%s1122 + $0x10] sm:$0xff]
    %v1126 = vld [vmem:[%s1122 + $0x18] sm:$0xff]
    %v1127 = vld [vmem:[%s1122 + $0x20] sm:$0xff]
    %v1128 = vld [vmem:[%s1122 + $0x28] sm:$0xff]
    %v1129 = vld [vmem:[%s1122 + $0x30] sm:$0xff]
    %v1130 = vld [vmem:[%s1122 + $0x38] sm:$0xff]
    %v1131 = vld [vmem:[%s1122 + $0x40] sm:$0xff]
    %v1132 = vld [vmem:[%s1122 + $0x48] sm:$0xff]
    %v1133 = vld [vmem:[%s1122 + $0x50] sm:$0xff]
    %v1134 = vld [vmem:[%s1122 + $0x58] sm:$0xff]
    %v1135 = vld [vmem:[%s1122 + $0x60] sm:$0xff]
    %v1136 = vld [vmem:[%s1122 + $0x68] sm:$0xff]
    %v1137 = vld [vmem:[%s1122 + $0x70] sm:$0xff]
    %v1138 = vld [vmem:[%s1122 + $0x78] sm:$0xff]
    %v1140 = vunpack.c.l.b16 %v428
    %v1141 = vpack.c.b16 %v1140, %v965
    %v1159 = vunpack.c.l.b16 %v1123
    %v1160 = vunpack.c.h.b16 %v1123
    %v1161 = vunpack.c.l.b16 %v1124
    %v1162 = vunpack.c.h.b16 %v1124
    %v1163 = vunpack.c.l.b16 %v1125
    %v1164 = vunpack.c.h.b16 %v1125
    %v1165 = vunpack.c.l.b16 %v1126
    %v1166 = vunpack.c.h.b16 %v1126
    %v1167 = vunpack.c.l.b16 %v1127
    %v1168 = vunpack.c.h.b16 %v1127
    %v1169 = vunpack.c.l.b16 %v1128
    %v1170 = vunpack.c.h.b16 %v1128
    %v1171 = vunpack.c.l.b16 %v1129
    %v1172 = vunpack.c.h.b16 %v1129
    %v1173 = vunpack.c.l.b16 %v1130
    %v1174 = vunpack.c.h.b16 %v1130
    %v1175 = vunpack.c.l.b16 %v1131
    %v1176 = vunpack.c.h.b16 %v1131
    %v1177 = vunpack.c.l.b16 %v1132
    %v1178 = vunpack.c.h.b16 %v1132
    %v1179 = vunpack.c.l.b16 %v1133
    %v1180 = vunpack.c.h.b16 %v1133
    %v1181 = vunpack.c.l.b16 %v1134
    %v1182 = vunpack.c.h.b16 %v1134
    %v1183 = vunpack.c.l.b16 %v1135
    %v1184 = vunpack.c.h.b16 %v1135
    %v1185 = vunpack.c.l.b16 %v1136
    %v1186 = vunpack.c.h.b16 %v1136
    %v1187 = vunpack.c.l.b16 %v1137
    %v1188 = vunpack.c.h.b16 %v1137
    %v1189 = vunpack.c.l.b16 %v1138
    %v1190 = vunpack.c.h.b16 %v1138
    %v1191 = vpack.c.b16 %v1161, %v1159
    %v1192 = vpack.c.b16 %v1162, %v1160
    %v1193 = vpack.c.b16 %v1165, %v1163
    %v1194 = vpack.c.b16 %v1166, %v1164
    %v1195 = vpack.c.b16 %v1169, %v1167
    %v1196 = vpack.c.b16 %v1170, %v1168
    %v1197 = vpack.c.b16 %v1173, %v1171
    %v1198 = vpack.c.b16 %v1174, %v1172
    %v1199 = vpack.c.b16 %v1177, %v1175
    %v1200 = vpack.c.b16 %v1178, %v1176
    %v1201 = vpack.c.b16 %v1181, %v1179
    %v1202 = vpack.c.b16 %v1182, %v1180
    %v1203 = vpack.c.b16 %v1185, %v1183
    %v1204 = vpack.c.b16 %v1186, %v1184
    %v1205 = vpack.c.b16 %v1189, %v1187
    %v1206 = vpack.c.b16 %v1190, %v1188
    %1223 = vmatpush.bf16.msra.mxu0 %v1205
    %1224 = vmatpush.bf16.msra.mxu0 %v1203
    %1225 = vmatpush.bf16.msra.mxu0 %v1201
    %1226 = vmatpush.bf16.msra.mxu0 %v1199
    %1227 = vmatpush.bf16.msra.mxu0 %v1197
    %1228 = vmatpush.bf16.msra.mxu0 %v1195
    %1229 = vmatpush.bf16.msra.mxu0 %v1193
    %1230 = vmatpush.bf16.msra.mxu0 %v1191
    %1231 = vmatmul.bf16.gmra.mxu0 %v628
    %v1232 = vpop.f32.mrf.mxu0
    %v1233 = vadd.f32 0.0, %v1232
    %v1234 = vpop.f32.mrf.mxu0
    %v1235 = vadd.f32 0.0, %v1234
    %1236 = vmatmul.bf16.gmra.mxu0 %v629
    %v1237 = vpop.f32.mrf.mxu0
    %v1238 = vadd.f32 0.0, %v1237
    %v1239 = vpop.f32.mrf.mxu0
    %v1240 = vadd.f32 0.0, %v1239
    %1241 = vmatmul.bf16.gmra.mxu0 %v791
    %v1242 = vpop.f32.mrf.mxu0
    %v1243 = vadd.f32 0.0, %v1242
    %v1244 = vpop.f32.mrf.mxu0
    %v1245 = vadd.f32 0.0, %v1244
    %1246 = vmatmul.bf16.gmra.mxu0 %v1141
    %v1247 = vpop.f32.mrf.mxu0
    %v1248 = vadd.f32 0.0, %v1247
    %v1249 = vpop.f32.mrf.mxu0
    %v1250 = vadd.f32 0.0, %v1249
    %1251 = vdwg.mxu0
    %1252 = vmatpush.bf16.msra.mxu0 %v1206
    %1253 = vmatpush.bf16.msra.mxu0 %v1204
    %1254 = vmatpush.bf16.msra.mxu0 %v1202
    %1255 = vmatpush.bf16.msra.mxu0 %v1200
    %1256 = vmatpush.bf16.msra.mxu0 %v1198
    %1257 = vmatpush.bf16.msra.mxu0 %v1196
    %1258 = vmatpush.bf16.msra.mxu0 %v1194
    %1259 = vmatpush.bf16.msra.mxu0 %v1192
    %1260 = vmatmul.bf16.gmra.mxu0 %v628
    %v1261 = vpop.f32.mrf.mxu0
    %v1262 = vadd.f32 0.0, %v1261
    %v1263 = vpop.f32.mrf.mxu0
    %v1264 = vadd.f32 0.0, %v1263
    %1265 = vmatmul.bf16.gmra.mxu0 %v629
    %v1266 = vpop.f32.mrf.mxu0
    %v1267 = vadd.f32 0.0, %v1266
    %v1268 = vpop.f32.mrf.mxu0
    %v1269 = vadd.f32 0.0, %v1268
    %1270 = vmatmul.bf16.gmra.mxu0 %v791
    %v1271 = vpop.f32.mrf.mxu0
    %v1272 = vadd.f32 0.0, %v1271
    %v1273 = vpop.f32.mrf.mxu0
    %v1274 = vadd.f32 0.0, %v1273
    %1275 = vmatmul.bf16.gmra.mxu0 %v1141
    %v1276 = vpop.f32.mrf.mxu0
    %v1277 = vadd.f32 0.0, %v1276
    %v1278 = vpop.f32.mrf.mxu0
    %v1279 = vadd.f32 0.0, %v1278
    %1280 = vdwg.mxu0
    %v1281 = vadd.f32 %v1106, %v1233
    %v1282 = vadd.f32 %v1107, %v1262
    %v1283 = vadd.f32 %v1108, %v1235
    %v1284 = vadd.f32 %v1109, %v1264
    %v1285 = vadd.f32 %v1110, %v1238
    %v1286 = vadd.f32 %v1111, %v1267
    %v1287 = vadd.f32 %v1112, %v1240
    %v1288 = vadd.f32 %v1113, %v1269
    %v1289 = vadd.f32 %v1114, %v1243
    %v1290 = vadd.f32 %v1115, %v1272
    %v1291 = vadd.f32 %v1116, %v1245
    %v1292 = vadd.f32 %v1117, %v1274
    %v1293 = vadd.f32 %v1118, %v1248
    %v1294 = vadd.f32 %v1119, %v1277
    %v1295 = vadd.f32 %v1120, %v1250
    %v1296 = vadd.f32 %v1121, %v1279
    %v1297 = vmax.f32 %v1281, %v1282
    %v1298 = vmax.f32 %v1283, %v1284
    %v1299 = vmax.f32 %v1285, %v1286
    %v1300 = vmax.f32 %v1287, %v1288
    %v1301 = vmax.f32 %v1289, %v1290
    %v1302 = vmax.f32 %v1291, %v1292
    %v1303 = vmax.f32 %v1293, %v1294
    %v1304 = vmax.f32 %v1295, %v1296
    %v1305 = vld [vmem:[%s4] sm:$0x1]
    %v1307 = vperm.slane %v1305, 0
    %v1309 = vadd.f32 %v1297, %v1307
    %v1310 = vadd.f32 %v1298, %v1307
    %v1311 = vadd.f32 %v1299, %v1307
    %v1312 = vadd.f32 %v1300, %v1307
    %v1313 = vadd.f32 %v1301, %v1307
    %v1314 = vadd.f32 %v1302, %v1307
    %v1315 = vadd.f32 %v1303, %v1307
    %v1316 = vadd.f32 %v1304, %v1307
    %v1317 = vmax.f32 %v1309, %v1310
    %v1318 = vmax.f32 %v1317, 0.0
    %vm1319 = vcmask 517120
    %1320 = vst.msk [vmem:[#allocation2] sm:$0x3] %vm1319, %v1318
    %1322 = vst.sshfl [vmem:[#allocation1] sm:$0xff pattern:$0x73625140] %v1318
    %s1323 = scalar_lea.vmem [#allocation1], 1
    %v1324 = vld [vmem:[%s1323] ss:$4 sm:$0xff]
    %1325 = vrot.lane.b32.xlu0 %v1324, 64
    %v1326 = vpop.permute.xlu0 %1325
    %vm1328 = vcmask 1041920
    %1329 = vst.msk [vmem:[#allocation2] sm:$0x3] %vm1328, %v1326
    %1330 = vst.sshfl [vmem:[#allocation1] sm:$0xff pattern:$0x73625140] %v1318
    %s1331 = scalar_lea.vmem [#allocation1], 2
    %v1332 = vld [vmem:[%s1331] ss:$4 sm:$0xff]
    %1334 = vst.msk [vmem:[#allocation2 + $0x2] sm:$0x3] %vm1319, %v1332
    %1335 = vst.sshfl [vmem:[#allocation1] sm:$0xff pattern:$0x73625140] %v1318
    %s1336 = scalar_lea.vmem [#allocation1], 3
    %v1337 = vld [vmem:[%s1336] ss:$4 sm:$0xff]
    %1338 = vrot.lane.b32.xlu0 %v1337, 64
    %v1339 = vpop.permute.xlu0 %1338
    %1341 = vst.msk [vmem:[#allocation2 + $0x2] sm:$0x3] %vm1328, %v1339
    %v1342 = vmax.f32 %v1311, %v1312
    %v1343 = vmax.f32 %v1342, 0.0
    %1344 = vst.msk [vmem:[#allocation2 + $0x4] sm:$0x3] %vm1319, %v1343
    %1346 = vst.sshfl [vmem:[#allocation1] sm:$0xff pattern:$0x73625140] %v1343
    %s1347 = scalar_lea.vmem [#allocation1], 1
    %v1348 = vld [vmem:[%s1347] ss:$4 sm:$0xff]
    %1349 = vrot.lane.b32.xlu0 %v1348, 64
    %v1350 = vpop.permute.xlu0 %1349
    %1352 = vst.msk [vmem:[#allocation2 + $0x4] sm:$0x3] %vm1328, %v1350
    %1353 = vst.sshfl [vmem:[#allocation1] sm:$0xff pattern:$0x73625140] %v1343
    %s1354 = scalar_lea.vmem [#allocation1], 2
    %v1355 = vld [vmem:[%s1354] ss:$4 sm:$0xff]
    %1357 = vst.msk [vmem:[#allocation2 + $0x6] sm:$0x3] %vm1319, %v1355
    %1358 = vst.sshfl [vmem:[#allocation1] sm:$0xff pattern:$0x73625140] %v1343
    %s1359 = scalar_lea.vmem [#allocation1], 3
    %v1360 = vld [vmem:[%s1359] ss:$4 sm:$0xff]
    %1361 = vrot.lane.b32.xlu0 %v1360, 64
    %v1362 = vpop.permute.xlu0 %1361
    %1364 = vst.msk [vmem:[#allocation2 + $0x6] sm:$0x3] %vm1328, %v1362
    %v1365 = vmax.f32 %v1313, %v1314
    %v1366 = vmax.f32 %v1365, 0.0
    %1367 = vst.msk [vmem:[#allocation2 + $0x8] sm:$0x3] %vm1319, %v1366
    %1369 = vst.sshfl [vmem:[#allocation1] sm:$0xff pattern:$0x73625140] %v1366
    %s1370 = scalar_lea.vmem [#allocation1], 1
    %v1371 = vld [vmem:[%s1370] ss:$4 sm:$0xff]
    %1372 = vrot.lane.b32.xlu0 %v1371, 64
    %v1373 = vpop.permute.xlu0 %1372
    %1375 = vst.msk [vmem:[#allocation2 + $0x8] sm:$0x3] %vm1328, %v1373
    %1376 = vst.sshfl [vmem:[#allocation1] sm:$0xff pattern:$0x73625140] %v1366
    %s1377 = scalar_lea.vmem [#allocation1], 2
    %v1378 = vld [vmem:[%s1377] ss:$4 sm:$0xff]
    %1380 = vst.msk [vmem:[#allocation2 + $0xa] sm:$0x3] %vm1319, %v1378
    %1381 = vst.sshfl [vmem:[#allocation1] sm:$0xff pattern:$0x73625140] %v1366
    %s1382 = scalar_lea.vmem [#allocation1], 3
    %v1383 = vld [vmem:[%s1382] ss:$4 sm:$0xff]
    %1384 = vrot.lane.b32.xlu0 %v1383, 64
    %v1385 = vpop.permute.xlu0 %1384
    %1387 = vst.msk [vmem:[#allocation2 + $0xa] sm:$0x3] %vm1328, %v1385
    %v1388 = vmax.f32 %v1315, %v1316
    %v1389 = vmax.f32 %v1388, 0.0
    %1390 = vst.msk [vmem:[#allocation2 + $0xc] sm:$0x3] %vm1319, %v1389
    %1392 = vst.sshfl [vmem:[#allocation1] sm:$0xff pattern:$0x73625140] %v1389
    %s1393 = scalar_lea.vmem [#allocation1], 1
    %v1394 = vld [vmem:[%s1393] ss:$4 sm:$0xff]
    %1395 = vrot.lane.b32.xlu0 %v1394, 64
    %v1396 = vpop.permute.xlu0 %1395
    %1398 = vst.msk [vmem:[#allocation2 + $0xc] sm:$0x3] %vm1328, %v1396
    %1399 = vst.sshfl [vmem:[#allocation1] sm:$0xff pattern:$0x73625140] %v1389
    %s1400 = scalar_lea.vmem [#allocation1], 2
    %v1401 = vld [vmem:[%s1400] ss:$4 sm:$0xff]
    %1403 = vst.msk [vmem:[#allocation2 + $0xe] sm:$0x3] %vm1319, %v1401
    %1404 = vst.sshfl [vmem:[#allocation1] sm:$0xff pattern:$0x73625140] %v1389
    %s1405 = scalar_lea.vmem [#allocation1], 3
    %v1406 = vld [vmem:[%s1405] ss:$4 sm:$0xff]
    %1407 = vrot.lane.b32.xlu0 %v1406, 64
    %v1408 = vpop.permute.xlu0 %1407
    %1410 = vst.msk [vmem:[#allocation2 + $0xe] sm:$0x3] %vm1328, %v1408
    %v1411 = vld [vmem:[#allocation2] sm:$0xff]
    %v1412 = vld [vmem:[#allocation2 + $0x8] sm:$0xff]
    %1415 = vst [vmem:[#allocation1] ss:$4 sm:$0xff] %v1411
    %s1416 = scalar_lea.vmem [#allocation1], 32
    %1417 = vst [vmem:[%s1416] ss:$4 sm:$0xff] %v1412
    %v1418 = vld.sshfl [vmem:[#allocation1] sm:$0xff pattern:$0x73625140]
    %v1419 = vld.sshfl [vmem:[#allocation1 + $0x8] sm:$0xff pattern:$0x73625140]
    %v1420 = vld.sshfl [vmem:[#allocation1 + $0x10] sm:$0xff pattern:$0x73625140]
    %v1421 = vld.sshfl [vmem:[#allocation1 + $0x18] sm:$0xff pattern:$0x73625140]
    %v1422 = vld.sshfl [vmem:[#allocation1 + $0x20] sm:$0xff pattern:$0x73625140]
    %v1423 = vld.sshfl [vmem:[#allocation1 + $0x28] sm:$0xff pattern:$0x73625140]
    %v1424 = vld.sshfl [vmem:[#allocation1 + $0x30] sm:$0xff pattern:$0x73625140]
    %v1425 = vld.sshfl [vmem:[#allocation1 + $0x38] sm:$0xff pattern:$0x73625140]
    %v1434 = vpack.c.bf16 %v1418, %v1418
    %v1435 = vpack.c.bf16 %v1419, %v1419
    %v1436 = vpack.c.bf16 %v1420, %v1420
    %v1437 = vpack.c.bf16 %v1421, %v1421
    %v1438 = vpack.c.bf16 %v1422, %v1422
    %v1439 = vpack.c.bf16 %v1423, %v1423
    %v1440 = vpack.c.bf16 %v1424, %v1424
    %v1441 = vpack.c.bf16 %v1425, %v1425
    %v1442 = vld [vmem:[%s5] sm:$0xff]
    %v1443 = vld [vmem:[%s5 + $0x8] sm:$0xff]
    %v1444 = vld [vmem:[%s5 + $0x10] sm:$0xff]
    %v1445 = vld [vmem:[%s5 + $0x18] sm:$0xff]
    %v1446 = vld [vmem:[%s5 + $0x20] sm:$0xff]
    %v1447 = vld [vmem:[%s5 + $0x28] sm:$0xff]
    %v1448 = vld [vmem:[%s5 + $0x30] sm:$0xff]
    %v1449 = vld [vmem:[%s5 + $0x38] sm:$0xff]
    %v1450 = vld [vmem:[%s5 + $0x40] sm:$0xff]
    %v1451 = vld [vmem:[%s5 + $0x48] sm:$0xff]
    %v1452 = vld [vmem:[%s5 + $0x50] sm:$0xff]
    %v1453 = vld [vmem:[%s5 + $0x58] sm:$0xff]
    %v1454 = vld [vmem:[%s5 + $0x60] sm:$0xff]
    %v1455 = vld [vmem:[%s5 + $0x68] sm:$0xff]
    %v1456 = vld [vmem:[%s5 + $0x70] sm:$0xff]
    %v1457 = vld [vmem:[%s5 + $0x78] sm:$0xff]
    %v1458 = vld [vmem:[%s5 + $0x80] sm:$0xff]
    %v1459 = vld [vmem:[%s5 + $0x88] sm:$0xff]
    %v1460 = vld [vmem:[%s5 + $0x90] sm:$0xff]
    %v1461 = vld [vmem:[%s5 + $0x98] sm:$0xff]
    %v1462 = vld [vmem:[%s5 + $0xa0] sm:$0xff]
    %v1463 = vld [vmem:[%s5 + $0xa8] sm:$0xff]
    %v1464 = vld [vmem:[%s5 + $0xb0] sm:$0xff]
    %v1465 = vld [vmem:[%s5 + $0xb8] sm:$0xff]
    %v1466 = vld [vmem:[%s5 + $0xc0] sm:$0xff]
    %v1467 = vld [vmem:[%s5 + $0xc8] sm:$0xff]
    %v1468 = vld [vmem:[%s5 + $0xd0] sm:$0xff]
    %v1469 = vld [vmem:[%s5 + $0xd8] sm:$0xff]
    %v1470 = vld [vmem:[%s5 + $0xe0] sm:$0xff]
    %v1471 = vld [vmem:[%s5 + $0xe8] sm:$0xff]
    %v1472 = vld [vmem:[%s5 + $0xf0] sm:$0xff]
    %v1473 = vld [vmem:[%s5 + $0xf8] sm:$0xff]
    %v1474 = vld [vmem:[%s5 + $0x100] sm:$0xff]
    %v1475 = vld [vmem:[%s5 + $0x108] sm:$0xff]
    %v1476 = vld [vmem:[%s5 + $0x110] sm:$0xff]
    %v1477 = vld [vmem:[%s5 + $0x118] sm:$0xff]
    %v1478 = vld [vmem:[%s5 + $0x120] sm:$0xff]
    %v1479 = vld [vmem:[%s5 + $0x128] sm:$0xff]
    %v1480 = vld [vmem:[%s5 + $0x130] sm:$0xff]
    %v1481 = vld [vmem:[%s5 + $0x138] sm:$0xff]
    %v1482 = vld [vmem:[%s5 + $0x140] sm:$0xff]
    %v1483 = vld [vmem:[%s5 + $0x148] sm:$0xff]
    %v1484 = vld [vmem:[%s5 + $0x150] sm:$0xff]
    %v1485 = vld [vmem:[%s5 + $0x158] sm:$0xff]
    %v1486 = vld [vmem:[%s5 + $0x160] sm:$0xff]
    %v1487 = vld [vmem:[%s5 + $0x168] sm:$0xff]
    %v1488 = vld [vmem:[%s5 + $0x170] sm:$0xff]
    %v1489 = vld [vmem:[%s5 + $0x178] sm:$0xff]
    %v1490 = vld [vmem:[%s5 + $0x180] sm:$0xff]
    %v1491 = vld [vmem:[%s5 + $0x188] sm:$0xff]
    %v1492 = vld [vmem:[%s5 + $0x190] sm:$0xff]
    %v1493 = vld [vmem:[%s5 + $0x198] sm:$0xff]
    %v1494 = vld [vmem:[%s5 + $0x1a0] sm:$0xff]
    %v1495 = vld [vmem:[%s5 + $0x1a8] sm:$0xff]
    %v1496 = vld [vmem:[%s5 + $0x1b0] sm:$0xff]
    %v1497 = vld [vmem:[%s5 + $0x1b8] sm:$0xff]
    %v1498 = vld [vmem:[%s5 + $0x1c0] sm:$0xff]
    %v1499 = vld [vmem:[%s5 + $0x1c8] sm:$0xff]
    %v1500 = vld [vmem:[%s5 + $0x1d0] sm:$0xff]
    %v1501 = vld [vmem:[%s5 + $0x1d8] sm:$0xff]
    %v1502 = vld [vmem:[%s5 + $0x1e0] sm:$0xff]
    %v1503 = vld [vmem:[%s5 + $0x1e8] sm:$0xff]
    %v1504 = vld [vmem:[%s5 + $0x1f0] sm:$0xff]
    %v1505 = vld [vmem:[%s5 + $0x1f8] sm:$0xff]
    %v1506 = vld [vmem:[%s5 + $0x200] sm:$0xff]
    %v1507 = vld [vmem:[%s5 + $0x208] sm:$0xff]
    %v1508 = vld [vmem:[%s5 + $0x210] sm:$0xff]
    %v1509 = vld [vmem:[%s5 + $0x218] sm:$0xff]
    %v1510 = vld [vmem:[%s5 + $0x220] sm:$0xff]
    %v1511 = vld [vmem:[%s5 + $0x228] sm:$0xff]
    %v1512 = vld [vmem:[%s5 + $0x230] sm:$0xff]
    %v1513 = vld [vmem:[%s5 + $0x238] sm:$0xff]
    %v1514 = vld [vmem:[%s5 + $0x240] sm:$0xff]
    %v1515 = vld [vmem:[%s5 + $0x248] sm:$0xff]
    %v1516 = vld [vmem:[%s5 + $0x250] sm:$0xff]
    %v1517 = vld [vmem:[%s5 + $0x258] sm:$0xff]
    %v1518 = vld [vmem:[%s5 + $0x260] sm:$0xff]
    %v1519 = vld [vmem:[%s5 + $0x268] sm:$0xff]
    %v1520 = vld [vmem:[%s5 + $0x270] sm:$0xff]
    %v1521 = vld [vmem:[%s5 + $0x278] sm:$0xff]
    %v1522 = vld [vmem:[%s5 + $0x280] sm:$0xff]
    %v1523 = vld [vmem:[%s5 + $0x288] sm:$0xff]
    %v1524 = vld [vmem:[%s5 + $0x290] sm:$0xff]
    %v1525 = vld [vmem:[%s5 + $0x298] sm:$0xff]
    %v1526 = vld [vmem:[%s5 + $0x2a0] sm:$0xff]
    %v1527 = vld [vmem:[%s5 + $0x2a8] sm:$0xff]
    %v1528 = vld [vmem:[%s5 + $0x2b0] sm:$0xff]
    %v1529 = vld [vmem:[%s5 + $0x2b8] sm:$0xff]
    %v1530 = vld [vmem:[%s5 + $0x2c0] sm:$0xff]
    %v1531 = vld [vmem:[%s5 + $0x2c8] sm:$0xff]
    %v1532 = vld [vmem:[%s5 + $0x2d0] sm:$0xff]
    %v1533 = vld [vmem:[%s5 + $0x2d8] sm:$0xff]
    %v1534 = vld [vmem:[%s5 + $0x2e0] sm:$0xff]
    %v1535 = vld [vmem:[%s5 + $0x2e8] sm:$0xff]
    %v1536 = vld [vmem:[%s5 + $0x2f0] sm:$0xff]
    %v1537 = vld [vmem:[%s5 + $0x2f8] sm:$0xff]
    %v1538 = vld [vmem:[%s5 + $0x300] sm:$0xff]
    %v1539 = vld [vmem:[%s5 + $0x308] sm:$0xff]
    %v1540 = vld [vmem:[%s5 + $0x310] sm:$0xff]
    %v1541 = vld [vmem:[%s5 + $0x318] sm:$0xff]
    %v1542 = vld [vmem:[%s5 + $0x320] sm:$0xff]
    %v1543 = vld [vmem:[%s5 + $0x328] sm:$0xff]
    %v1544 = vld [vmem:[%s5 + $0x330] sm:$0xff]
    %v1545 = vld [vmem:[%s5 + $0x338] sm:$0xff]
    %v1546 = vld [vmem:[%s5 + $0x340] sm:$0xff]
    %v1547 = vld [vmem:[%s5 + $0x348] sm:$0xff]
    %v1548 = vld [vmem:[%s5 + $0x350] sm:$0xff]
    %v1549 = vld [vmem:[%s5 + $0x358] sm:$0xff]
    %v1550 = vld [vmem:[%s5 + $0x360] sm:$0xff]
    %v1551 = vld [vmem:[%s5 + $0x368] sm:$0xff]
    %v1552 = vld [vmem:[%s5 + $0x370] sm:$0xff]
    %v1553 = vld [vmem:[%s5 + $0x378] sm:$0xff]
    %v1554 = vld [vmem:[%s5 + $0x380] sm:$0xff]
    %v1555 = vld [vmem:[%s5 + $0x388] sm:$0xff]
    %v1556 = vld [vmem:[%s5 + $0x390] sm:$0xff]
    %v1557 = vld [vmem:[%s5 + $0x398] sm:$0xff]
    %v1558 = vld [vmem:[%s5 + $0x3a0] sm:$0xff]
    %v1559 = vld [vmem:[%s5 + $0x3a8] sm:$0xff]
    %v1560 = vld [vmem:[%s5 + $0x3b0] sm:$0xff]
    %v1561 = vld [vmem:[%s5 + $0x3b8] sm:$0xff]
    %v1562 = vld [vmem:[%s5 + $0x3c0] sm:$0xff]
    %v1563 = vld [vmem:[%s5 + $0x3c8] sm:$0xff]
    %v1564 = vld [vmem:[%s5 + $0x3d0] sm:$0xff]
    %v1565 = vld [vmem:[%s5 + $0x3d8] sm:$0xff]
    %v1566 = vld [vmem:[%s5 + $0x3e0] sm:$0xff]
    %v1567 = vld [vmem:[%s5 + $0x3e8] sm:$0xff]
    %v1568 = vld [vmem:[%s5 + $0x3f0] sm:$0xff]
    %v1569 = vld [vmem:[%s5 + $0x3f8] sm:$0xff]
    %v1570 = vld [vmem:[%s5 + $0x400] sm:$0xff]
    %v1571 = vld [vmem:[%s5 + $0x408] sm:$0xff]
    %v1572 = vld [vmem:[%s5 + $0x410] sm:$0xff]
    %v1573 = vld [vmem:[%s5 + $0x418] sm:$0xff]
    %v1574 = vld [vmem:[%s5 + $0x420] sm:$0xff]
    %v1575 = vld [vmem:[%s5 + $0x428] sm:$0xff]
    %v1576 = vld [vmem:[%s5 + $0x430] sm:$0xff]
    %v1577 = vld [vmem:[%s5 + $0x438] sm:$0xff]
    %v1578 = vld [vmem:[%s5 + $0x440] sm:$0xff]
    %v1579 = vld [vmem:[%s5 + $0x448] sm:$0xff]
    %v1580 = vld [vmem:[%s5 + $0x450] sm:$0xff]
    %v1581 = vld [vmem:[%s5 + $0x458] sm:$0xff]
    %v1582 = vld [vmem:[%s5 + $0x460] sm:$0xff]
    %v1583 = vld [vmem:[%s5 + $0x468] sm:$0xff]
    %v1584 = vld [vmem:[%s5 + $0x470] sm:$0xff]
    %v1585 = vld [vmem:[%s5 + $0x478] sm:$0xff]
    %v1586 = vld [vmem:[%s5 + $0x480] sm:$0xff]
    %v1587 = vld [vmem:[%s5 + $0x488] sm:$0xff]
    %v1588 = vld [vmem:[%s5 + $0x490] sm:$0xff]
    %v1589 = vld [vmem:[%s5 + $0x498] sm:$0xff]
    %v1590 = vld [vmem:[%s5 + $0x4a0] sm:$0xff]
    %v1591 = vld [vmem:[%s5 + $0x4a8] sm:$0xff]
    %v1592 = vld [vmem:[%s5 + $0x4b0] sm:$0xff]
    %v1593 = vld [vmem:[%s5 + $0x4b8] sm:$0xff]
    %v1594 = vld [vmem:[%s5 + $0x4c0] sm:$0xff]
    %v1595 = vld [vmem:[%s5 + $0x4c8] sm:$0xff]
    %v1596 = vld [vmem:[%s5 + $0x4d0] sm:$0xff]
    %v1597 = vld [vmem:[%s5 + $0x4d8] sm:$0xff]
    %v1598 = vld [vmem:[%s5 + $0x4e0] sm:$0xff]
    %v1599 = vld [vmem:[%s5 + $0x4e8] sm:$0xff]
    %v1600 = vld [vmem:[%s5 + $0x4f0] sm:$0xff]
    %v1601 = vld [vmem:[%s5 + $0x4f8] sm:$0xff]
    %v1602 = vld [vmem:[%s5 + $0x500] sm:$0xff]
    %v1603 = vld [vmem:[%s5 + $0x508] sm:$0xff]
    %v1604 = vld [vmem:[%s5 + $0x510] sm:$0xff]
    %v1605 = vld [vmem:[%s5 + $0x518] sm:$0xff]
    %v1606 = vld [vmem:[%s5 + $0x520] sm:$0xff]
    %v1607 = vld [vmem:[%s5 + $0x528] sm:$0xff]
    %v1608 = vld [vmem:[%s5 + $0x530] sm:$0xff]
    %v1609 = vld [vmem:[%s5 + $0x538] sm:$0xff]
    %v1610 = vld [vmem:[%s5 + $0x540] sm:$0xff]
    %v1611 = vld [vmem:[%s5 + $0x548] sm:$0xff]
    %v1612 = vld [vmem:[%s5 + $0x550] sm:$0xff]
    %v1613 = vld [vmem:[%s5 + $0x558] sm:$0xff]
    %v1614 = vld [vmem:[%s5 + $0x560] sm:$0xff]
    %v1615 = vld [vmem:[%s5 + $0x568] sm:$0xff]
    %v1616 = vld [vmem:[%s5 + $0x570] sm:$0xff]
    %v1617 = vld [vmem:[%s5 + $0x578] sm:$0xff]
    %v1618 = vld [vmem:[%s5 + $0x580] sm:$0xff]
    %v1619 = vld [vmem:[%s5 + $0x588] sm:$0xff]
    %v1620 = vld [vmem:[%s5 + $0x590] sm:$0xff]
    %v1621 = vld [vmem:[%s5 + $0x598] sm:$0xff]
    %v1622 = vld [vmem:[%s5 + $0x5a0] sm:$0xff]
    %v1623 = vld [vmem:[%s5 + $0x5a8] sm:$0xff]
    %v1624 = vld [vmem:[%s5 + $0x5b0] sm:$0xff]
    %v1625 = vld [vmem:[%s5 + $0x5b8] sm:$0xff]
    %v1626 = vld [vmem:[%s5 + $0x5c0] sm:$0xff]
    %v1627 = vld [vmem:[%s5 + $0x5c8] sm:$0xff]
    %v1628 = vld [vmem:[%s5 + $0x5d0] sm:$0xff]
    %v1629 = vld [vmem:[%s5 + $0x5d8] sm:$0xff]
    %v1630 = vld [vmem:[%s5 + $0x5e0] sm:$0xff]
    %v1631 = vld [vmem:[%s5 + $0x5e8] sm:$0xff]
    %v1632 = vld [vmem:[%s5 + $0x5f0] sm:$0xff]
    %v1633 = vld [vmem:[%s5 + $0x5f8] sm:$0xff]
    %v1634 = vld [vmem:[%s5 + $0x600] sm:$0xff]
    %v1635 = vld [vmem:[%s5 + $0x608] sm:$0xff]
    %v1636 = vld [vmem:[%s5 + $0x610] sm:$0xff]
    %v1637 = vld [vmem:[%s5 + $0x618] sm:$0xff]
    %v1638 = vld [vmem:[%s5 + $0x620] sm:$0xff]
    %v1639 = vld [vmem:[%s5 + $0x628] sm:$0xff]
    %v1640 = vld [vmem:[%s5 + $0x630] sm:$0xff]
    %v1641 = vld [vmem:[%s5 + $0x638] sm:$0xff]
    %v1642 = vld [vmem:[%s5 + $0x640] sm:$0xff]
    %v1643 = vld [vmem:[%s5 + $0x648] sm:$0xff]
    %v1644 = vld [vmem:[%s5 + $0x650] sm:$0xff]
    %v1645 = vld [vmem:[%s5 + $0x658] sm:$0xff]
    %v1646 = vld [vmem:[%s5 + $0x660] sm:$0xff]
    %v1647 = vld [vmem:[%s5 + $0x668] sm:$0xff]
    %v1648 = vld [vmem:[%s5 + $0x670] sm:$0xff]
    %v1649 = vld [vmem:[%s5 + $0x678] sm:$0xff]
    %v1650 = vld [vmem:[%s5 + $0x680] sm:$0xff]
    %v1651 = vld [vmem:[%s5 + $0x688] sm:$0xff]
    %v1652 = vld [vmem:[%s5 + $0x690] sm:$0xff]
    %v1653 = vld [vmem:[%s5 + $0x698] sm:$0xff]
    %v1654 = vld [vmem:[%s5 + $0x6a0] sm:$0xff]
    %v1655 = vld [vmem:[%s5 + $0x6a8] sm:$0xff]
    %v1656 = vld [vmem:[%s5 + $0x6b0] sm:$0xff]
    %v1657 = vld [vmem:[%s5 + $0x6b8] sm:$0xff]
    %v1658 = vld [vmem:[%s5 + $0x6c0] sm:$0xff]
    %v1659 = vld [vmem:[%s5 + $0x6c8] sm:$0xff]
    %v1660 = vld [vmem:[%s5 + $0x6d0] sm:$0xff]
    %v1661 = vld [vmem:[%s5 + $0x6d8] sm:$0xff]
    %v1662 = vld [vmem:[%s5 + $0x6e0] sm:$0xff]
    %v1663 = vld [vmem:[%s5 + $0x6e8] sm:$0xff]
    %v1664 = vld [vmem:[%s5 + $0x6f0] sm:$0xff]
    %v1665 = vld [vmem:[%s5 + $0x6f8] sm:$0xff]
    %v1666 = vld [vmem:[%s5 + $0x700] sm:$0xff]
    %v1667 = vld [vmem:[%s5 + $0x708] sm:$0xff]
    %v1668 = vld [vmem:[%s5 + $0x710] sm:$0xff]
    %v1669 = vld [vmem:[%s5 + $0x718] sm:$0xff]
    %v1670 = vld [vmem:[%s5 + $0x720] sm:$0xff]
    %v1671 = vld [vmem:[%s5 + $0x728] sm:$0xff]
    %v1672 = vld [vmem:[%s5 + $0x730] sm:$0xff]
    %v1673 = vld [vmem:[%s5 + $0x738] sm:$0xff]
    %v1674 = vld [vmem:[%s5 + $0x740] sm:$0xff]
    %v1675 = vld [vmem:[%s5 + $0x748] sm:$0xff]
    %v1676 = vld [vmem:[%s5 + $0x750] sm:$0xff]
    %v1677 = vld [vmem:[%s5 + $0x758] sm:$0xff]
    %v1678 = vld [vmem:[%s5 + $0x760] sm:$0xff]
    %v1679 = vld [vmem:[%s5 + $0x768] sm:$0xff]
    %v1680 = vld [vmem:[%s5 + $0x770] sm:$0xff]
    %v1681 = vld [vmem:[%s5 + $0x778] sm:$0xff]
    %v1682 = vld [vmem:[%s5 + $0x780] sm:$0xff]
    %v1683 = vld [vmem:[%s5 + $0x788] sm:$0xff]
    %v1684 = vld [vmem:[%s5 + $0x790] sm:$0xff]
    %v1685 = vld [vmem:[%s5 + $0x798] sm:$0xff]
    %v1686 = vld [vmem:[%s5 + $0x7a0] sm:$0xff]
    %v1687 = vld [vmem:[%s5 + $0x7a8] sm:$0xff]
    %v1688 = vld [vmem:[%s5 + $0x7b0] sm:$0xff]
    %v1689 = vld [vmem:[%s5 + $0x7b8] sm:$0xff]
    %v1690 = vld [vmem:[%s5 + $0x7c0] sm:$0xff]
    %v1691 = vld [vmem:[%s5 + $0x7c8] sm:$0xff]
    %v1692 = vld [vmem:[%s5 + $0x7d0] sm:$0xff]
    %v1693 = vld [vmem:[%s5 + $0x7d8] sm:$0xff]
    %v1694 = vld [vmem:[%s5 + $0x7e0] sm:$0xff]
    %v1695 = vld [vmem:[%s5 + $0x7e8] sm:$0xff]
    %v1696 = vld [vmem:[%s5 + $0x7f0] sm:$0xff]
    %v1697 = vld [vmem:[%s5 + $0x7f8] sm:$0xff]
    %v1698 = vld [vmem:[%s6] sm:$0xf]
    %v1700 = vperm.slane %v1698, 0
    %v1701 = vperm.slane %v1698, 1
    %v1702 = vperm.slane %v1698, 2
    %v1703 = vperm.slane %v1698, 3
    %v1964 = vunpack.c.l.b16 %v1442
    %v1965 = vunpack.c.h.b16 %v1442
    %v1966 = vunpack.c.l.b16 %v1443
    %v1967 = vunpack.c.h.b16 %v1443
    %v1968 = vunpack.c.l.b16 %v1444
    %v1969 = vunpack.c.h.b16 %v1444
    %v1970 = vunpack.c.l.b16 %v1445
    %v1971 = vunpack.c.h.b16 %v1445
    %v1972 = vunpack.c.l.b16 %v1446
    %v1973 = vunpack.c.h.b16 %v1446
    %v1974 = vunpack.c.l.b16 %v1447
    %v1975 = vunpack.c.h.b16 %v1447
    %v1976 = vunpack.c.l.b16 %v1448
    %v1977 = vunpack.c.h.b16 %v1448
    %v1978 = vunpack.c.l.b16 %v1449
    %v1979 = vunpack.c.h.b16 %v1449
    %v1980 = vunpack.c.l.b16 %v1450
    %v1981 = vunpack.c.h.b16 %v1450
    %v1982 = vunpack.c.l.b16 %v1451
    %v1983 = vunpack.c.h.b16 %v1451
    %v1984 = vunpack.c.l.b16 %v1452
    %v1985 = vunpack.c.h.b16 %v1452
    %v1986 = vunpack.c.l.b16 %v1453
    %v1987 = vunpack.c.h.b16 %v1453
    %v1988 = vunpack.c.l.b16 %v1454
    %v1989 = vunpack.c.h.b16 %v1454
    %v1990 = vunpack.c.l.b16 %v1455
    %v1991 = vunpack.c.h.b16 %v1455
    %v1992 = vunpack.c.l.b16 %v1456
    %v1993 = vunpack.c.h.b16 %v1456
    %v1994 = vunpack.c.l.b16 %v1457
    %v1995 = vunpack.c.h.b16 %v1457
    %v1996 = vunpack.c.l.b16 %v1458
    %v1997 = vunpack.c.h.b16 %v1458
    %v1998 = vunpack.c.l.b16 %v1459
    %v1999 = vunpack.c.h.b16 %v1459
    %v2000 = vunpack.c.l.b16 %v1460
    %v2001 = vunpack.c.h.b16 %v1460
    %v2002 = vunpack.c.l.b16 %v1461
    %v2003 = vunpack.c.h.b16 %v1461
    %v2004 = vunpack.c.l.b16 %v1462
    %v2005 = vunpack.c.h.b16 %v1462
    %v2006 = vunpack.c.l.b16 %v1463
    %v2007 = vunpack.c.h.b16 %v1463
    %v2008 = vunpack.c.l.b16 %v1464
    %v2009 = vunpack.c.h.b16 %v1464
    %v2010 = vunpack.c.l.b16 %v1465
    %v2011 = vunpack.c.h.b16 %v1465
    %v2012 = vunpack.c.l.b16 %v1466
    %v2013 = vunpack.c.h.b16 %v1466
    %v2014 = vunpack.c.l.b16 %v1467
    %v2015 = vunpack.c.h.b16 %v1467
    %v2016 = vunpack.c.l.b16 %v1468
    %v2017 = vunpack.c.h.b16 %v1468
    %v2018 = vunpack.c.l.b16 %v1469
    %v2019 = vunpack.c.h.b16 %v1469
    %v2020 = vunpack.c.l.b16 %v1470
    %v2021 = vunpack.c.h.b16 %v1470
    %v2022 = vunpack.c.l.b16 %v1471
    %v2023 = vunpack.c.h.b16 %v1471
    %v2024 = vunpack.c.l.b16 %v1472
    %v2025 = vunpack.c.h.b16 %v1472
    %v2026 = vunpack.c.l.b16 %v1473
    %v2027 = vunpack.c.h.b16 %v1473
    %v2028 = vunpack.c.l.b16 %v1474
    %v2029 = vunpack.c.h.b16 %v1474
    %v2030 = vunpack.c.l.b16 %v1475
    %v2031 = vunpack.c.h.b16 %v1475
    %v2032 = vunpack.c.l.b16 %v1476
    %v2033 = vunpack.c.h.b16 %v1476
    %v2034 = vunpack.c.l.b16 %v1477
    %v2035 = vunpack.c.h.b16 %v1477
    %v2036 = vunpack.c.l.b16 %v1478
    %v2037 = vunpack.c.h.b16 %v1478
    %v2038 = vunpack.c.l.b16 %v1479
    %v2039 = vunpack.c.h.b16 %v1479
    %v2040 = vunpack.c.l.b16 %v1480
    %v2041 = vunpack.c.h.b16 %v1480
    %v2042 = vunpack.c.l.b16 %v1481
    %v2043 = vunpack.c.h.b16 %v1481
    %v2044 = vunpack.c.l.b16 %v1482
    %v2045 = vunpack.c.h.b16 %v1482
    %v2046 = vunpack.c.l.b16 %v1483
    %v2047 = vunpack.c.h.b16 %v1483
    %v2048 = vunpack.c.l.b16 %v1484
    %v2049 = vunpack.c.h.b16 %v1484
    %v2050 = vunpack.c.l.b16 %v1485
    %v2051 = vunpack.c.h.b16 %v1485
    %v2052 = vunpack.c.l.b16 %v1486
    %v2053 = vunpack.c.h.b16 %v1486
    %v2054 = vunpack.c.l.b16 %v1487
    %v2055 = vunpack.c.h.b16 %v1487
    %v2056 = vunpack.c.l.b16 %v1488
    %v2057 = vunpack.c.h.b16 %v1488
    %v2058 = vunpack.c.l.b16 %v1489
    %v2059 = vunpack.c.h.b16 %v1489
    %v2060 = vunpack.c.l.b16 %v1490
    %v2061 = vunpack.c.h.b16 %v1490
    %v2062 = vunpack.c.l.b16 %v1491
    %v2063 = vunpack.c.h.b16 %v1491
    %v2064 = vunpack.c.l.b16 %v1492
    %v2065 = vunpack.c.h.b16 %v1492
    %v2066 = vunpack.c.l.b16 %v1493
    %v2067 = vunpack.c.h.b16 %v1493
    %v2068 = vunpack.c.l.b16 %v1494
    %v2069 = vunpack.c.h.b16 %v1494
    %v2070 = vunpack.c.l.b16 %v1495
    %v2071 = vunpack.c.h.b16 %v1495
    %v2072 = vunpack.c.l.b16 %v1496
    %v2073 = vunpack.c.h.b16 %v1496
    %v2074 = vunpack.c.l.b16 %v1497
    %v2075 = vunpack.c.h.b16 %v1497
    %v2076 = vunpack.c.l.b16 %v1498
    %v2077 = vunpack.c.h.b16 %v1498
    %v2078 = vunpack.c.l.b16 %v1499
    %v2079 = vunpack.c.h.b16 %v1499
    %v2080 = vunpack.c.l.b16 %v1500
    %v2081 = vunpack.c.h.b16 %v1500
    %v2082 = vunpack.c.l.b16 %v1501
    %v2083 = vunpack.c.h.b16 %v1501
    %v2084 = vunpack.c.l.b16 %v1502
    %v2085 = vunpack.c.h.b16 %v1502
    %v2086 = vunpack.c.l.b16 %v1503
    %v2087 = vunpack.c.h.b16 %v1503
    %v2088 = vunpack.c.l.b16 %v1504
    %v2089 = vunpack.c.h.b16 %v1504
    %v2090 = vunpack.c.l.b16 %v1505
    %v2091 = vunpack.c.h.b16 %v1505
    %v2092 = vunpack.c.l.b16 %v1506
    %v2093 = vunpack.c.h.b16 %v1506
    %v2094 = vunpack.c.l.b16 %v1507
    %v2095 = vunpack.c.h.b16 %v1507
    %v2096 = vunpack.c.l.b16 %v1508
    %v2097 = vunpack.c.h.b16 %v1508
    %v2098 = vunpack.c.l.b16 %v1509
    %v2099 = vunpack.c.h.b16 %v1509
    %v2100 = vunpack.c.l.b16 %v1510
    %v2101 = vunpack.c.h.b16 %v1510
    %v2102 = vunpack.c.l.b16 %v1511
    %v2103 = vunpack.c.h.b16 %v1511
    %v2104 = vunpack.c.l.b16 %v1512
    %v2105 = vunpack.c.h.b16 %v1512
    %v2106 = vunpack.c.l.b16 %v1513
    %v2107 = vunpack.c.h.b16 %v1513
    %v2108 = vunpack.c.l.b16 %v1514
    %v2109 = vunpack.c.h.b16 %v1514
    %v2110 = vunpack.c.l.b16 %v1515
    %v2111 = vunpack.c.h.b16 %v1515
    %v2112 = vunpack.c.l.b16 %v1516
    %v2113 = vunpack.c.h.b16 %v1516
    %v2114 = vunpack.c.l.b16 %v1517
    %v2115 = vunpack.c.h.b16 %v1517
    %v2116 = vunpack.c.l.b16 %v1518
    %v2117 = vunpack.c.h.b16 %v1518
    %v2118 = vunpack.c.l.b16 %v1519
    %v2119 = vunpack.c.h.b16 %v1519
    %v2120 = vunpack.c.l.b16 %v1520
    %v2121 = vunpack.c.h.b16 %v1520
    %v2122 = vunpack.c.l.b16 %v1521
    %v2123 = vunpack.c.h.b16 %v1521
    %v2124 = vunpack.c.l.b16 %v1522
    %v2125 = vunpack.c.h.b16 %v1522
    %v2126 = vunpack.c.l.b16 %v1523
    %v2127 = vunpack.c.h.b16 %v1523
    %v2128 = vunpack.c.l.b16 %v1524
    %v2129 = vunpack.c.h.b16 %v1524
    %v2130 = vunpack.c.l.b16 %v1525
    %v2131 = vunpack.c.h.b16 %v1525
    %v2132 = vunpack.c.l.b16 %v1526
    %v2133 = vunpack.c.h.b16 %v1526
    %v2134 = vunpack.c.l.b16 %v1527
    %v2135 = vunpack.c.h.b16 %v1527
    %v2136 = vunpack.c.l.b16 %v1528
    %v2137 = vunpack.c.h.b16 %v1528
    %v2138 = vunpack.c.l.b16 %v1529
    %v2139 = vunpack.c.h.b16 %v1529
    %v2140 = vunpack.c.l.b16 %v1530
    %v2141 = vunpack.c.h.b16 %v1530
    %v2142 = vunpack.c.l.b16 %v1531
    %v2143 = vunpack.c.h.b16 %v1531
    %v2144 = vunpack.c.l.b16 %v1532
    %v2145 = vunpack.c.h.b16 %v1532
    %v2146 = vunpack.c.l.b16 %v1533
    %v2147 = vunpack.c.h.b16 %v1533
    %v2148 = vunpack.c.l.b16 %v1534
    %v2149 = vunpack.c.h.b16 %v1534
    %v2150 = vunpack.c.l.b16 %v1535
    %v2151 = vunpack.c.h.b16 %v1535
    %v2152 = vunpack.c.l.b16 %v1536
    %v2153 = vunpack.c.h.b16 %v1536
    %v2154 = vunpack.c.l.b16 %v1537
    %v2155 = vunpack.c.h.b16 %v1537
    %v2156 = vunpack.c.l.b16 %v1538
    %v2157 = vunpack.c.h.b16 %v1538
    %v2158 = vunpack.c.l.b16 %v1539
    %v2159 = vunpack.c.h.b16 %v1539
    %v2160 = vunpack.c.l.b16 %v1540
    %v2161 = vunpack.c.h.b16 %v1540
    %v2162 = vunpack.c.l.b16 %v1541
    %v2163 = vunpack.c.h.b16 %v1541
    %v2164 = vunpack.c.l.b16 %v1542
    %v2165 = vunpack.c.h.b16 %v1542
    %v2166 = vunpack.c.l.b16 %v1543
    %v2167 = vunpack.c.h.b16 %v1543
    %v2168 = vunpack.c.l.b16 %v1544
    %v2169 = vunpack.c.h.b16 %v1544
    %v2170 = vunpack.c.l.b16 %v1545
    %v2171 = vunpack.c.h.b16 %v1545
    %v2172 = vunpack.c.l.b16 %v1546
    %v2173 = vunpack.c.h.b16 %v1546
    %v2174 = vunpack.c.l.b16 %v1547
    %v2175 = vunpack.c.h.b16 %v1547
    %v2176 = vunpack.c.l.b16 %v1548
    %v2177 = vunpack.c.h.b16 %v1548
    %v2178 = vunpack.c.l.b16 %v1549
    %v2179 = vunpack.c.h.b16 %v1549
    %v2180 = vunpack.c.l.b16 %v1550
    %v2181 = vunpack.c.h.b16 %v1550
    %v2182 = vunpack.c.l.b16 %v1551
    %v2183 = vunpack.c.h.b16 %v1551
    %v2184 = vunpack.c.l.b16 %v1552
    %v2185 = vunpack.c.h.b16 %v1552
    %v2186 = vunpack.c.l.b16 %v1553
    %v2187 = vunpack.c.h.b16 %v1553
    %v2188 = vunpack.c.l.b16 %v1554
    %v2189 = vunpack.c.h.b16 %v1554
    %v2190 = vunpack.c.l.b16 %v1555
    %v2191 = vunpack.c.h.b16 %v1555
    %v2192 = vunpack.c.l.b16 %v1556
    %v2193 = vunpack.c.h.b16 %v1556
    %v2194 = vunpack.c.l.b16 %v1557
    %v2195 = vunpack.c.h.b16 %v1557
    %v2196 = vunpack.c.l.b16 %v1558
    %v2197 = vunpack.c.h.b16 %v1558
    %v2198 = vunpack.c.l.b16 %v1559
    %v2199 = vunpack.c.h.b16 %v1559
    %v2200 = vunpack.c.l.b16 %v1560
    %v2201 = vunpack.c.h.b16 %v1560
    %v2202 = vunpack.c.l.b16 %v1561
    %v2203 = vunpack.c.h.b16 %v1561
    %v2204 = vunpack.c.l.b16 %v1562
    %v2205 = vunpack.c.h.b16 %v1562
    %v2206 = vunpack.c.l.b16 %v1563
    %v2207 = vunpack.c.h.b16 %v1563
    %v2208 = vunpack.c.l.b16 %v1564
    %v2209 = vunpack.c.h.b16 %v1564
    %v2210 = vunpack.c.l.b16 %v1565
    %v2211 = vunpack.c.h.b16 %v1565
    %v2212 = vunpack.c.l.b16 %v1566
    %v2213 = vunpack.c.h.b16 %v1566
    %v2214 = vunpack.c.l.b16 %v1567
    %v2215 = vunpack.c.h.b16 %v1567
    %v2216 = vunpack.c.l.b16 %v1568
    %v2217 = vunpack.c.h.b16 %v1568
    %v2218 = vunpack.c.l.b16 %v1569
    %v2219 = vunpack.c.h.b16 %v1569
    %v2220 = vunpack.c.l.b16 %v1570
    %v2221 = vunpack.c.h.b16 %v1570
    %v2222 = vunpack.c.l.b16 %v1571
    %v2223 = vunpack.c.h.b16 %v1571
    %v2224 = vunpack.c.l.b16 %v1572
    %v2225 = vunpack.c.h.b16 %v1572
    %v2226 = vunpack.c.l.b16 %v1573
    %v2227 = vunpack.c.h.b16 %v1573
    %v2228 = vunpack.c.l.b16 %v1574
    %v2229 = vunpack.c.h.b16 %v1574
    %v2230 = vunpack.c.l.b16 %v1575
    %v2231 = vunpack.c.h.b16 %v1575
    %v2232 = vunpack.c.l.b16 %v1576
    %v2233 = vunpack.c.h.b16 %v1576
    %v2234 = vunpack.c.l.b16 %v1577
    %v2235 = vunpack.c.h.b16 %v1577
    %v2236 = vunpack.c.l.b16 %v1578
    %v2237 = vunpack.c.h.b16 %v1578
    %v2238 = vunpack.c.l.b16 %v1579
    %v2239 = vunpack.c.h.b16 %v1579
    %v2240 = vunpack.c.l.b16 %v1580
    %v2241 = vunpack.c.h.b16 %v1580
    %v2242 = vunpack.c.l.b16 %v1581
    %v2243 = vunpack.c.h.b16 %v1581
    %v2244 = vunpack.c.l.b16 %v1582
    %v2245 = vunpack.c.h.b16 %v1582
    %v2246 = vunpack.c.l.b16 %v1583
    %v2247 = vunpack.c.h.b16 %v1583
    %v2248 = vunpack.c.l.b16 %v1584
    %v2249 = vunpack.c.h.b16 %v1584
    %v2250 = vunpack.c.l.b16 %v1585
    %v2251 = vunpack.c.h.b16 %v1585
    %v2252 = vunpack.c.l.b16 %v1586
    %v2253 = vunpack.c.h.b16 %v1586
    %v2254 = vunpack.c.l.b16 %v1587
    %v2255 = vunpack.c.h.b16 %v1587
    %v2256 = vunpack.c.l.b16 %v1588
    %v2257 = vunpack.c.h.b16 %v1588
    %v2258 = vunpack.c.l.b16 %v1589
    %v2259 = vunpack.c.h.b16 %v1589
    %v2260 = vunpack.c.l.b16 %v1590
    %v2261 = vunpack.c.h.b16 %v1590
    %v2262 = vunpack.c.l.b16 %v1591
    %v2263 = vunpack.c.h.b16 %v1591
    %v2264 = vunpack.c.l.b16 %v1592
    %v2265 = vunpack.c.h.b16 %v1592
    %v2266 = vunpack.c.l.b16 %v1593
    %v2267 = vunpack.c.h.b16 %v1593
    %v2268 = vunpack.c.l.b16 %v1594
    %v2269 = vunpack.c.h.b16 %v1594
    %v2270 = vunpack.c.l.b16 %v1595
    %v2271 = vunpack.c.h.b16 %v1595
    %v2272 = vunpack.c.l.b16 %v1596
    %v2273 = vunpack.c.h.b16 %v1596
    %v2274 = vunpack.c.l.b16 %v1597
    %v2275 = vunpack.c.h.b16 %v1597
    %v2276 = vunpack.c.l.b16 %v1598
    %v2277 = vunpack.c.h.b16 %v1598
    %v2278 = vunpack.c.l.b16 %v1599
    %v2279 = vunpack.c.h.b16 %v1599
    %v2280 = vunpack.c.l.b16 %v1600
    %v2281 = vunpack.c.h.b16 %v1600
    %v2282 = vunpack.c.l.b16 %v1601
    %v2283 = vunpack.c.h.b16 %v1601
    %v2284 = vunpack.c.l.b16 %v1602
    %v2285 = vunpack.c.h.b16 %v1602
    %v2286 = vunpack.c.l.b16 %v1603
    %v2287 = vunpack.c.h.b16 %v1603
    %v2288 = vunpack.c.l.b16 %v1604
    %v2289 = vunpack.c.h.b16 %v1604
    %v2290 = vunpack.c.l.b16 %v1605
    %v2291 = vunpack.c.h.b16 %v1605
    %v2292 = vunpack.c.l.b16 %v1606
    %v2293 = vunpack.c.h.b16 %v1606
    %v2294 = vunpack.c.l.b16 %v1607
    %v2295 = vunpack.c.h.b16 %v1607
    %v2296 = vunpack.c.l.b16 %v1608
    %v2297 = vunpack.c.h.b16 %v1608
    %v2298 = vunpack.c.l.b16 %v1609
    %v2299 = vunpack.c.h.b16 %v1609
    %v2300 = vunpack.c.l.b16 %v1610
    %v2301 = vunpack.c.h.b16 %v1610
    %v2302 = vunpack.c.l.b16 %v1611
    %v2303 = vunpack.c.h.b16 %v1611
    %v2304 = vunpack.c.l.b16 %v1612
    %v2305 = vunpack.c.h.b16 %v1612
    %v2306 = vunpack.c.l.b16 %v1613
    %v2307 = vunpack.c.h.b16 %v1613
    %v2308 = vunpack.c.l.b16 %v1614
    %v2309 = vunpack.c.h.b16 %v1614
    %v2310 = vunpack.c.l.b16 %v1615
    %v2311 = vunpack.c.h.b16 %v1615
    %v2312 = vunpack.c.l.b16 %v1616
    %v2313 = vunpack.c.h.b16 %v1616
    %v2314 = vunpack.c.l.b16 %v1617
    %v2315 = vunpack.c.h.b16 %v1617
    %v2316 = vunpack.c.l.b16 %v1618
    %v2317 = vunpack.c.h.b16 %v1618
    %v2318 = vunpack.c.l.b16 %v1619
    %v2319 = vunpack.c.h.b16 %v1619
    %v2320 = vunpack.c.l.b16 %v1620
    %v2321 = vunpack.c.h.b16 %v1620
    %v2322 = vunpack.c.l.b16 %v1621
    %v2323 = vunpack.c.h.b16 %v1621
    %v2324 = vunpack.c.l.b16 %v1622
    %v2325 = vunpack.c.h.b16 %v1622
    %v2326 = vunpack.c.l.b16 %v1623
    %v2327 = vunpack.c.h.b16 %v1623
    %v2328 = vunpack.c.l.b16 %v1624
    %v2329 = vunpack.c.h.b16 %v1624
    %v2330 = vunpack.c.l.b16 %v1625
    %v2331 = vunpack.c.h.b16 %v1625
    %v2332 = vunpack.c.l.b16 %v1626
    %v2333 = vunpack.c.h.b16 %v1626
    %v2334 = vunpack.c.l.b16 %v1627
    %v2335 = vunpack.c.h.b16 %v1627
    %v2336 = vunpack.c.l.b16 %v1628
    %v2337 = vunpack.c.h.b16 %v1628
    %v2338 = vunpack.c.l.b16 %v1629
    %v2339 = vunpack.c.h.b16 %v1629
    %v2340 = vunpack.c.l.b16 %v1630
    %v2341 = vunpack.c.h.b16 %v1630
    %v2342 = vunpack.c.l.b16 %v1631
    %v2343 = vunpack.c.h.b16 %v1631
    %v2344 = vunpack.c.l.b16 %v1632
    %v2345 = vunpack.c.h.b16 %v1632
    %v2346 = vunpack.c.l.b16 %v1633
    %v2347 = vunpack.c.h.b16 %v1633
    %v2348 = vunpack.c.l.b16 %v1634
    %v2349 = vunpack.c.h.b16 %v1634
    %v2350 = vunpack.c.l.b16 %v1635
    %v2351 = vunpack.c.h.b16 %v1635
    %v2352 = vunpack.c.l.b16 %v1636
    %v2353 = vunpack.c.h.b16 %v1636
    %v2354 = vunpack.c.l.b16 %v1637
    %v2355 = vunpack.c.h.b16 %v1637
    %v2356 = vunpack.c.l.b16 %v1638
    %v2357 = vunpack.c.h.b16 %v1638
    %v2358 = vunpack.c.l.b16 %v1639
    %v2359 = vunpack.c.h.b16 %v1639
    %v2360 = vunpack.c.l.b16 %v1640
    %v2361 = vunpack.c.h.b16 %v1640
    %v2362 = vunpack.c.l.b16 %v1641
    %v2363 = vunpack.c.h.b16 %v1641
    %v2364 = vunpack.c.l.b16 %v1642
    %v2365 = vunpack.c.h.b16 %v1642
    %v2366 = vunpack.c.l.b16 %v1643
    %v2367 = vunpack.c.h.b16 %v1643
    %v2368 = vunpack.c.l.b16 %v1644
    %v2369 = vunpack.c.h.b16 %v1644
    %v2370 = vunpack.c.l.b16 %v1645
    %v2371 = vunpack.c.h.b16 %v1645
    %v2372 = vunpack.c.l.b16 %v1646
    %v2373 = vunpack.c.h.b16 %v1646
    %v2374 = vunpack.c.l.b16 %v1647
    %v2375 = vunpack.c.h.b16 %v1647
    %v2376 = vunpack.c.l.b16 %v1648
    %v2377 = vunpack.c.h.b16 %v1648
    %v2378 = vunpack.c.l.b16 %v1649
    %v2379 = vunpack.c.h.b16 %v1649
    %v2380 = vunpack.c.l.b16 %v1650
    %v2381 = vunpack.c.h.b16 %v1650
    %v2382 = vunpack.c.l.b16 %v1651
    %v2383 = vunpack.c.h.b16 %v1651
    %v2384 = vunpack.c.l.b16 %v1652
    %v2385 = vunpack.c.h.b16 %v1652
    %v2386 = vunpack.c.l.b16 %v1653
    %v2387 = vunpack.c.h.b16 %v1653
    %v2388 = vunpack.c.l.b16 %v1654
    %v2389 = vunpack.c.h.b16 %v1654
    %v2390 = vunpack.c.l.b16 %v1655
    %v2391 = vunpack.c.h.b16 %v1655
    %v2392 = vunpack.c.l.b16 %v1656
    %v2393 = vunpack.c.h.b16 %v1656
    %v2394 = vunpack.c.l.b16 %v1657
    %v2395 = vunpack.c.h.b16 %v1657
    %v2396 = vunpack.c.l.b16 %v1658
    %v2397 = vunpack.c.h.b16 %v1658
    %v2398 = vunpack.c.l.b16 %v1659
    %v2399 = vunpack.c.h.b16 %v1659
    %v2400 = vunpack.c.l.b16 %v1660
    %v2401 = vunpack.c.h.b16 %v1660
    %v2402 = vunpack.c.l.b16 %v1661
    %v2403 = vunpack.c.h.b16 %v1661
    %v2404 = vunpack.c.l.b16 %v1662
    %v2405 = vunpack.c.h.b16 %v1662
    %v2406 = vunpack.c.l.b16 %v1663
    %v2407 = vunpack.c.h.b16 %v1663
    %v2408 = vunpack.c.l.b16 %v1664
    %v2409 = vunpack.c.h.b16 %v1664
    %v2410 = vunpack.c.l.b16 %v1665
    %v2411 = vunpack.c.h.b16 %v1665
    %v2412 = vunpack.c.l.b16 %v1666
    %v2413 = vunpack.c.h.b16 %v1666
    %v2414 = vunpack.c.l.b16 %v1667
    %v2415 = vunpack.c.h.b16 %v1667
    %v2416 = vunpack.c.l.b16 %v1668
    %v2417 = vunpack.c.h.b16 %v1668
    %v2418 = vunpack.c.l.b16 %v1669
    %v2419 = vunpack.c.h.b16 %v1669
    %v2420 = vunpack.c.l.b16 %v1670
    %v2421 = vunpack.c.h.b16 %v1670
    %v2422 = vunpack.c.l.b16 %v1671
    %v2423 = vunpack.c.h.b16 %v1671
    %v2424 = vunpack.c.l.b16 %v1672
    %v2425 = vunpack.c.h.b16 %v1672
    %v2426 = vunpack.c.l.b16 %v1673
    %v2427 = vunpack.c.h.b16 %v1673
    %v2428 = vunpack.c.l.b16 %v1674
    %v2429 = vunpack.c.h.b16 %v1674
    %v2430 = vunpack.c.l.b16 %v1675
    %v2431 = vunpack.c.h.b16 %v1675
    %v2432 = vunpack.c.l.b16 %v1676
    %v2433 = vunpack.c.h.b16 %v1676
    %v2434 = vunpack.c.l.b16 %v1677
    %v2435 = vunpack.c.h.b16 %v1677
    %v2436 = vunpack.c.l.b16 %v1678
    %v2437 = vunpack.c.h.b16 %v1678
    %v2438 = vunpack.c.l.b16 %v1679
    %v2439 = vunpack.c.h.b16 %v1679
    %v2440 = vunpack.c.l.b16 %v1680
    %v2441 = vunpack.c.h.b16 %v1680
    %v2442 = vunpack.c.l.b16 %v1681
    %v2443 = vunpack.c.h.b16 %v1681
    %v2444 = vunpack.c.l.b16 %v1682
    %v2445 = vunpack.c.h.b16 %v1682
    %v2446 = vunpack.c.l.b16 %v1683
    %v2447 = vunpack.c.h.b16 %v1683
    %v2448 = vunpack.c.l.b16 %v1684
    %v2449 = vunpack.c.h.b16 %v1684
    %v2450 = vunpack.c.l.b16 %v1685
    %v2451 = vunpack.c.h.b16 %v1685
    %v2452 = vunpack.c.l.b16 %v1686
    %v2453 = vunpack.c.h.b16 %v1686
    %v2454 = vunpack.c.l.b16 %v1687
    %v2455 = vunpack.c.h.b16 %v1687
    %v2456 = vunpack.c.l.b16 %v1688
    %v2457 = vunpack.c.h.b16 %v1688
    %v2458 = vunpack.c.l.b16 %v1689
    %v2459 = vunpack.c.h.b16 %v1689
    %v2460 = vunpack.c.l.b16 %v1690
    %v2461 = vunpack.c.h.b16 %v1690
    %v2462 = vunpack.c.l.b16 %v1691
    %v2463 = vunpack.c.h.b16 %v1691
    %v2464 = vunpack.c.l.b16 %v1692
    %v2465 = vunpack.c.h.b16 %v1692
    %v2466 = vunpack.c.l.b16 %v1693
    %v2467 = vunpack.c.h.b16 %v1693
    %v2468 = vunpack.c.l.b16 %v1694
    %v2469 = vunpack.c.h.b16 %v1694
    %v2470 = vunpack.c.l.b16 %v1695
    %v2471 = vunpack.c.h.b16 %v1695
    %v2472 = vunpack.c.l.b16 %v1696
    %v2473 = vunpack.c.h.b16 %v1696
    %v2474 = vunpack.c.l.b16 %v1697
    %v2475 = vunpack.c.h.b16 %v1697
    %v2476 = vpack.c.b16 %v1968, %v1964
    %v2477 = vpack.c.b16 %v1969, %v1965
    %v2478 = vpack.c.b16 %v1970, %v1966
    %v2479 = vpack.c.b16 %v1971, %v1967
    %v2480 = vpack.c.b16 %v1976, %v1972
    %v2481 = vpack.c.b16 %v1977, %v1973
    %v2482 = vpack.c.b16 %v1978, %v1974
    %v2483 = vpack.c.b16 %v1979, %v1975
    %v2484 = vpack.c.b16 %v1984, %v1980
    %v2485 = vpack.c.b16 %v1985, %v1981
    %v2486 = vpack.c.b16 %v1986, %v1982
    %v2487 = vpack.c.b16 %v1987, %v1983
    %v2488 = vpack.c.b16 %v1992, %v1988
    %v2489 = vpack.c.b16 %v1993, %v1989
    %v2490 = vpack.c.b16 %v1994, %v1990
    %v2491 = vpack.c.b16 %v1995, %v1991
    %v2492 = vpack.c.b16 %v2000, %v1996
    %v2493 = vpack.c.b16 %v2001, %v1997
    %v2494 = vpack.c.b16 %v2002, %v1998
    %v2495 = vpack.c.b16 %v2003, %v1999
    %v2496 = vpack.c.b16 %v2008, %v2004
    %v2497 = vpack.c.b16 %v2009, %v2005
    %v2498 = vpack.c.b16 %v2010, %v2006
    %v2499 = vpack.c.b16 %v2011, %v2007
    %v2500 = vpack.c.b16 %v2016, %v2012
    %v2501 = vpack.c.b16 %v2017, %v2013
    %v2502 = vpack.c.b16 %v2018, %v2014
    %v2503 = vpack.c.b16 %v2019, %v2015
    %v2504 = vpack.c.b16 %v2024, %v2020
    %v2505 = vpack.c.b16 %v2025, %v2021
    %v2506 = vpack.c.b16 %v2026, %v2022
    %v2507 = vpack.c.b16 %v2027, %v2023
    %v2508 = vpack.c.b16 %v2032, %v2028
    %v2509 = vpack.c.b16 %v2033, %v2029
    %v2510 = vpack.c.b16 %v2034, %v2030
    %v2511 = vpack.c.b16 %v2035, %v2031
    %v2512 = vpack.c.b16 %v2040, %v2036
    %v2513 = vpack.c.b16 %v2041, %v2037
    %v2514 = vpack.c.b16 %v2042, %v2038
    %v2515 = vpack.c.b16 %v2043, %v2039
    %v2516 = vpack.c.b16 %v2048, %v2044
    %v2517 = vpack.c.b16 %v2049, %v2045
    %v2518 = vpack.c.b16 %v2050, %v2046
    %v2519 = vpack.c.b16 %v2051, %v2047
    %v2520 = vpack.c.b16 %v2056, %v2052
    %v2521 = vpack.c.b16 %v2057, %v2053
    %v2522 = vpack.c.b16 %v2058, %v2054
    %v2523 = vpack.c.b16 %v2059, %v2055
    %v2524 = vpack.c.b16 %v2064, %v2060
    %v2525 = vpack.c.b16 %v2065, %v2061
    %v2526 = vpack.c.b16 %v2066, %v2062
    %v2527 = vpack.c.b16 %v2067, %v2063
    %v2528 = vpack.c.b16 %v2072, %v2068
    %v2529 = vpack.c.b16 %v2073, %v2069
    %v2530 = vpack.c.b16 %v2074, %v2070
    %v2531 = vpack.c.b16 %v2075, %v2071
    %v2532 = vpack.c.b16 %v2080, %v2076
    %v2533 = vpack.c.b16 %v2081, %v2077
    %v2534 = vpack.c.b16 %v2082, %v2078
    %v2535 = vpack.c.b16 %v2083, %v2079
    %v2536 = vpack.c.b16 %v2088, %v2084
    %v2537 = vpack.c.b16 %v2089, %v2085
    %v2538 = vpack.c.b16 %v2090, %v2086
    %v2539 = vpack.c.b16 %v2091, %v2087
    %v2540 = vpack.c.b16 %v2096, %v2092
    %v2541 = vpack.c.b16 %v2097, %v2093
    %v2542 = vpack.c.b16 %v2098, %v2094
    %v2543 = vpack.c.b16 %v2099, %v2095
    %v2544 = vpack.c.b16 %v2104, %v2100
    %v2545 = vpack.c.b16 %v2105, %v2101
    %v2546 = vpack.c.b16 %v2106, %v2102
    %v2547 = vpack.c.b16 %v2107, %v2103
    %v2548 = vpack.c.b16 %v2112, %v2108
    %v2549 = vpack.c.b16 %v2113, %v2109
    %v2550 = vpack.c.b16 %v2114, %v2110
    %v2551 = vpack.c.b16 %v2115, %v2111
    %v2552 = vpack.c.b16 %v2120, %v2116
    %v2553 = vpack.c.b16 %v2121, %v2117
    %v2554 = vpack.c.b16 %v2122, %v2118
    %v2555 = vpack.c.b16 %v2123, %v2119
    %v2556 = vpack.c.b16 %v2128, %v2124
    %v2557 = vpack.c.b16 %v2129, %v2125
    %v2558 = vpack.c.b16 %v2130, %v2126
    %v2559 = vpack.c.b16 %v2131, %v2127
    %v2560 = vpack.c.b16 %v2136, %v2132
    %v2561 = vpack.c.b16 %v2137, %v2133
    %v2562 = vpack.c.b16 %v2138, %v2134
    %v2563 = vpack.c.b16 %v2139, %v2135
    %v2564 = vpack.c.b16 %v2144, %v2140
    %v2565 = vpack.c.b16 %v2145, %v2141
    %v2566 = vpack.c.b16 %v2146, %v2142
    %v2567 = vpack.c.b16 %v2147, %v2143
    %v2568 = vpack.c.b16 %v2152, %v2148
    %v2569 = vpack.c.b16 %v2153, %v2149
    %v2570 = vpack.c.b16 %v2154, %v2150
    %v2571 = vpack.c.b16 %v2155, %v2151
    %v2572 = vpack.c.b16 %v2160, %v2156
    %v2573 = vpack.c.b16 %v2161, %v2157
    %v2574 = vpack.c.b16 %v2162, %v2158
    %v2575 = vpack.c.b16 %v2163, %v2159
    %v2576 = vpack.c.b16 %v2168, %v2164
    %v2577 = vpack.c.b16 %v2169, %v2165
    %v2578 = vpack.c.b16 %v2170, %v2166
    %v2579 = vpack.c.b16 %v2171, %v2167
    %v2580 = vpack.c.b16 %v2176, %v2172
    %v2581 = vpack.c.b16 %v2177, %v2173
    %v2582 = vpack.c.b16 %v2178, %v2174
    %v2583 = vpack.c.b16 %v2179, %v2175
    %v2584 = vpack.c.b16 %v2184, %v2180
    %v2585 = vpack.c.b16 %v2185, %v2181
    %v2586 = vpack.c.b16 %v2186, %v2182
    %v2587 = vpack.c.b16 %v2187, %v2183
    %v2588 = vpack.c.b16 %v2192, %v2188
    %v2589 = vpack.c.b16 %v2193, %v2189
    %v2590 = vpack.c.b16 %v2194, %v2190
    %v2591 = vpack.c.b16 %v2195, %v2191
    %v2592 = vpack.c.b16 %v2200, %v2196
    %v2593 = vpack.c.b16 %v2201, %v2197
    %v2594 = vpack.c.b16 %v2202, %v2198
    %v2595 = vpack.c.b16 %v2203, %v2199
    %v2596 = vpack.c.b16 %v2208, %v2204
    %v2597 = vpack.c.b16 %v2209, %v2205
    %v2598 = vpack.c.b16 %v2210, %v2206
    %v2599 = vpack.c.b16 %v2211, %v2207
    %v2600 = vpack.c.b16 %v2216, %v2212
    %v2601 = vpack.c.b16 %v2217, %v2213
    %v2602 = vpack.c.b16 %v2218, %v2214
    %v2603 = vpack.c.b16 %v2219, %v2215
    %v2604 = vpack.c.b16 %v2224, %v2220
    %v2605 = vpack.c.b16 %v2225, %v2221
    %v2606 = vpack.c.b16 %v2226, %v2222
    %v2607 = vpack.c.b16 %v2227, %v2223
    %v2608 = vpack.c.b16 %v2232, %v2228
    %v2609 = vpack.c.b16 %v2233, %v2229
    %v2610 = vpack.c.b16 %v2234, %v2230
    %v2611 = vpack.c.b16 %v2235, %v2231
    %v2612 = vpack.c.b16 %v2240, %v2236
    %v2613 = vpack.c.b16 %v2241, %v2237
    %v2614 = vpack.c.b16 %v2242, %v2238
    %v2615 = vpack.c.b16 %v2243, %v2239
    %v2616 = vpack.c.b16 %v2248, %v2244
    %v2617 = vpack.c.b16 %v2249, %v2245
    %v2618 = vpack.c.b16 %v2250, %v2246
    %v2619 = vpack.c.b16 %v2251, %v2247
    %v2620 = vpack.c.b16 %v2256, %v2252
    %v2621 = vpack.c.b16 %v2257, %v2253
    %v2622 = vpack.c.b16 %v2258, %v2254
    %v2623 = vpack.c.b16 %v2259, %v2255
    %v2624 = vpack.c.b16 %v2264, %v2260
    %v2625 = vpack.c.b16 %v2265, %v2261
    %v2626 = vpack.c.b16 %v2266, %v2262
    %v2627 = vpack.c.b16 %v2267, %v2263
    %v2628 = vpack.c.b16 %v2272, %v2268
    %v2629 = vpack.c.b16 %v2273, %v2269
    %v2630 = vpack.c.b16 %v2274, %v2270
    %v2631 = vpack.c.b16 %v2275, %v2271
    %v2632 = vpack.c.b16 %v2280, %v2276
    %v2633 = vpack.c.b16 %v2281, %v2277
    %v2634 = vpack.c.b16 %v2282, %v2278
    %v2635 = vpack.c.b16 %v2283, %v2279
    %v2636 = vpack.c.b16 %v2288, %v2284
    %v2637 = vpack.c.b16 %v2289, %v2285
    %v2638 = vpack.c.b16 %v2290, %v2286
    %v2639 = vpack.c.b16 %v2291, %v2287
    %v2640 = vpack.c.b16 %v2296, %v2292
    %v2641 = vpack.c.b16 %v2297, %v2293
    %v2642 = vpack.c.b16 %v2298, %v2294
    %v2643 = vpack.c.b16 %v2299, %v2295
    %v2644 = vpack.c.b16 %v2304, %v2300
    %v2645 = vpack.c.b16 %v2305, %v2301
    %v2646 = vpack.c.b16 %v2306, %v2302
    %v2647 = vpack.c.b16 %v2307, %v2303
    %v2648 = vpack.c.b16 %v2312, %v2308
    %v2649 = vpack.c.b16 %v2313, %v2309
    %v2650 = vpack.c.b16 %v2314, %v2310
    %v2651 = vpack.c.b16 %v2315, %v2311
    %v2652 = vpack.c.b16 %v2320, %v2316
    %v2653 = vpack.c.b16 %v2321, %v2317
    %v2654 = vpack.c.b16 %v2322, %v2318
    %v2655 = vpack.c.b16 %v2323, %v2319
    %v2656 = vpack.c.b16 %v2328, %v2324
    %v2657 = vpack.c.b16 %v2329, %v2325
    %v2658 = vpack.c.b16 %v2330, %v2326
    %v2659 = vpack.c.b16 %v2331, %v2327
    %v2660 = vpack.c.b16 %v2336, %v2332
    %v2661 = vpack.c.b16 %v2337, %v2333
    %v2662 = vpack.c.b16 %v2338, %v2334
    %v2663 = vpack.c.b16 %v2339, %v2335
    %v2664 = vpack.c.b16 %v2344, %v2340
    %v2665 = vpack.c.b16 %v2345, %v2341
    %v2666 = vpack.c.b16 %v2346, %v2342
    %v2667 = vpack.c.b16 %v2347, %v2343
    %v2668 = vpack.c.b16 %v2352, %v2348
    %v2669 = vpack.c.b16 %v2353, %v2349
    %v2670 = vpack.c.b16 %v2354, %v2350
    %v2671 = vpack.c.b16 %v2355, %v2351
    %v2672 = vpack.c.b16 %v2360, %v2356
    %v2673 = vpack.c.b16 %v2361, %v2357
    %v2674 = vpack.c.b16 %v2362, %v2358
    %v2675 = vpack.c.b16 %v2363, %v2359
    %v2676 = vpack.c.b16 %v2368, %v2364
    %v2677 = vpack.c.b16 %v2369, %v2365
    %v2678 = vpack.c.b16 %v2370, %v2366
    %v2679 = vpack.c.b16 %v2371, %v2367
    %v2680 = vpack.c.b16 %v2376, %v2372
    %v2681 = vpack.c.b16 %v2377, %v2373
    %v2682 = vpack.c.b16 %v2378, %v2374
    %v2683 = vpack.c.b16 %v2379, %v2375
    %v2684 = vpack.c.b16 %v2384, %v2380
    %v2685 = vpack.c.b16 %v2385, %v2381
    %v2686 = vpack.c.b16 %v2386, %v2382
    %v2687 = vpack.c.b16 %v2387, %v2383
    %v2688 = vpack.c.b16 %v2392, %v2388
    %v2689 = vpack.c.b16 %v2393, %v2389
    %v2690 = vpack.c.b16 %v2394, %v2390
    %v2691 = vpack.c.b16 %v2395, %v2391
    %v2692 = vpack.c.b16 %v2400, %v2396
    %v2693 = vpack.c.b16 %v2401, %v2397
    %v2694 = vpack.c.b16 %v2402, %v2398
    %v2695 = vpack.c.b16 %v2403, %v2399
    %v2696 = vpack.c.b16 %v2408, %v2404
    %v2697 = vpack.c.b16 %v2409, %v2405
    %v2698 = vpack.c.b16 %v2410, %v2406
    %v2699 = vpack.c.b16 %v2411, %v2407
    %v2700 = vpack.c.b16 %v2416, %v2412
    %v2701 = vpack.c.b16 %v2417, %v2413
    %v2702 = vpack.c.b16 %v2418, %v2414
    %v2703 = vpack.c.b16 %v2419, %v2415
    %v2704 = vpack.c.b16 %v2424, %v2420
    %v2705 = vpack.c.b16 %v2425, %v2421
    %v2706 = vpack.c.b16 %v2426, %v2422
    %v2707 = vpack.c.b16 %v2427, %v2423
    %v2708 = vpack.c.b16 %v2432, %v2428
    %v2709 = vpack.c.b16 %v2433, %v2429
    %v2710 = vpack.c.b16 %v2434, %v2430
    %v2711 = vpack.c.b16 %v2435, %v2431
    %v2712 = vpack.c.b16 %v2440, %v2436
    %v2713 = vpack.c.b16 %v2441, %v2437
    %v2714 = vpack.c.b16 %v2442, %v2438
    %v2715 = vpack.c.b16 %v2443, %v2439
    %v2716 = vpack.c.b16 %v2448, %v2444
    %v2717 = vpack.c.b16 %v2449, %v2445
    %v2718 = vpack.c.b16 %v2450, %v2446
    %v2719 = vpack.c.b16 %v2451, %v2447
    %v2720 = vpack.c.b16 %v2456, %v2452
    %v2721 = vpack.c.b16 %v2457, %v2453
    %v2722 = vpack.c.b16 %v2458, %v2454
    %v2723 = vpack.c.b16 %v2459, %v2455
    %v2724 = vpack.c.b16 %v2464, %v2460
    %v2725 = vpack.c.b16 %v2465, %v2461
    %v2726 = vpack.c.b16 %v2466, %v2462
    %v2727 = vpack.c.b16 %v2467, %v2463
    %v2728 = vpack.c.b16 %v2472, %v2468
    %v2729 = vpack.c.b16 %v2473, %v2469
    %v2730 = vpack.c.b16 %v2474, %v2470
    %v2731 = vpack.c.b16 %v2475, %v2471
    %2988 = vmatpush.bf16.msra.mxu0 %v2504
    %2989 = vmatpush.bf16.msra.mxu0 %v2500
    %2990 = vmatpush.bf16.msra.mxu0 %v2496
    %2991 = vmatpush.bf16.msra.mxu0 %v2492
    %2992 = vmatpush.bf16.msra.mxu0 %v2488
    %2993 = vmatpush.bf16.msra.mxu0 %v2484
    %2994 = vmatpush.bf16.msra.mxu0 %v2480
    %2995 = vmatpush.bf16.msra.mxu0 %v2476
    %2996 = vmatmul.bf16.gmra.mxu0 %v1434
    %v2997 = vpop.f32.mrf.mxu0
    %v2998 = vadd.f32 %v1700, %v2997
    %v2999 = vpop.f32.mrf.mxu0
    %3000 = vdwg.mxu0
    %3001 = vmatpush.bf16.msra.mxu0 %v2536
    %3002 = vmatpush.bf16.msra.mxu0 %v2532
    %3003 = vmatpush.bf16.msra.mxu0 %v2528
    %3004 = vmatpush.bf16.msra.mxu0 %v2524
    %3005 = vmatpush.bf16.msra.mxu0 %v2520
    %3006 = vmatpush.bf16.msra.mxu0 %v2516
    %3007 = vmatpush.bf16.msra.mxu0 %v2512
    %3008 = vmatpush.bf16.msra.mxu0 %v2508
    %3009 = vmatmul.bf16.gmra.mxu0 %v1435
    %v3010 = vpop.f32.mrf.mxu0
    %v3011 = vadd.f32 %v2998, %v3010
    %v3012 = vpop.f32.mrf.mxu0
    %3013 = vdwg.mxu0
    %3014 = vmatpush.bf16.msra.mxu0 %v2568
    %3015 = vmatpush.bf16.msra.mxu0 %v2564
    %3016 = vmatpush.bf16.msra.mxu0 %v2560
    %3017 = vmatpush.bf16.msra.mxu0 %v2556
    %3018 = vmatpush.bf16.msra.mxu0 %v2552
    %3019 = vmatpush.bf16.msra.mxu0 %v2548
    %3020 = vmatpush.bf16.msra.mxu0 %v2544
    %3021 = vmatpush.bf16.msra.mxu0 %v2540
    %3022 = vmatmul.bf16.gmra.mxu0 %v1436
    %v3023 = vpop.f32.mrf.mxu0
    %v3024 = vadd.f32 %v3011, %v3023
    %v3025 = vpop.f32.mrf.mxu0
    %3026 = vdwg.mxu0
    %3027 = vmatpush.bf16.msra.mxu0 %v2600
    %3028 = vmatpush.bf16.msra.mxu0 %v2596
    %3029 = vmatpush.bf16.msra.mxu0 %v2592
    %3030 = vmatpush.bf16.msra.mxu0 %v2588
    %3031 = vmatpush.bf16.msra.mxu0 %v2584
    %3032 = vmatpush.bf16.msra.mxu0 %v2580
    %3033 = vmatpush.bf16.msra.mxu0 %v2576
    %3034 = vmatpush.bf16.msra.mxu0 %v2572
    %3035 = vmatmul.bf16.gmra.mxu0 %v1437
    %v3036 = vpop.f32.mrf.mxu0
    %v3037 = vadd.f32 %v3024, %v3036
    %v3038 = vpop.f32.mrf.mxu0
    %3039 = vdwg.mxu0
    %3040 = vmatpush.bf16.msra.mxu0 %v2632
    %3041 = vmatpush.bf16.msra.mxu0 %v2628
    %3042 = vmatpush.bf16.msra.mxu0 %v2624
    %3043 = vmatpush.bf16.msra.mxu0 %v2620
    %3044 = vmatpush.bf16.msra.mxu0 %v2616
    %3045 = vmatpush.bf16.msra.mxu0 %v2612
    %3046 = vmatpush.bf16.msra.mxu0 %v2608
    %3047 = vmatpush.bf16.msra.mxu0 %v2604
    %3048 = vmatmul.bf16.gmra.mxu0 %v1438
    %v3049 = vpop.f32.mrf.mxu0
    %v3050 = vadd.f32 %v3037, %v3049
    %v3051 = vpop.f32.mrf.mxu0
    %3052 = vdwg.mxu0
    %3053 = vmatpush.bf16.msra.mxu0 %v2664
    %3054 = vmatpush.bf16.msra.mxu0 %v2660
    %3055 = vmatpush.bf16.msra.mxu0 %v2656
    %3056 = vmatpush.bf16.msra.mxu0 %v2652
    %3057 = vmatpush.bf16.msra.mxu0 %v2648
    %3058 = vmatpush.bf16.msra.mxu0 %v2644
    %3059 = vmatpush.bf16.msra.mxu0 %v2640
    %3060 = vmatpush.bf16.msra.mxu0 %v2636
    %3061 = vmatmul.bf16.gmra.mxu0 %v1439
    %v3062 = vpop.f32.mrf.mxu0
    %v3063 = vadd.f32 %v3050, %v3062
    %v3064 = vpop.f32.mrf.mxu0
    %3065 = vdwg.mxu0
    %3066 = vmatpush.bf16.msra.mxu0 %v2696
    %3067 = vmatpush.bf16.msra.mxu0 %v2692
    %3068 = vmatpush.bf16.msra.mxu0 %v2688
    %3069 = vmatpush.bf16.msra.mxu0 %v2684
    %3070 = vmatpush.bf16.msra.mxu0 %v2680
    %3071 = vmatpush.bf16.msra.mxu0 %v2676
    %3072 = vmatpush.bf16.msra.mxu0 %v2672
    %3073 = vmatpush.bf16.msra.mxu0 %v2668
    %3074 = vmatmul.bf16.gmra.mxu0 %v1440
    %v3075 = vpop.f32.mrf.mxu0
    %v3076 = vadd.f32 %v3063, %v3075
    %v3077 = vpop.f32.mrf.mxu0
    %3078 = vdwg.mxu0
    %3079 = vmatpush.bf16.msra.mxu0 %v2728
    %3080 = vmatpush.bf16.msra.mxu0 %v2724
    %3081 = vmatpush.bf16.msra.mxu0 %v2720
    %3082 = vmatpush.bf16.msra.mxu0 %v2716
    %3083 = vmatpush.bf16.msra.mxu0 %v2712
    %3084 = vmatpush.bf16.msra.mxu0 %v2708
    %3085 = vmatpush.bf16.msra.mxu0 %v2704
    %3086 = vmatpush.bf16.msra.mxu0 %v2700
    %3087 = vmatmul.bf16.gmra.mxu0 %v1441
    %v3088 = vpop.f32.mrf.mxu0
    %v3089 = vadd.f32 %v3076, %v3088
    %v3090 = vpop.f32.mrf.mxu0
    %3091 = vdwg.mxu0
    %3092 = vmatpush.bf16.msra.mxu0 %v2505
    %3093 = vmatpush.bf16.msra.mxu0 %v2501
    %3094 = vmatpush.bf16.msra.mxu0 %v2497
    %3095 = vmatpush.bf16.msra.mxu0 %v2493
    %3096 = vmatpush.bf16.msra.mxu0 %v2489
    %3097 = vmatpush.bf16.msra.mxu0 %v2485
    %3098 = vmatpush.bf16.msra.mxu0 %v2481
    %3099 = vmatpush.bf16.msra.mxu0 %v2477
    %3100 = vmatmul.bf16.gmra.mxu0 %v1434
    %v3101 = vpop.f32.mrf.mxu0
    %v3102 = vadd.f32 %v1701, %v3101
    %v3103 = vpop.f32.mrf.mxu0
    %3104 = vdwg.mxu0
    %3105 = vmatpush.bf16.msra.mxu0 %v2537
    %3106 = vmatpush.bf16.msra.mxu0 %v2533
    %3107 = vmatpush.bf16.msra.mxu0 %v2529
    %3108 = vmatpush.bf16.msra.mxu0 %v2525
    %3109 = vmatpush.bf16.msra.mxu0 %v2521
    %3110 = vmatpush.bf16.msra.mxu0 %v2517
    %3111 = vmatpush.bf16.msra.mxu0 %v2513
    %3112 = vmatpush.bf16.msra.mxu0 %v2509
    %3113 = vmatmul.bf16.gmra.mxu0 %v1435
    %v3114 = vpop.f32.mrf.mxu0
    %v3115 = vadd.f32 %v3102, %v3114
    %v3116 = vpop.f32.mrf.mxu0
    %3117 = vdwg.mxu0
    %3118 = vmatpush.bf16.msra.mxu0 %v2569
    %3119 = vmatpush.bf16.msra.mxu0 %v2565
    %3120 = vmatpush.bf16.msra.mxu0 %v2561
    %3121 = vmatpush.bf16.msra.mxu0 %v2557
    %3122 = vmatpush.bf16.msra.mxu0 %v2553
    %3123 = vmatpush.bf16.msra.mxu0 %v2549
    %3124 = vmatpush.bf16.msra.mxu0 %v2545
    %3125 = vmatpush.bf16.msra.mxu0 %v2541
    %3126 = vmatmul.bf16.gmra.mxu0 %v1436
    %v3127 = vpop.f32.mrf.mxu0
    %v3128 = vadd.f32 %v3115, %v3127
    %v3129 = vpop.f32.mrf.mxu0
    %3130 = vdwg.mxu0
    %3131 = vmatpush.bf16.msra.mxu0 %v2601
    %3132 = vmatpush.bf16.msra.mxu0 %v2597
    %3133 = vmatpush.bf16.msra.mxu0 %v2593
    %3134 = vmatpush.bf16.msra.mxu0 %v2589
    %3135 = vmatpush.bf16.msra.mxu0 %v2585
    %3136 = vmatpush.bf16.msra.mxu0 %v2581
    %3137 = vmatpush.bf16.msra.mxu0 %v2577
    %3138 = vmatpush.bf16.msra.mxu0 %v2573
    %3139 = vmatmul.bf16.gmra.mxu0 %v1437
    %v3140 = vpop.f32.mrf.mxu0
    %v3141 = vadd.f32 %v3128, %v3140
    %v3142 = vpop.f32.mrf.mxu0
    %3143 = vdwg.mxu0
    %3144 = vmatpush.bf16.msra.mxu0 %v2633
    %3145 = vmatpush.bf16.msra.mxu0 %v2629
    %3146 = vmatpush.bf16.msra.mxu0 %v2625
    %3147 = vmatpush.bf16.msra.mxu0 %v2621
    %3148 = vmatpush.bf16.msra.mxu0 %v2617
    %3149 = vmatpush.bf16.msra.mxu0 %v2613
    %3150 = vmatpush.bf16.msra.mxu0 %v2609
    %3151 = vmatpush.bf16.msra.mxu0 %v2605
    %3152 = vmatmul.bf16.gmra.mxu0 %v1438
    %v3153 = vpop.f32.mrf.mxu0
    %v3154 = vadd.f32 %v3141, %v3153
    %v3155 = vpop.f32.mrf.mxu0
    %3156 = vdwg.mxu0
    %3157 = vmatpush.bf16.msra.mxu0 %v2665
    %3158 = vmatpush.bf16.msra.mxu0 %v2661
    %3159 = vmatpush.bf16.msra.mxu0 %v2657
    %3160 = vmatpush.bf16.msra.mxu0 %v2653
    %3161 = vmatpush.bf16.msra.mxu0 %v2649
    %3162 = vmatpush.bf16.msra.mxu0 %v2645
    %3163 = vmatpush.bf16.msra.mxu0 %v2641
    %3164 = vmatpush.bf16.msra.mxu0 %v2637
    %3165 = vmatmul.bf16.gmra.mxu0 %v1439
    %v3166 = vpop.f32.mrf.mxu0
    %v3167 = vadd.f32 %v3154, %v3166
    %v3168 = vpop.f32.mrf.mxu0
    %3169 = vdwg.mxu0
    %3170 = vmatpush.bf16.msra.mxu0 %v2697
    %3171 = vmatpush.bf16.msra.mxu0 %v2693
    %3172 = vmatpush.bf16.msra.mxu0 %v2689
    %3173 = vmatpush.bf16.msra.mxu0 %v2685
    %3174 = vmatpush.bf16.msra.mxu0 %v2681
    %3175 = vmatpush.bf16.msra.mxu0 %v2677
    %3176 = vmatpush.bf16.msra.mxu0 %v2673
    %3177 = vmatpush.bf16.msra.mxu0 %v2669
    %3178 = vmatmul.bf16.gmra.mxu0 %v1440
    %v3179 = vpop.f32.mrf.mxu0
    %v3180 = vadd.f32 %v3167, %v3179
    %v3181 = vpop.f32.mrf.mxu0
    %3182 = vdwg.mxu0
    %3183 = vmatpush.bf16.msra.mxu0 %v2729
    %3184 = vmatpush.bf16.msra.mxu0 %v2725
    %3185 = vmatpush.bf16.msra.mxu0 %v2721
    %3186 = vmatpush.bf16.msra.mxu0 %v2717
    %3187 = vmatpush.bf16.msra.mxu0 %v2713
    %3188 = vmatpush.bf16.msra.mxu0 %v2709
    %3189 = vmatpush.bf16.msra.mxu0 %v2705
    %3190 = vmatpush.bf16.msra.mxu0 %v2701
    %3191 = vmatmul.bf16.gmra.mxu0 %v1441
    %v3192 = vpop.f32.mrf.mxu0
    %v3193 = vadd.f32 %v3180, %v3192
    %v3194 = vpop.f32.mrf.mxu0
    %3195 = vdwg.mxu0
    %3196 = vmatpush.bf16.msra.mxu0 %v2506
    %3197 = vmatpush.bf16.msra.mxu0 %v2502
    %3198 = vmatpush.bf16.msra.mxu0 %v2498
    %3199 = vmatpush.bf16.msra.mxu0 %v2494
    %3200 = vmatpush.bf16.msra.mxu0 %v2490
    %3201 = vmatpush.bf16.msra.mxu0 %v2486
    %3202 = vmatpush.bf16.msra.mxu0 %v2482
    %3203 = vmatpush.bf16.msra.mxu0 %v2478
    %3204 = vmatmul.bf16.gmra.mxu0 %v1434
    %v3205 = vpop.f32.mrf.mxu0
    %v3206 = vadd.f32 %v1702, %v3205
    %v3207 = vpop.f32.mrf.mxu0
    %3208 = vdwg.mxu0
    %3209 = vmatpush.bf16.msra.mxu0 %v2538
    %3210 = vmatpush.bf16.msra.mxu0 %v2534
    %3211 = vmatpush.bf16.msra.mxu0 %v2530
    %3212 = vmatpush.bf16.msra.mxu0 %v2526
    %3213 = vmatpush.bf16.msra.mxu0 %v2522
    %3214 = vmatpush.bf16.msra.mxu0 %v2518
    %3215 = vmatpush.bf16.msra.mxu0 %v2514
    %3216 = vmatpush.bf16.msra.mxu0 %v2510
    %3217 = vmatmul.bf16.gmra.mxu0 %v1435
    %v3218 = vpop.f32.mrf.mxu0
    %v3219 = vadd.f32 %v3206, %v3218
    %v3220 = vpop.f32.mrf.mxu0
    %3221 = vdwg.mxu0
    %3222 = vmatpush.bf16.msra.mxu0 %v2570
    %3223 = vmatpush.bf16.msra.mxu0 %v2566
    %3224 = vmatpush.bf16.msra.mxu0 %v2562
    %3225 = vmatpush.bf16.msra.mxu0 %v2558
    %3226 = vmatpush.bf16.msra.mxu0 %v2554
    %3227 = vmatpush.bf16.msra.mxu0 %v2550
    %3228 = vmatpush.bf16.msra.mxu0 %v2546
    %3229 = vmatpush.bf16.msra.mxu0 %v2542
    %3230 = vmatmul.bf16.gmra.mxu0 %v1436
    %v3231 = vpop.f32.mrf.mxu0
    %v3232 = vadd.f32 %v3219, %v3231
    %v3233 = vpop.f32.mrf.mxu0
    %3234 = vdwg.mxu0
    %3235 = vmatpush.bf16.msra.mxu0 %v2602
    %3236 = vmatpush.bf16.msra.mxu0 %v2598
    %3237 = vmatpush.bf16.msra.mxu0 %v2594
    %3238 = vmatpush.bf16.msra.mxu0 %v2590
    %3239 = vmatpush.bf16.msra.mxu0 %v2586
    %3240 = vmatpush.bf16.msra.mxu0 %v2582
    %3241 = vmatpush.bf16.msra.mxu0 %v2578
    %3242 = vmatpush.bf16.msra.mxu0 %v2574
    %3243 = vmatmul.bf16.gmra.mxu0 %v1437
    %v3244 = vpop.f32.mrf.mxu0
    %v3245 = vadd.f32 %v3232, %v3244
    %v3246 = vpop.f32.mrf.mxu0
    %3247 = vdwg.mxu0
    %3248 = vmatpush.bf16.msra.mxu0 %v2634
    %3249 = vmatpush.bf16.msra.mxu0 %v2630
    %3250 = vmatpush.bf16.msra.mxu0 %v2626
    %3251 = vmatpush.bf16.msra.mxu0 %v2622
    %3252 = vmatpush.bf16.msra.mxu0 %v2618
    %3253 = vmatpush.bf16.msra.mxu0 %v2614
    %3254 = vmatpush.bf16.msra.mxu0 %v2610
    %3255 = vmatpush.bf16.msra.mxu0 %v2606
    %3256 = vmatmul.bf16.gmra.mxu0 %v1438
    %v3257 = vpop.f32.mrf.mxu0
    %v3258 = vadd.f32 %v3245, %v3257
    %v3259 = vpop.f32.mrf.mxu0
    %3260 = vdwg.mxu0
    %3261 = vmatpush.bf16.msra.mxu0 %v2666
    %3262 = vmatpush.bf16.msra.mxu0 %v2662
    %3263 = vmatpush.bf16.msra.mxu0 %v2658
    %3264 = vmatpush.bf16.msra.mxu0 %v2654
    %3265 = vmatpush.bf16.msra.mxu0 %v2650
    %3266 = vmatpush.bf16.msra.mxu0 %v2646
    %3267 = vmatpush.bf16.msra.mxu0 %v2642
    %3268 = vmatpush.bf16.msra.mxu0 %v2638
    %3269 = vmatmul.bf16.gmra.mxu0 %v1439
    %v3270 = vpop.f32.mrf.mxu0
    %v3271 = vadd.f32 %v3258, %v3270
    %v3272 = vpop.f32.mrf.mxu0
    %3273 = vdwg.mxu0
    %3274 = vmatpush.bf16.msra.mxu0 %v2698
    %3275 = vmatpush.bf16.msra.mxu0 %v2694
    %3276 = vmatpush.bf16.msra.mxu0 %v2690
    %3277 = vmatpush.bf16.msra.mxu0 %v2686
    %3278 = vmatpush.bf16.msra.mxu0 %v2682
    %3279 = vmatpush.bf16.msra.mxu0 %v2678
    %3280 = vmatpush.bf16.msra.mxu0 %v2674
    %3281 = vmatpush.bf16.msra.mxu0 %v2670
    %3282 = vmatmul.bf16.gmra.mxu0 %v1440
    %v3283 = vpop.f32.mrf.mxu0
    %v3284 = vadd.f32 %v3271, %v3283
    %v3285 = vpop.f32.mrf.mxu0
    %3286 = vdwg.mxu0
    %3287 = vmatpush.bf16.msra.mxu0 %v2730
    %3288 = vmatpush.bf16.msra.mxu0 %v2726
    %3289 = vmatpush.bf16.msra.mxu0 %v2722
    %3290 = vmatpush.bf16.msra.mxu0 %v2718
    %3291 = vmatpush.bf16.msra.mxu0 %v2714
    %3292 = vmatpush.bf16.msra.mxu0 %v2710
    %3293 = vmatpush.bf16.msra.mxu0 %v2706
    %3294 = vmatpush.bf16.msra.mxu0 %v2702
    %3295 = vmatmul.bf16.gmra.mxu0 %v1441
    %v3296 = vpop.f32.mrf.mxu0
    %v3297 = vadd.f32 %v3284, %v3296
    %v3298 = vpop.f32.mrf.mxu0
    %3299 = vdwg.mxu0
    %3300 = vmatpush.bf16.msra.mxu0 %v2507
    %3301 = vmatpush.bf16.msra.mxu0 %v2503
    %3302 = vmatpush.bf16.msra.mxu0 %v2499
    %3303 = vmatpush.bf16.msra.mxu0 %v2495
    %3304 = vmatpush.bf16.msra.mxu0 %v2491
    %3305 = vmatpush.bf16.msra.mxu0 %v2487
    %3306 = vmatpush.bf16.msra.mxu0 %v2483
    %3307 = vmatpush.bf16.msra.mxu0 %v2479
    %3308 = vmatmul.bf16.gmra.mxu0 %v1434
    %v3309 = vpop.f32.mrf.mxu0
    %v3310 = vadd.f32 %v1703, %v3309
    %v3311 = vpop.f32.mrf.mxu0
    %3312 = vdwg.mxu0
    %3313 = vmatpush.bf16.msra.mxu0 %v2539
    %3314 = vmatpush.bf16.msra.mxu0 %v2535
    %3315 = vmatpush.bf16.msra.mxu0 %v2531
    %3316 = vmatpush.bf16.msra.mxu0 %v2527
    %3317 = vmatpush.bf16.msra.mxu0 %v2523
    %3318 = vmatpush.bf16.msra.mxu0 %v2519
    %3319 = vmatpush.bf16.msra.mxu0 %v2515
    %3320 = vmatpush.bf16.msra.mxu0 %v2511
    %3321 = vmatmul.bf16.gmra.mxu0 %v1435
    %v3322 = vpop.f32.mrf.mxu0
    %v3323 = vadd.f32 %v3310, %v3322
    %v3324 = vpop.f32.mrf.mxu0
    %3325 = vdwg.mxu0
    %3326 = vmatpush.bf16.msra.mxu0 %v2571
    %3327 = vmatpush.bf16.msra.mxu0 %v2567
    %3328 = vmatpush.bf16.msra.mxu0 %v2563
    %3329 = vmatpush.bf16.msra.mxu0 %v2559
    %3330 = vmatpush.bf16.msra.mxu0 %v2555
    %3331 = vmatpush.bf16.msra.mxu0 %v2551
    %3332 = vmatpush.bf16.msra.mxu0 %v2547
    %3333 = vmatpush.bf16.msra.mxu0 %v2543
    %3334 = vmatmul.bf16.gmra.mxu0 %v1436
    %v3335 = vpop.f32.mrf.mxu0
    %v3336 = vadd.f32 %v3323, %v3335
    %v3337 = vpop.f32.mrf.mxu0
    %3338 = vdwg.mxu0
    %3339 = vmatpush.bf16.msra.mxu0 %v2603
    %3340 = vmatpush.bf16.msra.mxu0 %v2599
    %3341 = vmatpush.bf16.msra.mxu0 %v2595
    %3342 = vmatpush.bf16.msra.mxu0 %v2591
    %3343 = vmatpush.bf16.msra.mxu0 %v2587
    %3344 = vmatpush.bf16.msra.mxu0 %v2583
    %3345 = vmatpush.bf16.msra.mxu0 %v2579
    %3346 = vmatpush.bf16.msra.mxu0 %v2575
    %3347 = vmatmul.bf16.gmra.mxu0 %v1437
    %v3348 = vpop.f32.mrf.mxu0
    %v3349 = vadd.f32 %v3336, %v3348
    %v3350 = vpop.f32.mrf.mxu0
    %3351 = vdwg.mxu0
    %3352 = vmatpush.bf16.msra.mxu0 %v2635
    %3353 = vmatpush.bf16.msra.mxu0 %v2631
    %3354 = vmatpush.bf16.msra.mxu0 %v2627
    %3355 = vmatpush.bf16.msra.mxu0 %v2623
    %3356 = vmatpush.bf16.msra.mxu0 %v2619
    %3357 = vmatpush.bf16.msra.mxu0 %v2615
    %3358 = vmatpush.bf16.msra.mxu0 %v2611
    %3359 = vmatpush.bf16.msra.mxu0 %v2607
    %3360 = vmatmul.bf16.gmra.mxu0 %v1438
    %v3361 = vpop.f32.mrf.mxu0
    %v3362 = vadd.f32 %v3349, %v3361
    %v3363 = vpop.f32.mrf.mxu0
    %3364 = vdwg.mxu0
    %3365 = vmatpush.bf16.msra.mxu0 %v2667
    %3366 = vmatpush.bf16.msra.mxu0 %v2663
    %3367 = vmatpush.bf16.msra.mxu0 %v2659
    %3368 = vmatpush.bf16.msra.mxu0 %v2655
    %3369 = vmatpush.bf16.msra.mxu0 %v2651
    %3370 = vmatpush.bf16.msra.mxu0 %v2647
    %3371 = vmatpush.bf16.msra.mxu0 %v2643
    %3372 = vmatpush.bf16.msra.mxu0 %v2639
    %3373 = vmatmul.bf16.gmra.mxu0 %v1439
    %v3374 = vpop.f32.mrf.mxu0
    %v3375 = vadd.f32 %v3362, %v3374
    %v3376 = vpop.f32.mrf.mxu0
    %3377 = vdwg.mxu0
    %3378 = vmatpush.bf16.msra.mxu0 %v2699
    %3379 = vmatpush.bf16.msra.mxu0 %v2695
    %3380 = vmatpush.bf16.msra.mxu0 %v2691
    %3381 = vmatpush.bf16.msra.mxu0 %v2687
    %3382 = vmatpush.bf16.msra.mxu0 %v2683
    %3383 = vmatpush.bf16.msra.mxu0 %v2679
    %3384 = vmatpush.bf16.msra.mxu0 %v2675
    %3385 = vmatpush.bf16.msra.mxu0 %v2671
    %3386 = vmatmul.bf16.gmra.mxu0 %v1440
    %v3387 = vpop.f32.mrf.mxu0
    %v3388 = vadd.f32 %v3375, %v3387
    %v3389 = vpop.f32.mrf.mxu0
    %3390 = vdwg.mxu0
    %3391 = vmatpush.bf16.msra.mxu0 %v2731
    %3392 = vmatpush.bf16.msra.mxu0 %v2727
    %3393 = vmatpush.bf16.msra.mxu0 %v2723
    %3394 = vmatpush.bf16.msra.mxu0 %v2719
    %3395 = vmatpush.bf16.msra.mxu0 %v2715
    %3396 = vmatpush.bf16.msra.mxu0 %v2711
    %3397 = vmatpush.bf16.msra.mxu0 %v2707
    %3398 = vmatpush.bf16.msra.mxu0 %v2703
    %3399 = vmatmul.bf16.gmra.mxu0 %v1441
    %v3400 = vpop.f32.mrf.mxu0
    %v3401 = vadd.f32 %v3388, %v3400
    %v3402 = vpop.f32.mrf.mxu0
    %3403 = vdwg.mxu0
    %v3404 = vmax.f32 %v3089, 0.0
    %v3405 = vmax.f32 %v3193, 0.0
    %v3406 = vmax.f32 %v3297, 0.0
    %v3407 = vmax.f32 %v3401, 0.0
    %v3408 = vpack.c.bf16 %v3404, %v3404
    %v3409 = vpack.c.bf16 %v3405, %v3405
    %v3410 = vpack.c.bf16 %v3406, %v3406
    %v3411 = vpack.c.bf16 %v3407, %v3407
    %v3412 = vld [vmem:[%s7] sm:$0xf]
    %v3413 = vld [vmem:[%s7 + $0x4] sm:$0xf]
    %v3414 = vld [vmem:[%s7 + $0x8] sm:$0xf]
    %v3415 = vld [vmem:[%s7 + $0xc] sm:$0xf]
    %v3416 = vld [vmem:[%s7 + $0x10] sm:$0xf]
    %v3417 = vld [vmem:[%s7 + $0x14] sm:$0xf]
    %v3418 = vld [vmem:[%s7 + $0x18] sm:$0xf]
    %v3419 = vld [vmem:[%s7 + $0x1c] sm:$0xf]
    %v3420 = vld [vmem:[%s7 + $0x20] sm:$0xf]
    %v3421 = vld [vmem:[%s7 + $0x24] sm:$0xf]
    %v3422 = vld [vmem:[%s7 + $0x28] sm:$0xf]
    %v3423 = vld [vmem:[%s7 + $0x2c] sm:$0xf]
    %v3424 = vld [vmem:[%s7 + $0x30] sm:$0xf]
    %v3425 = vld [vmem:[%s7 + $0x34] sm:$0xf]
    %v3426 = vld [vmem:[%s7 + $0x38] sm:$0xf]
    %v3427 = vld [vmem:[%s7 + $0x3c] sm:$0xf]
    %v3428 = vld [vmem:[%s7 + $0x40] sm:$0xf]
    %v3429 = vld [vmem:[%s7 + $0x44] sm:$0xf]
    %v3430 = vld [vmem:[%s7 + $0x48] sm:$0xf]
    %v3431 = vld [vmem:[%s7 + $0x4c] sm:$0xf]
    %v3432 = vld [vmem:[%s7 + $0x50] sm:$0xf]
    %v3433 = vld [vmem:[%s7 + $0x54] sm:$0xf]
    %v3434 = vld [vmem:[%s7 + $0x58] sm:$0xf]
    %v3435 = vld [vmem:[%s7 + $0x5c] sm:$0xf]
    %v3436 = vld [vmem:[%s7 + $0x60] sm:$0xf]
    %v3437 = vld [vmem:[%s7 + $0x64] sm:$0xf]
    %v3438 = vld [vmem:[%s7 + $0x68] sm:$0xf]
    %v3439 = vld [vmem:[%s7 + $0x6c] sm:$0xf]
    %v3440 = vld [vmem:[%s7 + $0x70] sm:$0xf]
    %v3441 = vld [vmem:[%s7 + $0x74] sm:$0xf]
    %v3442 = vld [vmem:[%s7 + $0x78] sm:$0xf]
    %v3443 = vld [vmem:[%s7 + $0x7c] sm:$0xf]
    %v3444 = vld [vmem:[%s7 + $0x80] sm:$0xf]
    %v3445 = vld [vmem:[%s7 + $0x84] sm:$0xf]
    %v3446 = vld [vmem:[%s7 + $0x88] sm:$0xf]
    %v3447 = vld [vmem:[%s7 + $0x8c] sm:$0xf]
    %v3448 = vld [vmem:[%s7 + $0x90] sm:$0xf]
    %v3449 = vld [vmem:[%s7 + $0x94] sm:$0xf]
    %v3450 = vld [vmem:[%s7 + $0x98] sm:$0xf]
    %v3451 = vld [vmem:[%s7 + $0x9c] sm:$0xf]
    %v3452 = vld [vmem:[%s7 + $0xa0] sm:$0xf]
    %v3453 = vld [vmem:[%s7 + $0xa4] sm:$0xf]
    %v3454 = vld [vmem:[%s7 + $0xa8] sm:$0xf]
    %v3455 = vld [vmem:[%s7 + $0xac] sm:$0xf]
    %v3456 = vld [vmem:[%s7 + $0xb0] sm:$0xf]
    %v3457 = vld [vmem:[%s7 + $0xb4] sm:$0xf]
    %v3458 = vld [vmem:[%s7 + $0xb8] sm:$0xf]
    %v3459 = vld [vmem:[%s7 + $0xbc] sm:$0xf]
    %v3460 = vld [vmem:[%s7 + $0xc0] sm:$0xf]
    %v3461 = vld [vmem:[%s7 + $0xc4] sm:$0xf]
    %v3462 = vld [vmem:[%s7 + $0xc8] sm:$0xf]
    %v3463 = vld [vmem:[%s7 + $0xcc] sm:$0xf]
    %v3464 = vld [vmem:[%s7 + $0xd0] sm:$0xf]
    %v3465 = vld [vmem:[%s7 + $0xd4] sm:$0xf]
    %v3466 = vld [vmem:[%s7 + $0xd8] sm:$0xf]
    %v3467 = vld [vmem:[%s7 + $0xdc] sm:$0xf]
    %v3468 = vld [vmem:[%s7 + $0xe0] sm:$0xf]
    %v3469 = vld [vmem:[%s7 + $0xe4] sm:$0xf]
    %v3470 = vld [vmem:[%s7 + $0xe8] sm:$0xf]
    %v3471 = vld [vmem:[%s7 + $0xec] sm:$0xf]
    %v3472 = vld [vmem:[%s7 + $0xf0] sm:$0xf]
    %v3473 = vld [vmem:[%s7 + $0xf4] sm:$0xf]
    %v3474 = vld [vmem:[%s7 + $0xf8] sm:$0x3]
    %v3475 = vld [vmem:[%s8] sm:$0x1]
    %v3477 = vperm.slane %v3475, 0
    %v3542 = vunpack.c.l.b16 %v3412
    %v3543 = vunpack.c.l.b16 %v3413
    %v3544 = vunpack.c.l.b16 %v3414
    %v3545 = vunpack.c.l.b16 %v3415
    %v3546 = vunpack.c.l.b16 %v3416
    %v3547 = vunpack.c.l.b16 %v3417
    %v3548 = vunpack.c.l.b16 %v3418
    %v3549 = vunpack.c.l.b16 %v3419
    %v3550 = vunpack.c.l.b16 %v3420
    %v3551 = vunpack.c.l.b16 %v3421
    %v3552 = vunpack.c.l.b16 %v3422
    %v3553 = vunpack.c.l.b16 %v3423
    %v3554 = vunpack.c.l.b16 %v3424
    %v3555 = vunpack.c.l.b16 %v3425
    %v3556 = vunpack.c.l.b16 %v3426
    %v3557 = vunpack.c.l.b16 %v3427
    %v3558 = vunpack.c.l.b16 %v3428
    %v3559 = vunpack.c.l.b16 %v3429
    %v3560 = vunpack.c.l.b16 %v3430
    %v3561 = vunpack.c.l.b16 %v3431
    %v3562 = vunpack.c.l.b16 %v3432
    %v3563 = vunpack.c.l.b16 %v3433
    %v3564 = vunpack.c.l.b16 %v3434
    %v3565 = vunpack.c.l.b16 %v3435
    %v3566 = vunpack.c.l.b16 %v3436
    %v3567 = vunpack.c.l.b16 %v3437
    %v3568 = vunpack.c.l.b16 %v3438
    %v3569 = vunpack.c.l.b16 %v3439
    %v3570 = vunpack.c.l.b16 %v3440
    %v3571 = vunpack.c.l.b16 %v3441
    %v3572 = vunpack.c.l.b16 %v3442
    %v3573 = vunpack.c.l.b16 %v3443
    %v3574 = vunpack.c.l.b16 %v3444
    %v3575 = vunpack.c.l.b16 %v3445
    %v3576 = vunpack.c.l.b16 %v3446
    %v3577 = vunpack.c.l.b16 %v3447
    %v3578 = vunpack.c.l.b16 %v3448
    %v3579 = vunpack.c.l.b16 %v3449
    %v3580 = vunpack.c.l.b16 %v3450
    %v3581 = vunpack.c.l.b16 %v3451
    %v3582 = vunpack.c.l.b16 %v3452
    %v3583 = vunpack.c.l.b16 %v3453
    %v3584 = vunpack.c.l.b16 %v3454
    %v3585 = vunpack.c.l.b16 %v3455
    %v3586 = vunpack.c.l.b16 %v3456
    %v3587 = vunpack.c.l.b16 %v3457
    %v3588 = vunpack.c.l.b16 %v3458
    %v3589 = vunpack.c.l.b16 %v3459
    %v3590 = vunpack.c.l.b16 %v3460
    %v3591 = vunpack.c.l.b16 %v3461
    %v3592 = vunpack.c.l.b16 %v3462
    %v3593 = vunpack.c.l.b16 %v3463
    %v3594 = vunpack.c.l.b16 %v3464
    %v3595 = vunpack.c.l.b16 %v3465
    %v3596 = vunpack.c.l.b16 %v3466
    %v3597 = vunpack.c.l.b16 %v3467
    %v3598 = vunpack.c.l.b16 %v3468
    %v3599 = vunpack.c.l.b16 %v3469
    %v3600 = vunpack.c.l.b16 %v3470
    %v3601 = vunpack.c.l.b16 %v3471
    %v3602 = vunpack.c.l.b16 %v3472
    %v3603 = vunpack.c.l.b16 %v3473
    %v3604 = vunpack.c.l.b16 %v3474
    %v3605 = vpack.c.b16 %v3543, %v3542
    %v3606 = vpack.c.b16 %v3545, %v3544
    %v3607 = vpack.c.b16 %v3547, %v3546
    %v3608 = vpack.c.b16 %v3549, %v3548
    %v3609 = vpack.c.b16 %v3551, %v3550
    %v3610 = vpack.c.b16 %v3553, %v3552
    %v3611 = vpack.c.b16 %v3555, %v3554
    %v3612 = vpack.c.b16 %v3557, %v3556
    %v3613 = vpack.c.b16 %v3559, %v3558
    %v3614 = vpack.c.b16 %v3561, %v3560
    %v3615 = vpack.c.b16 %v3563, %v3562
    %v3616 = vpack.c.b16 %v3565, %v3564
    %v3617 = vpack.c.b16 %v3567, %v3566
    %v3618 = vpack.c.b16 %v3569, %v3568
    %v3619 = vpack.c.b16 %v3571, %v3570
    %v3620 = vpack.c.b16 %v3573, %v3572
    %v3621 = vpack.c.b16 %v3575, %v3574
    %v3622 = vpack.c.b16 %v3577, %v3576
    %v3623 = vpack.c.b16 %v3579, %v3578
    %v3624 = vpack.c.b16 %v3581, %v3580
    %v3625 = vpack.c.b16 %v3583, %v3582
    %v3626 = vpack.c.b16 %v3585, %v3584
    %v3627 = vpack.c.b16 %v3587, %v3586
    %v3628 = vpack.c.b16 %v3589, %v3588
    %v3629 = vpack.c.b16 %v3591, %v3590
    %v3630 = vpack.c.b16 %v3593, %v3592
    %v3631 = vpack.c.b16 %v3595, %v3594
    %v3632 = vpack.c.b16 %v3597, %v3596
    %v3633 = vpack.c.b16 %v3599, %v3598
    %v3634 = vpack.c.b16 %v3601, %v3600
    %v3635 = vpack.c.b16 %v3603, %v3602
    %v3636 = vpack.c.b16 %v3604, %v3604
    %vm3668 = vcmask 949248
    %v3670 = vsel %vm3668, %v3411, 0
    %vm3672 = vcmask 1041408
    %v3674 = vsel %vm3672, %v3636, 0
    %3676 = vmatpush.bf16.msra.mxu0 %v3612
    %3677 = vmatpush.bf16.msra.mxu0 %v3611
    %3678 = vmatpush.bf16.msra.mxu0 %v3610
    %3679 = vmatpush.bf16.msra.mxu0 %v3609
    %3680 = vmatpush.bf16.msra.mxu0 %v3608
    %3681 = vmatpush.bf16.msra.mxu0 %v3607
    %3682 = vmatpush.bf16.msra.mxu0 %v3606
    %3683 = vmatpush.bf16.msra.mxu0 %v3605
    %3684 = vmatmul.bf16.gmra.mxu0 %v3408
    %v3685 = vpop.f32.mrf.mxu0
    %v3686 = vadd.f32 %v3477, %v3685
    %v3687 = vpop.f32.mrf.mxu0
    %3688 = vdwg.mxu0
    %3689 = vmatpush.bf16.msra.mxu0 %v3620
    %3690 = vmatpush.bf16.msra.mxu0 %v3619
    %3691 = vmatpush.bf16.msra.mxu0 %v3618
    %3692 = vmatpush.bf16.msra.mxu0 %v3617
    %3693 = vmatpush.bf16.msra.mxu0 %v3616
    %3694 = vmatpush.bf16.msra.mxu0 %v3615
    %3695 = vmatpush.bf16.msra.mxu0 %v3614
    %3696 = vmatpush.bf16.msra.mxu0 %v3613
    %3697 = vmatmul.bf16.gmra.mxu0 %v3409
    %v3698 = vpop.f32.mrf.mxu0
    %v3699 = vadd.f32 %v3686, %v3698
    %v3700 = vpop.f32.mrf.mxu0
    %3701 = vdwg.mxu0
    %3702 = vmatpush.bf16.msra.mxu0 %v3628
    %3703 = vmatpush.bf16.msra.mxu0 %v3627
    %3704 = vmatpush.bf16.msra.mxu0 %v3626
    %3705 = vmatpush.bf16.msra.mxu0 %v3625
    %3706 = vmatpush.bf16.msra.mxu0 %v3624
    %3707 = vmatpush.bf16.msra.mxu0 %v3623
    %3708 = vmatpush.bf16.msra.mxu0 %v3622
    %3709 = vmatpush.bf16.msra.mxu0 %v3621
    %3710 = vmatmul.bf16.gmra.mxu0 %v3410
    %v3711 = vpop.f32.mrf.mxu0
    %v3712 = vadd.f32 %v3699, %v3711
    %v3713 = vpop.f32.mrf.mxu0
    %3714 = vdwg.mxu0
    %3715 = vmatpush.bf16.msra.mxu0 %v3674
    %3716 = vmatpush.bf16.msra.mxu0 %v3635
    %3717 = vmatpush.bf16.msra.mxu0 %v3634
    %3718 = vmatpush.bf16.msra.mxu0 %v3633
    %3719 = vmatpush.bf16.msra.mxu0 %v3632
    %3720 = vmatpush.bf16.msra.mxu0 %v3631
    %3721 = vmatpush.bf16.msra.mxu0 %v3630
    %3722 = vmatpush.bf16.msra.mxu0 %v3629
    %3723 = vmatmul.bf16.gmra.mxu0 %v3670
    %v3724 = vpop.f32.mrf.mxu0
    %v3725 = vadd.f32 %v3712, %v3724
    %v3726 = vpop.f32.mrf.mxu0
    %3727 = vdwg.mxu0
    %vm3728 = vcmask 74752
    %v3729 = vsel %vm3728, %v3725, -inf
    %3730 = vmax.xlane.f32.xlu0 %v3729
    %v3731 = vpop.xlane.xlu0 %3730
    %v3732 = vsub.f32 %v3725, %v3731
    %v3733 = vmul.f32 %v3732, 1.442695
    %v3734 = vpow.pop %v3733
    %v3735 = vsel %vm3728, %v3734, 0.0
    %3736 = vadd.xlane.f32.xlu0 %v3735
    %v3737 = vpop.xlane.xlu0 %3736
    %v3738 = vlog2.pop %v3737
    %v3739 = vmul.f32 %v3738, 0.6931472
    %v3740 = vsub.f32 %v3732, %v3739
    %3741 = vst.msk [vmem:[#allocation3] sm:$0x3] %vm3728, %v3740
    // Predicated region
    $region38: #{forward.1} parent=1 // pred_check
      _
    $region39: #{forward.1} parent=1 // pred_check_branch
      %3743 = sbr.rel (0) target = $region41
    $region40: #{forward.1} parent=1 // pred_region
      %3745 = vsyncadd [#allocation4], 0
      %s3747 = sshll.u32 [#allocation3], 4
      %s3748 = int_to_ptr.vmem [resolvable:$true] %s3747
      %s3749 = sshll.u32 %s9, 4
      %s3750 = int_to_ptr.hbm [resolvable:$true] %s3749
      %3752 = dma.vmem_to_hbm [thread:$0]  %s3748, 32, %s3750, [#allocation4]
    $region41: #{forward.1} parent=1 // pred_fallthru
      _
    // Predicated region
    $region42: #{forward.1} parent=1 // pred_check
      _
    $region43: #{forward.1} parent=1 // pred_check_branch
      %3754 = sbr.rel (0) target = $region45
    $region44: #{forward.1} parent=1 // pred_region
      %3756 = dma.done [#allocation4], 32
    $region45: #{forward.1} parent=1 // pred_fallthru
      _
    %3757 = vsyncpa [#allocation4], 1

</llo_original>
